<compile_context>
chip_gen: v6e
topology: v6e:2x2x1
jax: 0.10.0
libtpu: 0.0.40
codegen_flags: <defaults>
</compile_context>

<pallas_src>
import functools

import jax
import jax.numpy as jnp
from jax.experimental import pallas as pl
from jax.experimental.pallas import tpu as pltpu


LATENT = 20
HIDDEN = 400
IN_DIM = 784


def _round_up(n, m):
    return ((n + m - 1) // m) * m


def _bf16_transcendentals_ok():
    """True on chips whose EUP/VPU have a bf16 path (v6e/v7x); False on v5e-."""
    try:
        kind = jax.devices()[0].device_kind.lower()
    except Exception:
        return True
    for tag in ("v2", "v3", "v4", "v5 lite", "v5e", "v5lite"):
        if tag in kind:
            return False
    return True


def _choose_tb(batch, block_b):
    """Pick the batch tile: big (amortize per-step overhead), 16-aligned, and
    capped so large batches give >=2 grid steps (v7x megacore sharding)."""
    b16 = _round_up(max(batch, 1), 16)
    tb = min(block_b, b16)
    if b16 >= 512:
        half = max(128, (pl.cdiv(b16, 2) // 128) * 128)
        tb = min(tb, half)
    return _round_up(tb, 16)


def vae_forward_kernel(
    x_ref,            # (TB, 784)  f32 (cast to bf16 in-kernel)
    eps_ref,          # (TB, 20)   f32   N(0,1) noise for reparametrization
    w1_ref, b1_ref,   # (784, 400) bf16, (1, 400) f32
    w2_ref, b2_ref,   # (400, 40)  bf16, (1, 40)  f32   [fc21 | fc22 fused]
    w3_ref, b3_ref,   # (20, 400)  bf16, (1, 400) f32
    w4_ref, b4_ref,   # (400, 784) bf16, (1, 784) f32
    recon_ref,        # out: (TB, 784) bf16
    mulogvar_ref,     # out: (TB, 40)  f32  (mu in cols 0:20, logvar in 20:40)
    *, bf16_eup,
):
    x = x_ref[...].astype(jnp.bfloat16)

    # encode: h1 = relu(x @ W1 + b1)   (f32 accumulate, bf16 for next matmul)
    h1 = jnp.dot(x, w1_ref[...], preferred_element_type=jnp.float32) + b1_ref[...]
    h1 = jnp.maximum(h1, 0.0).astype(jnp.bfloat16)

    # fused mu/logvar head: one MXU pass over h1 instead of two N=20 matmuls
    ml = jnp.dot(h1, w2_ref[...], preferred_element_type=jnp.float32) + b2_ref[...]
    mu = ml[:, :LATENT]
    logvar = ml[:, LATENT:]

    # reparametrize: z = eps * exp(0.5 * logvar) + mu
    std = jnp.exp(0.5 * logvar)
    z = (eps_ref[...] * std + mu).astype(jnp.bfloat16)

    # decode: h3 = relu(z @ W3 + b3); recon = sigmoid(h3 @ W4 + b4)
    h3 = jnp.dot(z, w3_ref[...], preferred_element_type=jnp.float32) + b3_ref[...]
    h3 = jnp.maximum(h3, 0.0).astype(jnp.bfloat16)
    logits = jnp.dot(h3, w4_ref[...], preferred_element_type=jnp.float32) + b4_ref[...]

    # sigmoid(x) = 0.5*tanh(0.5*x) + 0.5: single EUP op, exactly in [0, 1]
    if bf16_eup:
        logits = logits.astype(jnp.bfloat16)   # bf16 EUP path on v6e/v7x
    recon = 0.5 * jnp.tanh(0.5 * logits) + 0.5

    recon_ref[...] = recon.astype(recon_ref.dtype)
    mulogvar_ref[...] = ml.astype(mulogvar_ref.dtype)


@functools.partial(jax.jit, static_argnames=("block_b",))
def vae_forward(x, eps, params, *, block_b=512):
    """x: (B, 1, 28, 28) or (B, 784); eps: (B, 20).

    Returns (recon[bf16], mu[f32], logvar[f32]).
    """
    x2d = x.reshape(-1, IN_DIM).astype(jnp.float32)   # mirrors x.view(-1, 784)
    B = x2d.shape[0]
    eps = eps.astype(jnp.float32)

    # --- prepare weights: fuse fc21|fc22, cast weights to bf16 (f32 biases) ---
    (w1, b1, w21, b21, w22, b22, w3, b3, w4, b4) = params
    w2 = jnp.concatenate([w21, w22], axis=1)          # (400, 40)
    b2 = jnp.concatenate([b21, b22], axis=1)          # (1, 40)
    w1, w2, w3, w4 = (w.astype(jnp.bfloat16) for w in (w1, w2, w3, w4))
    b1, b2, b3, b4 = (b.astype(jnp.float32) for b in (b1, b2, b3, b4))

    # --- batch tiling; pad only if B is not a tile multiple ---
    tb = _choose_tb(B, block_b)
    bp = _round_up(B, tb)
    if bp != B:
        x2d = jnp.pad(x2d, ((0, bp - B), (0, 0)))
        eps = jnp.pad(eps, ((0, bp - B), (0, 0)))

    grid = (bp // tb,)

    batch_spec = lambda shape: pl.BlockSpec(shape, lambda i: (i, 0))
    # constant index map => weights stay VMEM-resident across grid steps
    resident_spec = lambda shape: pl.BlockSpec(shape, lambda i: (0, 0))

    in_specs = [
        batch_spec((tb, IN_DIM)),       # x (f32)
        batch_spec((tb, LATENT)),       # eps
        resident_spec((IN_DIM, HIDDEN)), resident_spec((1, HIDDEN)),          # fc1
        resident_spec((HIDDEN, 2 * LATENT)), resident_spec((1, 2 * LATENT)),  # fc21|fc22
        resident_spec((LATENT, HIDDEN)), resident_spec((1, HIDDEN)),          # fc3
        resident_spec((HIDDEN, IN_DIM)), resident_spec((1, IN_DIM)),          # fc4
    ]
    out_specs = [
        batch_spec((tb, IN_DIM)),       # recon (bf16)
        batch_spec((tb, 2 * LATENT)),   # packed mu|logvar
    ]
    out_shapes = (
        jax.ShapeDtypeStruct((bp, IN_DIM), jnp.bfloat16),
        jax.ShapeDtypeStruct((bp, 2 * LATENT), jnp.float32),
    )

    kernel = functools.partial(vae_forward_kernel,
                               bf16_eup=_bf16_transcendentals_ok())

    recon_p, ml_p = pl.pallas_call(
        kernel,
        out_shape=out_shapes,
        grid_spec=pltpu.PrefetchScalarGridSpec(
            num_scalar_prefetch=0,
            grid=grid,
            in_specs=in_specs,
            out_specs=out_specs,
        ),
        compiler_params=pltpu.CompilerParams(
            dimension_semantics=("parallel",),   # batch tiles are independent
        ),
    )(x2d, eps, w1, b1, w2, b2, w3, b3, w4, b4)

    recon = recon_p[:B]
    mu = ml_p[:B, :LATENT]
    logvar = ml_p[:B, LATENT:]
    return recon, mu, logvar


def vae_forward_ref(x, eps, params):
    """Pure-JAX reference with the same bf16-weight / f32-accumulate recipe."""
    x2d = x.reshape(-1, IN_DIM).astype(jnp.float32)
    (w1, b1, w21, b21, w22, b22, w3, b3, w4, b4) = params

    def lin(a, w, b):
        return jnp.dot(a.astype(jnp.bfloat16), w.astype(jnp.bfloat16),
                       preferred_element_type=jnp.float32) + b

    h1 = jnp.maximum(lin(x2d, w1, b1), 0.0)
    mu = lin(h1, w21, b21)
    logvar = lin(h1, w22, b22)
    z = eps.astype(jnp.float32) * jnp.exp(0.5 * logvar) + mu
    h3 = jnp.maximum(lin(z, w3, b3), 0.0)
    recon = jax.nn.sigmoid(lin(h3, w4, b4))
    return recon, mu, logvar


def init_vae_params(key):
    """Deterministic init matching the layer shapes of the PyTorch VAE.

    nn.Linear(in, out) default init: U(-1/sqrt(in), 1/sqrt(in)) for W and b.
    Weights stored transposed as (in, out); biases as (1, out); all f32.
    """
    dims = [
        ("fc1", IN_DIM, HIDDEN),
        ("fc21", HIDDEN, LATENT),
        ("fc22", HIDDEN, LATENT),
        ("fc3", LATENT, HIDDEN),
        ("fc4", HIDDEN, IN_DIM),
    ]
    params = []
    for (_, fin, fout) in dims:
        key, kw, kb = jax.random.split(key, 3)
        bound = 1.0 / jnp.sqrt(jnp.float32(fin))
        w = jax.random.uniform(kw, (fin, fout), jnp.float32, -bound, bound)
        b = jax.random.uniform(kb, (1, fout), jnp.float32, -bound, bound)
        params.extend([w, b])
    return tuple(params)


def _check(x, eps, params):
    recon, mu, logvar = vae_forward(x, eps, params)
    jax.block_until_ready((recon, mu, logvar))

    B = x.reshape(-1, IN_DIM).shape[0]
    assert recon.shape == (B, IN_DIM) and mu.shape == (B, LATENT) and logvar.shape == (B, LATENT)
    assert recon.dtype == jnp.bfloat16

    recon_f = recon.astype(jnp.float32)
    assert bool(jnp.all(jnp.isfinite(recon_f)))
    # tanh-form sigmoid is exactly bounded in [0, 1]
    assert bool(jnp.all(recon_f >= 0.0) & jnp.all(recon_f <= 1.0))

    r_ref, mu_ref, lv_ref = vae_forward_ref(x, eps, params)
    assert bool(jnp.allclose(recon_f, r_ref, atol=5e-2, rtol=5e-2))
    assert bool(jnp.allclose(mu, mu_ref, atol=5e-2, rtol=5e-2))
    assert bool(jnp.allclose(logvar, lv_ref, atol=5e-2, rtol=5e-2))


if __name__ == "__main__":
    key = jax.random.PRNGKey(0)
    k_param, k_x, k_eps, k_x2, k_eps2 = jax.random.split(key, 5)

    params = init_vae_params(k_param)

    # Small batch (single grid step, padded from 8 -> 16 rows)
    B = 8
    x = jax.random.uniform(k_x, (B, 1, 28, 28), jnp.float32)
    # TODO(synk): noise could be generated in-kernel via pltpu.prng_seed +
    # pltpu.stateful_normal; kept as an explicit input to mirror the PyTorch
    # module's externally drawn eps and keep the test deterministic.
    eps = jax.random.normal(k_eps, (B, LATENT), jnp.float32)
    _check(x, eps, params)

    # Larger batch exercising the multi-step ("parallel") grid + ragged pad path
    B2 = 600
    x2 = jax.random.uniform(k_x2, (B2, 1, 28, 28), jnp.float32)
    eps2 = jax.random.normal(k_eps2, (B2, LATENT), jnp.float32)
    _check(x2, eps2, params)

    print("KERNEL_OK")
</pallas_src>

<mosaic_0001>
module attributes {stable_mosaic.version = 11 : i64} {
  func.func @vae_forward_kernel(%arg0: i32, %arg1: memref<16x784xf32, #tpu.memory_space<vmem>>, %arg2: memref<16x20xf32, #tpu.memory_space<vmem>>, %arg3: memref<784x400xbf16, #tpu.memory_space<vmem>>, %arg4: memref<1x400xf32, #tpu.memory_space<vmem>>, %arg5: memref<400x40xbf16, #tpu.memory_space<vmem>>, %arg6: memref<1x40xf32, #tpu.memory_space<vmem>>, %arg7: memref<20x400xbf16, #tpu.memory_space<vmem>>, %arg8: memref<1x400xf32, #tpu.memory_space<vmem>>, %arg9: memref<400x784xbf16, #tpu.memory_space<vmem>>, %arg10: memref<1x784xf32, #tpu.memory_space<vmem>>, %arg11: memref<16x784xbf16, #tpu.memory_space<vmem>>, %arg12: memref<16x40xf32, #tpu.memory_space<vmem>>) attributes {dimension_semantics = [#tpu.dimension_semantics<parallel>], iteration_bounds = array<i64: 1>, scalar_prefetch = 0 : i64, scratch_operands = 0 : i64, tpu.core_type = #tpu.core_type<tc>, window_params = [{transform_indices = @transform_0, window_bounds = array<i64: 16, 784>}, {transform_indices = @transform_1, window_bounds = array<i64: 16, 20>}, {pipeline_mode = #tpu.pipeline_mode<synchronous>, transform_indices = @transform_2, window_bounds = array<i64: 784, 400>}, {pipeline_mode = #tpu.pipeline_mode<synchronous>, transform_indices = @transform_3, window_bounds = array<i64: 1, 400>}, {pipeline_mode = #tpu.pipeline_mode<synchronous>, transform_indices = @transform_4, window_bounds = array<i64: 400, 40>}, {pipeline_mode = #tpu.pipeline_mode<synchronous>, transform_indices = @transform_5, window_bounds = array<i64: 1, 40>}, {pipeline_mode = #tpu.pipeline_mode<synchronous>, transform_indices = @transform_6, window_bounds = array<i64: 20, 400>}, {pipeline_mode = #tpu.pipeline_mode<synchronous>, transform_indices = @transform_7, window_bounds = array<i64: 1, 400>}, {pipeline_mode = #tpu.pipeline_mode<synchronous>, transform_indices = @transform_8, window_bounds = array<i64: 400, 784>}, {pipeline_mode = #tpu.pipeline_mode<synchronous>, transform_indices = @transform_9, window_bounds = array<i64: 1, 784>}, {transform_indices = @transform_10, window_bounds = array<i64: 16, 784>}, {transform_indices = @transform_11, window_bounds = array<i64: 16, 40>}]} {
    %c0 = arith.constant 0 : index
    %c0_0 = arith.constant 0 : index
    %0 = vector.load %arg1[%c0, %c0_0] : memref<16x784xf32, #tpu.memory_space<vmem>>, vector<16x784xf32>
    %1 = arith.truncf %0 : vector<16x784xf32> to vector<16x784xbf16>
    %c0_1 = arith.constant 0 : index
    %c0_2 = arith.constant 0 : index
    %2 = vector.load %arg3[%c0_1, %c0_2] : memref<784x400xbf16, #tpu.memory_space<vmem>>, vector<784x400xbf16>
    %cst = arith.constant dense<0.000000e+00> : vector<16x400xf32>
    %3 = tpu.matmul %1, %2, %cst {dimension_numbers = #tpu.dot_dimension_numbers<[1], [0], [0], [1], [0, 0, 1, 1], [], []>} : vector<16x784xbf16>, vector<784x400xbf16>, vector<16x400xf32> -> vector<16x400xf32>
    %c0_3 = arith.constant 0 : index
    %c0_4 = arith.constant 0 : index
    %4 = vector.load %arg4[%c0_3, %c0_4] : memref<1x400xf32, #tpu.memory_space<vmem>>, vector<1x400xf32>
    %5 = vector.broadcast %4 : vector<1x400xf32> to vector<16x400xf32>
    %6 = arith.addf %3, %5 : vector<16x400xf32>
    %cst_5 = arith.constant 0.000000e+00 : f32
    %7 = vector.broadcast %cst_5 : f32 to vector<16x400xf32>
    %8 = arith.maximumf %6, %7 : vector<16x400xf32>
    %9 = arith.truncf %8 : vector<16x400xf32> to vector<16x400xbf16>
    %c0_6 = arith.constant 0 : index
    %c0_7 = arith.constant 0 : index
    %10 = vector.load %arg5[%c0_6, %c0_7] : memref<400x40xbf16, #tpu.memory_space<vmem>>, vector<400x40xbf16>
    %cst_8 = arith.constant dense<0.000000e+00> : vector<16x40xf32>
    %11 = tpu.matmul %9, %10, %cst_8 {dimension_numbers = #tpu.dot_dimension_numbers<[1], [0], [0], [1], [0, 0, 1, 1], [], []>} : vector<16x400xbf16>, vector<400x40xbf16>, vector<16x40xf32> -> vector<16x40xf32>
    %c0_9 = arith.constant 0 : index
    %c0_10 = arith.constant 0 : index
    %12 = vector.load %arg6[%c0_9, %c0_10] : memref<1x40xf32, #tpu.memory_space<vmem>>, vector<1x40xf32>
    %13 = vector.broadcast %12 : vector<1x40xf32> to vector<16x40xf32>
    %14 = arith.addf %11, %13 : vector<16x40xf32>
    %15 = vector.extract_strided_slice %14 {offsets = [0, 0], sizes = [16, 20], strides = [1, 1]} : vector<16x40xf32> to vector<16x20xf32>
    %16 = vector.extract_strided_slice %14 {offsets = [0, 20], sizes = [16, 20], strides = [1, 1]} : vector<16x40xf32> to vector<16x20xf32>
    %cst_11 = arith.constant 5.000000e-01 : f32
    %17 = vector.broadcast %cst_11 : f32 to vector<16x20xf32>
    %18 = arith.mulf %17, %16 : vector<16x20xf32>
    %19 = math.exp %18 : vector<16x20xf32>
    %c0_12 = arith.constant 0 : index
    %c0_13 = arith.constant 0 : index
    %20 = vector.load %arg2[%c0_12, %c0_13] : memref<16x20xf32, #tpu.memory_space<vmem>>, vector<16x20xf32>
    %21 = arith.mulf %20, %19 : vector<16x20xf32>
    %22 = arith.addf %21, %15 : vector<16x20xf32>
    %23 = arith.truncf %22 : vector<16x20xf32> to vector<16x20xbf16>
    %c0_14 = arith.constant 0 : index
    %c0_15 = arith.constant 0 : index
    %24 = vector.load %arg7[%c0_14, %c0_15] : memref<20x400xbf16, #tpu.memory_space<vmem>>, vector<20x400xbf16>
    %cst_16 = arith.constant dense<0.000000e+00> : vector<16x400xf32>
    %25 = tpu.matmul %23, %24, %cst_16 {dimension_numbers = #tpu.dot_dimension_numbers<[1], [0], [0], [1], [0, 0, 1, 1], [], []>} : vector<16x20xbf16>, vector<20x400xbf16>, vector<16x400xf32> -> vector<16x400xf32>
    %c0_17 = arith.constant 0 : index
    %c0_18 = arith.constant 0 : index
    %26 = vector.load %arg8[%c0_17, %c0_18] : memref<1x400xf32, #tpu.memory_space<vmem>>, vector<1x400xf32>
    %27 = vector.broadcast %26 : vector<1x400xf32> to vector<16x400xf32>
    %28 = arith.addf %25, %27 : vector<16x400xf32>
    %cst_19 = arith.constant 0.000000e+00 : f32
    %29 = vector.broadcast %cst_19 : f32 to vector<16x400xf32>
    %30 = arith.maximumf %28, %29 : vector<16x400xf32>
    %31 = arith.truncf %30 : vector<16x400xf32> to vector<16x400xbf16>
    %c0_20 = arith.constant 0 : index
    %c0_21 = arith.constant 0 : index
    %32 = vector.load %arg9[%c0_20, %c0_21] : memref<400x784xbf16, #tpu.memory_space<vmem>>, vector<400x784xbf16>
    %cst_22 = arith.constant dense<0.000000e+00> : vector<16x784xf32>
    %33 = tpu.matmul %31, %32, %cst_22 {dimension_numbers = #tpu.dot_dimension_numbers<[1], [0], [0], [1], [0, 0, 1, 1], [], []>} : vector<16x400xbf16>, vector<400x784xbf16>, vector<16x784xf32> -> vector<16x784xf32>
    %c0_23 = arith.constant 0 : index
    %c0_24 = arith.constant 0 : index
    %34 = vector.load %arg10[%c0_23, %c0_24] : memref<1x784xf32, #tpu.memory_space<vmem>>, vector<1x784xf32>
    %35 = vector.broadcast %34 : vector<1x784xf32> to vector<16x784xf32>
    %36 = arith.addf %33, %35 : vector<16x784xf32>
    %37 = arith.truncf %36 : vector<16x784xf32> to vector<16x784xbf16>
    %cst_25 = arith.constant 5.000000e-01 : bf16
    %38 = vector.broadcast %cst_25 : bf16 to vector<16x784xbf16>
    %39 = arith.mulf %38, %37 : vector<16x784xbf16>
    %40 = math.tanh %39 : vector<16x784xbf16>
    %cst_26 = arith.constant 5.000000e-01 : bf16
    %41 = vector.broadcast %cst_26 : bf16 to vector<16x784xbf16>
    %42 = arith.mulf %41, %40 : vector<16x784xbf16>
    %cst_27 = arith.constant 5.000000e-01 : bf16
    %43 = vector.broadcast %cst_27 : bf16 to vector<16x784xbf16>
    %44 = arith.addf %42, %43 : vector<16x784xbf16>
    %c0_28 = arith.constant 0 : index
    %c0_29 = arith.constant 0 : index
    %45 = vector.load %arg11[%c0_28, %c0_29] : memref<16x784xbf16, #tpu.memory_space<vmem>>, vector<16x784xbf16>
    tpu.vector_store %arg11[%c0_28, %c0_29], %44 {strides = array<i32>} : memref<16x784xbf16, #tpu.memory_space<vmem>>, vector<16x784xbf16>,
    %c0_30 = arith.constant 0 : index
    %c0_31 = arith.constant 0 : index
    %46 = vector.load %arg12[%c0_30, %c0_31] : memref<16x40xf32, #tpu.memory_space<vmem>>, vector<16x40xf32>
    tpu.vector_store %arg12[%c0_30, %c0_31], %14 {strides = array<i32>} : memref<16x40xf32, #tpu.memory_space<vmem>>, vector<16x40xf32>,
    return
  }
  func.func @transform_0(%arg0: i32) -> (i32, i32) {
    %c0_i32 = arith.constant 0 : i32
    %c0_i32_0 = arith.constant 0 : i32
    return %arg0, %c0_i32 : i32, i32
  }
  func.func @transform_1(%arg0: i32) -> (i32, i32) {
    %c0_i32 = arith.constant 0 : i32
    %c0_i32_0 = arith.constant 0 : i32
    return %arg0, %c0_i32 : i32, i32
  }
  func.func @transform_2(%arg0: i32) -> (i32, i32) {
    %c0_i32 = arith.constant 0 : i32
    %c0_i32_0 = arith.constant 0 : i32
    %c0_i32_1 = arith.constant 0 : i32
    return %c0_i32, %c0_i32_0 : i32, i32
  }
  func.func @transform_3(%arg0: i32) -> (i32, i32) {
    %c0_i32 = arith.constant 0 : i32
    %c0_i32_0 = arith.constant 0 : i32
    %c0_i32_1 = arith.constant 0 : i32
    return %c0_i32, %c0_i32_0 : i32, i32
  }
  func.func @transform_4(%arg0: i32) -> (i32, i32) {
    %c0_i32 = arith.constant 0 : i32
    %c0_i32_0 = arith.constant 0 : i32
    %c0_i32_1 = arith.constant 0 : i32
    return %c0_i32, %c0_i32_0 : i32, i32
  }
  func.func @transform_5(%arg0: i32) -> (i32, i32) {
    %c0_i32 = arith.constant 0 : i32
    %c0_i32_0 = arith.constant 0 : i32
    %c0_i32_1 = arith.constant 0 : i32
    return %c0_i32, %c0_i32_0 : i32, i32
  }
  func.func @transform_6(%arg0: i32) -> (i32, i32) {
    %c0_i32 = arith.constant 0 : i32
    %c0_i32_0 = arith.constant 0 : i32
    %c0_i32_1 = arith.constant 0 : i32
    return %c0_i32, %c0_i32_0 : i32, i32
  }
  func.func @transform_7(%arg0: i32) -> (i32, i32) {
    %c0_i32 = arith.constant 0 : i32
    %c0_i32_0 = arith.constant 0 : i32
    %c0_i32_1 = arith.constant 0 : i32
    return %c0_i32, %c0_i32_0 : i32, i32
  }
  func.func @transform_8(%arg0: i32) -> (i32, i32) {
    %c0_i32 = arith.constant 0 : i32
    %c0_i32_0 = arith.constant 0 : i32
    %c0_i32_1 = arith.constant 0 : i32
    return %c0_i32, %c0_i32_0 : i32, i32
  }
  func.func @transform_9(%arg0: i32) -> (i32, i32) {
    %c0_i32 = arith.constant 0 : i32
    %c0_i32_0 = arith.constant 0 : i32
    %c0_i32_1 = arith.constant 0 : i32
    return %c0_i32, %c0_i32_0 : i32, i32
  }
  func.func @transform_10(%arg0: i32) -> (i32, i32) {
    %c0_i32 = arith.constant 0 : i32
    %c0_i32_0 = arith.constant 0 : i32
    return %arg0, %c0_i32 : i32, i32
  }
  func.func @transform_11(%arg0: i32) -> (i32, i32) {
    %c0_i32 = arith.constant 0 : i32
    %c0_i32_0 = arith.constant 0 : i32
    return %arg0, %c0_i32 : i32, i32
  }
}

</mosaic_0001>

<llo_original>
// kernel: vae_forward.1
$region0: #{vae_forward.1}
  #allocation0 [shape = 'u32[]', space=smem, size = 0x4, offset = 0x4, fixed_abs, tag = 'smem constant byte address 0x4 - core index']
  #allocation1 [shape = 'u32[144,128]{1,0:T(1,128)}', space=vmem, size = 0x12000, scoped, tag = 'internal scratch']
  %s0 = inlined_call_operand.vmem [shape: f32[16,784], index: 0, kind: input, shape index: {}]
  %s1 = inlined_call_operand.vmem [shape: f32[16,20], index: 1, kind: input, shape index: {}]
  %s2 = inlined_call_operand.vmem [shape: bf16[784,400], index: 2, kind: input, shape index: {}]
  %s3 = inlined_call_operand.vmem [shape: f32[1,400], index: 3, kind: input, shape index: {}]
  %s4 = inlined_call_operand.vmem [shape: bf16[400,40], index: 4, kind: input, shape index: {}]
  %s5 = inlined_call_operand.vmem [shape: f32[1,40], index: 5, kind: input, shape index: {}]
  %s6 = inlined_call_operand.vmem [shape: bf16[20,400], index: 6, kind: input, shape index: {}]
  %s7 = inlined_call_operand.vmem [shape: f32[1,400], index: 7, kind: input, shape index: {}]
  %s8 = inlined_call_operand.vmem [shape: bf16[400,784], index: 8, kind: input, shape index: {}]
  %s9 = inlined_call_operand.vmem [shape: f32[1,784], index: 9, kind: input, shape index: {}]
  %s10 = inlined_call_operand.vmem [shape: bf16[16,784], index: 10, kind: output, shape index: {0}]
  %s11 = inlined_call_operand.vmem [shape: f32[16,40], index: 11, kind: output, shape index: {1}]
  %12 = xla_tuple %s10, %s11
  %s13 = sld [smem:[#allocation0]]
  $region58: #{vae_forward.1} parent=0
    _
  %s15 = ssub.s32 1, %s13
  %s16 = scalar_select 0, %s15, %s13
  // Predicated region
  $region2: #{vae_forward.1} parent=0 // pred_check
    _
  $region3: #{vae_forward.1} parent=0 // pred_check_branch
    %18 = sbr.rel (0) target = $region5
  $region4: #{vae_forward.1} parent=0 // pred_region
    _
  $region5: #{vae_forward.1} parent=0 // pred_fallthru
    _
  // Predicated region
  $region6: #{vae_forward.1} parent=0 // pred_check
    _
  $region7: #{vae_forward.1} parent=0 // pred_check_branch
    %20 = sbr.rel (0) target = $region9
  $region8: #{vae_forward.1} parent=0 // pred_region
    _
  $region9: #{vae_forward.1} parent=0 // pred_fallthru
    _
  // Predicated region
  $region10: #{vae_forward.1} parent=0 // pred_check
    _
  $region11: #{vae_forward.1} parent=0 // pred_check_branch
    %22 = sbr.rel (0) target = $region13
  $region12: #{vae_forward.1} parent=0 // pred_region
    _
  $region13: #{vae_forward.1} parent=0 // pred_fallthru
    _
  // Predicated region
  $region14: #{vae_forward.1} parent=0 // pred_check
    _
  $region15: #{vae_forward.1} parent=0 // pred_check_branch
    %24 = sbr.rel (0) target = $region17
  $region16: #{vae_forward.1} parent=0 // pred_region
    _
  $region17: #{vae_forward.1} parent=0 // pred_fallthru
    _
  // Predicated region
  $region18: #{vae_forward.1} parent=0 // pred_check
    _
  $region19: #{vae_forward.1} parent=0 // pred_check_branch
    %26 = sbr.rel (0) target = $region21
  $region20: #{vae_forward.1} parent=0 // pred_region
    _
  $region21: #{vae_forward.1} parent=0 // pred_fallthru
    _
  // Predicated region
  $region22: #{vae_forward.1} parent=0 // pred_check
    _
  $region23: #{vae_forward.1} parent=0 // pred_check_branch
    %28 = sbr.rel (0) target = $region25
  $region24: #{vae_forward.1} parent=0 // pred_region
    _
  $region25: #{vae_forward.1} parent=0 // pred_fallthru
    _
  // Predicated region
  $region26: #{vae_forward.1} parent=0 // pred_check
    _
  $region27: #{vae_forward.1} parent=0 // pred_check_branch
    %30 = sbr.rel (0) target = $region29
  $region28: #{vae_forward.1} parent=0 // pred_region
    _
  $region29: #{vae_forward.1} parent=0 // pred_fallthru
    _
  // Predicated region
  $region30: #{vae_forward.1} parent=0 // pred_check
    _
  $region31: #{vae_forward.1} parent=0 // pred_check_branch
    %32 = sbr.rel (0) target = $region33
  $region32: #{vae_forward.1} parent=0 // pred_region
    _
  $region33: #{vae_forward.1} parent=0 // pred_fallthru
    _
  // Predicated region
  $region34: #{vae_forward.1} parent=0 // pred_check
    _
  $region35: #{vae_forward.1} parent=0 // pred_check_branch
    %34 = sbr.rel (0) target = $region37
  $region36: #{vae_forward.1} parent=0 // pred_region
    _
  $region37: #{vae_forward.1} parent=0 // pred_fallthru
    _
  // Predicated region
  $region38: #{vae_forward.1} parent=0 // pred_check
    _
  $region39: #{vae_forward.1} parent=0 // pred_check_branch
    %36 = sbr.rel (0) target = $region41
  $region40: #{vae_forward.1} parent=0 // pred_region
    _
  $region41: #{vae_forward.1} parent=0 // pred_fallthru
    _
  %v39 = vld [vmem:[%s0] sm:$0xff]
  %v40 = vld [vmem:[%s0 + $0x8] sm:$0xff]
  %v41 = vld [vmem:[%s0 + $0x10] sm:$0xff]
  %v42 = vld [vmem:[%s0 + $0x18] sm:$0xff]
  %v43 = vld [vmem:[%s0 + $0x20] sm:$0xff]
  %v44 = vld [vmem:[%s0 + $0x28] sm:$0xff]
  %v45 = vld [vmem:[%s0 + $0x30] sm:$0xff]
  %v46 = vld [vmem:[%s0 + $0x38] sm:$0xff]
  %v47 = vld [vmem:[%s0 + $0x40] sm:$0xff]
  %v48 = vld [vmem:[%s0 + $0x48] sm:$0xff]
  %v49 = vld [vmem:[%s0 + $0x50] sm:$0xff]
  %v50 = vld [vmem:[%s0 + $0x58] sm:$0xff]
  %v51 = vld [vmem:[%s0 + $0x60] sm:$0xff]
  %v52 = vld [vmem:[%s0 + $0x68] sm:$0xff]
  %v53 = vpack.c.bf16 %v46, %v39
  %v54 = vpack.c.bf16 %v47, %v40
  %v55 = vpack.c.bf16 %v48, %v41
  %v56 = vpack.c.bf16 %v49, %v42
  %v57 = vpack.c.bf16 %v50, %v43
  %v58 = vpack.c.bf16 %v51, %v44
  %v59 = vpack.c.bf16 %v52, %v45
  %v60 = vld [vmem:[%s2] sm:$0xff]
  %v61 = vld [vmem:[%s2 + $0x8] sm:$0xff]
  %v62 = vld [vmem:[%s2 + $0x10] sm:$0xff]
  %v63 = vld [vmem:[%s2 + $0x18] sm:$0xff]
  %v64 = vld [vmem:[%s2 + $0x20] sm:$0xff]
  %v65 = vld [vmem:[%s2 + $0x28] sm:$0xff]
  %v66 = vld [vmem:[%s2 + $0x30] sm:$0xff]
  %v67 = vld [vmem:[%s2 + $0x38] sm:$0xff]
  %v68 = vld [vmem:[%s2 + $0x40] sm:$0xff]
  %v69 = vld [vmem:[%s2 + $0x48] sm:$0xff]
  %v70 = vld [vmem:[%s2 + $0x50] sm:$0xff]
  %v71 = vld [vmem:[%s2 + $0x58] sm:$0xff]
  %v72 = vld [vmem:[%s2 + $0x60] sm:$0xff]
  %v73 = vld [vmem:[%s2 + $0x68] sm:$0xff]
  %v74 = vld [vmem:[%s2 + $0x70] sm:$0xff]
  %v75 = vld [vmem:[%s2 + $0x78] sm:$0xff]
  %v76 = vld [vmem:[%s2 + $0x80] sm:$0xff]
  %v77 = vld [vmem:[%s2 + $0x88] sm:$0xff]
  %v78 = vld [vmem:[%s2 + $0x90] sm:$0xff]
  %v79 = vld [vmem:[%s2 + $0x98] sm:$0xff]
  %v80 = vld [vmem:[%s2 + $0xa0] sm:$0xff]
  %v81 = vld [vmem:[%s2 + $0xa8] sm:$0xff]
  %v82 = vld [vmem:[%s2 + $0xb0] sm:$0xff]
  %v83 = vld [vmem:[%s2 + $0xb8] sm:$0xff]
  %v84 = vld [vmem:[%s2 + $0xc0] sm:$0xff]
  %v85 = vld [vmem:[%s2 + $0xc8] sm:$0xff]
  %v86 = vld [vmem:[%s2 + $0xd0] sm:$0xff]
  %v87 = vld [vmem:[%s2 + $0xd8] sm:$0xff]
  %v88 = vld [vmem:[%s2 + $0xe0] sm:$0xff]
  %v89 = vld [vmem:[%s2 + $0xe8] sm:$0xff]
  %v90 = vld [vmem:[%s2 + $0xf0] sm:$0xff]
  %v91 = vld [vmem:[%s2 + $0xf8] sm:$0xff]
  %v92 = vld [vmem:[%s2 + $0x100] sm:$0xff]
  %v93 = vld [vmem:[%s2 + $0x108] sm:$0xff]
  %v94 = vld [vmem:[%s2 + $0x110] sm:$0xff]
  %v95 = vld [vmem:[%s2 + $0x118] sm:$0xff]
  %v96 = vld [vmem:[%s2 + $0x120] sm:$0xff]
  %v97 = vld [vmem:[%s2 + $0x128] sm:$0xff]
  %v98 = vld [vmem:[%s2 + $0x130] sm:$0xff]
  %v99 = vld [vmem:[%s2 + $0x138] sm:$0xff]
  %v100 = vld [vmem:[%s2 + $0x140] sm:$0xff]
  %v101 = vld [vmem:[%s2 + $0x148] sm:$0xff]
  %v102 = vld [vmem:[%s2 + $0x150] sm:$0xff]
  %v103 = vld [vmem:[%s2 + $0x158] sm:$0xff]
  %v104 = vld [vmem:[%s2 + $0x160] sm:$0xff]
  %v105 = vld [vmem:[%s2 + $0x168] sm:$0xff]
  %v106 = vld [vmem:[%s2 + $0x170] sm:$0xff]
  %v107 = vld [vmem:[%s2 + $0x178] sm:$0xff]
  %v108 = vld [vmem:[%s2 + $0x180] sm:$0xff]
  %v109 = vld [vmem:[%s2 + $0x188] sm:$0xff]
  %v110 = vld [vmem:[%s2 + $0x190] sm:$0xff]
  %v111 = vld [vmem:[%s2 + $0x198] sm:$0xff]
  %v112 = vld [vmem:[%s2 + $0x1a0] sm:$0xff]
  %v113 = vld [vmem:[%s2 + $0x1a8] sm:$0xff]
  %v114 = vld [vmem:[%s2 + $0x1b0] sm:$0xff]
  %v115 = vld [vmem:[%s2 + $0x1b8] sm:$0xff]
  %v116 = vld [vmem:[%s2 + $0x1c0] sm:$0xff]
  %v117 = vld [vmem:[%s2 + $0x1c8] sm:$0xff]
  %v118 = vld [vmem:[%s2 + $0x1d0] sm:$0xff]
  %v119 = vld [vmem:[%s2 + $0x1d8] sm:$0xff]
  %v120 = vld [vmem:[%s2 + $0x1e0] sm:$0xff]
  %v121 = vld [vmem:[%s2 + $0x1e8] sm:$0xff]
  %v122 = vld [vmem:[%s2 + $0x1f0] sm:$0xff]
  %v123 = vld [vmem:[%s2 + $0x1f8] sm:$0xff]
  %v124 = vld [vmem:[%s2 + $0x200] sm:$0xff]
  %v125 = vld [vmem:[%s2 + $0x208] sm:$0xff]
  %v126 = vld [vmem:[%s2 + $0x210] sm:$0xff]
  %v127 = vld [vmem:[%s2 + $0x218] sm:$0xff]
  %v128 = vld [vmem:[%s2 + $0x220] sm:$0xff]
  %v129 = vld [vmem:[%s2 + $0x228] sm:$0xff]
  %v130 = vld [vmem:[%s2 + $0x230] sm:$0xff]
  %v131 = vld [vmem:[%s2 + $0x238] sm:$0xff]
  %v132 = vld [vmem:[%s2 + $0x240] sm:$0xff]
  %v133 = vld [vmem:[%s2 + $0x248] sm:$0xff]
  %v134 = vld [vmem:[%s2 + $0x250] sm:$0xff]
  %v135 = vld [vmem:[%s2 + $0x258] sm:$0xff]
  %v136 = vld [vmem:[%s2 + $0x260] sm:$0xff]
  %v137 = vld [vmem:[%s2 + $0x268] sm:$0xff]
  %v138 = vld [vmem:[%s2 + $0x270] sm:$0xff]
  %v139 = vld [vmem:[%s2 + $0x278] sm:$0xff]
  %v140 = vld [vmem:[%s2 + $0x280] sm:$0xff]
  %v141 = vld [vmem:[%s2 + $0x288] sm:$0xff]
  %v142 = vld [vmem:[%s2 + $0x290] sm:$0xff]
  %v143 = vld [vmem:[%s2 + $0x298] sm:$0xff]
  %v144 = vld [vmem:[%s2 + $0x2a0] sm:$0xff]
  %v145 = vld [vmem:[%s2 + $0x2a8] sm:$0xff]
  %v146 = vld [vmem:[%s2 + $0x2b0] sm:$0xff]
  %v147 = vld [vmem:[%s2 + $0x2b8] sm:$0xff]
  %v148 = vld [vmem:[%s2 + $0x2c0] sm:$0xff]
  %v149 = vld [vmem:[%s2 + $0x2c8] sm:$0xff]
  %v150 = vld [vmem:[%s2 + $0x2d0] sm:$0xff]
  %v151 = vld [vmem:[%s2 + $0x2d8] sm:$0xff]
  %v152 = vld [vmem:[%s2 + $0x2e0] sm:$0xff]
  %v153 = vld [vmem:[%s2 + $0x2e8] sm:$0xff]
  %v154 = vld [vmem:[%s2 + $0x2f0] sm:$0xff]
  %v155 = vld [vmem:[%s2 + $0x2f8] sm:$0xff]
  %v156 = vld [vmem:[%s2 + $0x300] sm:$0xff]
  %v157 = vld [vmem:[%s2 + $0x308] sm:$0xff]
  %v158 = vld [vmem:[%s2 + $0x310] sm:$0xff]
  %v159 = vld [vmem:[%s2 + $0x318] sm:$0xff]
  %v160 = vld [vmem:[%s2 + $0x320] sm:$0xff]
  %v161 = vld [vmem:[%s2 + $0x328] sm:$0xff]
  %v162 = vld [vmem:[%s2 + $0x330] sm:$0xff]
  %v163 = vld [vmem:[%s2 + $0x338] sm:$0xff]
  %v164 = vld [vmem:[%s2 + $0x340] sm:$0xff]
  %v165 = vld [vmem:[%s2 + $0x348] sm:$0xff]
  %v166 = vld [vmem:[%s2 + $0x350] sm:$0xff]
  %v167 = vld [vmem:[%s2 + $0x358] sm:$0xff]
  %v168 = vld [vmem:[%s2 + $0x360] sm:$0xff]
  %v169 = vld [vmem:[%s2 + $0x368] sm:$0xff]
  %v170 = vld [vmem:[%s2 + $0x370] sm:$0xff]
  %v171 = vld [vmem:[%s2 + $0x378] sm:$0xff]
  %v172 = vld [vmem:[%s2 + $0x380] sm:$0xff]
  %v173 = vld [vmem:[%s2 + $0x388] sm:$0xff]
  %v174 = vld [vmem:[%s2 + $0x390] sm:$0xff]
  %v175 = vld [vmem:[%s2 + $0x398] sm:$0xff]
  %v176 = vld [vmem:[%s2 + $0x3a0] sm:$0xff]
  %v177 = vld [vmem:[%s2 + $0x3a8] sm:$0xff]
  %v178 = vld [vmem:[%s2 + $0x3b0] sm:$0xff]
  %v179 = vld [vmem:[%s2 + $0x3b8] sm:$0xff]
  %v180 = vld [vmem:[%s2 + $0x3c0] sm:$0xff]
  %v181 = vld [vmem:[%s2 + $0x3c8] sm:$0xff]
  %v182 = vld [vmem:[%s2 + $0x3d0] sm:$0xff]
  %v183 = vld [vmem:[%s2 + $0x3d8] sm:$0xff]
  %v184 = vld [vmem:[%s2 + $0x3e0] sm:$0xff]
  %v185 = vld [vmem:[%s2 + $0x3e8] sm:$0xff]
  %v186 = vld [vmem:[%s2 + $0x3f0] sm:$0xff]
  %v187 = vld [vmem:[%s2 + $0x3f8] sm:$0xff]
  %v188 = vld [vmem:[%s2 + $0x400] sm:$0xff]
  %v189 = vld [vmem:[%s2 + $0x408] sm:$0xff]
  %v190 = vld [vmem:[%s2 + $0x410] sm:$0xff]
  %v191 = vld [vmem:[%s2 + $0x418] sm:$0xff]
  %v192 = vld [vmem:[%s2 + $0x420] sm:$0xff]
  %v193 = vld [vmem:[%s2 + $0x428] sm:$0xff]
  %v194 = vld [vmem:[%s2 + $0x430] sm:$0xff]
  %v195 = vld [vmem:[%s2 + $0x438] sm:$0xff]
  %v196 = vld [vmem:[%s2 + $0x440] sm:$0xff]
  %v197 = vld [vmem:[%s2 + $0x448] sm:$0xff]
  %v198 = vld [vmem:[%s2 + $0x450] sm:$0xff]
  %v199 = vld [vmem:[%s2 + $0x458] sm:$0xff]
  %v200 = vld [vmem:[%s2 + $0x460] sm:$0xff]
  %v201 = vld [vmem:[%s2 + $0x468] sm:$0xff]
  %v202 = vld [vmem:[%s2 + $0x470] sm:$0xff]
  %v203 = vld [vmem:[%s2 + $0x478] sm:$0xff]
  %v204 = vld [vmem:[%s2 + $0x480] sm:$0xff]
  %v205 = vld [vmem:[%s2 + $0x488] sm:$0xff]
  %v206 = vld [vmem:[%s2 + $0x490] sm:$0xff]
  %v207 = vld [vmem:[%s2 + $0x498] sm:$0xff]
  %v208 = vld [vmem:[%s2 + $0x4a0] sm:$0xff]
  %v209 = vld [vmem:[%s2 + $0x4a8] sm:$0xff]
  %v210 = vld [vmem:[%s2 + $0x4b0] sm:$0xff]
  %v211 = vld [vmem:[%s2 + $0x4b8] sm:$0xff]
  %v212 = vld [vmem:[%s2 + $0x4c0] sm:$0xff]
  %v213 = vld [vmem:[%s2 + $0x4c8] sm:$0xff]
  %v214 = vld [vmem:[%s2 + $0x4d0] sm:$0xff]
  %v215 = vld [vmem:[%s2 + $0x4d8] sm:$0xff]
  %v216 = vld [vmem:[%s2 + $0x4e0] sm:$0xff]
  %v217 = vld [vmem:[%s2 + $0x4e8] sm:$0xff]
  %v218 = vld [vmem:[%s2 + $0x4f0] sm:$0xff]
  %v219 = vld [vmem:[%s2 + $0x4f8] sm:$0xff]
  %v220 = vld [vmem:[%s2 + $0x500] sm:$0xff]
  %v221 = vld [vmem:[%s2 + $0x508] sm:$0xff]
  %v222 = vld [vmem:[%s2 + $0x510] sm:$0xff]
  %v223 = vld [vmem:[%s2 + $0x518] sm:$0xff]
  %v224 = vld [vmem:[%s2 + $0x520] sm:$0xff]
  %v225 = vld [vmem:[%s2 + $0x528] sm:$0xff]
  %v226 = vld [vmem:[%s2 + $0x530] sm:$0xff]
  %v227 = vld [vmem:[%s2 + $0x538] sm:$0xff]
  %v228 = vld [vmem:[%s2 + $0x540] sm:$0xff]
  %v229 = vld [vmem:[%s2 + $0x548] sm:$0xff]
  %v230 = vld [vmem:[%s2 + $0x550] sm:$0xff]
  %v231 = vld [vmem:[%s2 + $0x558] sm:$0xff]
  %v232 = vld [vmem:[%s2 + $0x560] sm:$0xff]
  %v233 = vld [vmem:[%s2 + $0x568] sm:$0xff]
  %v234 = vld [vmem:[%s2 + $0x570] sm:$0xff]
  %v235 = vld [vmem:[%s2 + $0x578] sm:$0xff]
  %v236 = vld [vmem:[%s2 + $0x580] sm:$0xff]
  %v237 = vld [vmem:[%s2 + $0x588] sm:$0xff]
  %v238 = vld [vmem:[%s2 + $0x590] sm:$0xff]
  %v239 = vld [vmem:[%s2 + $0x598] sm:$0xff]
  %v240 = vld [vmem:[%s2 + $0x5a0] sm:$0xff]
  %v241 = vld [vmem:[%s2 + $0x5a8] sm:$0xff]
  %v242 = vld [vmem:[%s2 + $0x5b0] sm:$0xff]
  %v243 = vld [vmem:[%s2 + $0x5b8] sm:$0xff]
  %v244 = vld [vmem:[%s2 + $0x5c0] sm:$0xff]
  %v245 = vld [vmem:[%s2 + $0x5c8] sm:$0xff]
  %v246 = vld [vmem:[%s2 + $0x5d0] sm:$0xff]
  %v247 = vld [vmem:[%s2 + $0x5d8] sm:$0xff]
  %v248 = vld [vmem:[%s2 + $0x5e0] sm:$0xff]
  %v249 = vld [vmem:[%s2 + $0x5e8] sm:$0xff]
  %v250 = vld [vmem:[%s2 + $0x5f0] sm:$0xff]
  %v251 = vld [vmem:[%s2 + $0x5f8] sm:$0xff]
  %v252 = vld [vmem:[%s2 + $0x600] sm:$0xff]
  %v253 = vld [vmem:[%s2 + $0x608] sm:$0xff]
  %v254 = vld [vmem:[%s2 + $0x610] sm:$0xff]
  %v255 = vld [vmem:[%s2 + $0x618] sm:$0xff]
  %v256 = vld [vmem:[%s3] sm:$0xf]
  %v258 = vlaneseq
  %v259 = vshrl.u32 %v258, 7
  %v260 = vsub.s32 0, %v259
  %v261 = vrot.slane %v256, %v260
  %v262 = vlaneseq
  %v263 = vshrl.u32 %v262, 7
  %v264 = vsub.s32 1, %v263
  %v265 = vrot.slane %v256, %v264
  %v266 = vlaneseq
  %v267 = vshrl.u32 %v266, 7
  %v268 = vsub.s32 2, %v267
  %v269 = vrot.slane %v256, %v268
  %v270 = vlaneseq
  %v271 = vshrl.u32 %v270, 7
  %v272 = vsub.s32 3, %v271
  %v273 = vrot.slane %v256, %v272
  %v474 = vunpack.c.l.b16 %v60
  %v475 = vunpack.c.h.b16 %v60
  %v476 = vunpack.c.l.b16 %v61
  %v477 = vunpack.c.h.b16 %v61
  %v478 = vunpack.c.l.b16 %v62
  %v479 = vunpack.c.h.b16 %v62
  %v480 = vunpack.c.l.b16 %v63
  %v481 = vunpack.c.h.b16 %v63
  %v482 = vunpack.c.l.b16 %v64
  %v483 = vunpack.c.h.b16 %v64
  %v484 = vunpack.c.l.b16 %v65
  %v485 = vunpack.c.h.b16 %v65
  %v486 = vunpack.c.l.b16 %v66
  %v487 = vunpack.c.h.b16 %v66
  %v488 = vunpack.c.l.b16 %v67
  %v489 = vunpack.c.h.b16 %v67
  %v490 = vunpack.c.l.b16 %v68
  %v491 = vunpack.c.h.b16 %v68
  %v492 = vunpack.c.l.b16 %v69
  %v493 = vunpack.c.h.b16 %v69
  %v494 = vunpack.c.l.b16 %v70
  %v495 = vunpack.c.h.b16 %v70
  %v496 = vunpack.c.l.b16 %v71
  %v497 = vunpack.c.h.b16 %v71
  %v498 = vunpack.c.l.b16 %v72
  %v499 = vunpack.c.h.b16 %v72
  %v500 = vunpack.c.l.b16 %v73
  %v501 = vunpack.c.h.b16 %v73
  %v502 = vunpack.c.l.b16 %v74
  %v503 = vunpack.c.h.b16 %v74
  %v504 = vunpack.c.l.b16 %v75
  %v505 = vunpack.c.h.b16 %v75
  %v506 = vunpack.c.l.b16 %v76
  %v507 = vunpack.c.h.b16 %v76
  %v508 = vunpack.c.l.b16 %v77
  %v509 = vunpack.c.h.b16 %v77
  %v510 = vunpack.c.l.b16 %v78
  %v511 = vunpack.c.h.b16 %v78
  %v512 = vunpack.c.l.b16 %v79
  %v513 = vunpack.c.h.b16 %v79
  %v514 = vunpack.c.l.b16 %v80
  %v515 = vunpack.c.h.b16 %v80
  %v516 = vunpack.c.l.b16 %v81
  %v517 = vunpack.c.h.b16 %v81
  %v518 = vunpack.c.l.b16 %v82
  %v519 = vunpack.c.h.b16 %v82
  %v520 = vunpack.c.l.b16 %v83
  %v521 = vunpack.c.h.b16 %v83
  %v522 = vunpack.c.l.b16 %v84
  %v523 = vunpack.c.h.b16 %v84
  %v524 = vunpack.c.l.b16 %v85
  %v525 = vunpack.c.h.b16 %v85
  %v526 = vunpack.c.l.b16 %v86
  %v527 = vunpack.c.h.b16 %v86
  %v528 = vunpack.c.l.b16 %v87
  %v529 = vunpack.c.h.b16 %v87
  %v530 = vunpack.c.l.b16 %v88
  %v531 = vunpack.c.h.b16 %v88
  %v532 = vunpack.c.l.b16 %v89
  %v533 = vunpack.c.h.b16 %v89
  %v534 = vunpack.c.l.b16 %v90
  %v535 = vunpack.c.h.b16 %v90
  %v536 = vunpack.c.l.b16 %v91
  %v537 = vunpack.c.h.b16 %v91
  %v538 = vunpack.c.l.b16 %v92
  %v539 = vunpack.c.h.b16 %v92
  %v540 = vunpack.c.l.b16 %v93
  %v541 = vunpack.c.h.b16 %v93
  %v542 = vunpack.c.l.b16 %v94
  %v543 = vunpack.c.h.b16 %v94
  %v544 = vunpack.c.l.b16 %v95
  %v545 = vunpack.c.h.b16 %v95
  %v546 = vunpack.c.l.b16 %v96
  %v547 = vunpack.c.h.b16 %v96
  %v548 = vunpack.c.l.b16 %v97
  %v549 = vunpack.c.h.b16 %v97
  %v550 = vunpack.c.l.b16 %v98
  %v551 = vunpack.c.h.b16 %v98
  %v552 = vunpack.c.l.b16 %v99
  %v553 = vunpack.c.h.b16 %v99
  %v554 = vunpack.c.l.b16 %v100
  %v555 = vunpack.c.h.b16 %v100
  %v556 = vunpack.c.l.b16 %v101
  %v557 = vunpack.c.h.b16 %v101
  %v558 = vunpack.c.l.b16 %v102
  %v559 = vunpack.c.h.b16 %v102
  %v560 = vunpack.c.l.b16 %v103
  %v561 = vunpack.c.h.b16 %v103
  %v562 = vunpack.c.l.b16 %v104
  %v563 = vunpack.c.h.b16 %v104
  %v564 = vunpack.c.l.b16 %v105
  %v565 = vunpack.c.h.b16 %v105
  %v566 = vunpack.c.l.b16 %v106
  %v567 = vunpack.c.h.b16 %v106
  %v568 = vunpack.c.l.b16 %v107
  %v569 = vunpack.c.h.b16 %v107
  %v570 = vunpack.c.l.b16 %v108
  %v571 = vunpack.c.h.b16 %v108
  %v572 = vunpack.c.l.b16 %v109
  %v573 = vunpack.c.h.b16 %v109
  %v574 = vunpack.c.l.b16 %v110
  %v575 = vunpack.c.h.b16 %v110
  %v576 = vunpack.c.l.b16 %v111
  %v577 = vunpack.c.h.b16 %v111
  %v578 = vunpack.c.l.b16 %v112
  %v579 = vunpack.c.h.b16 %v112
  %v580 = vunpack.c.l.b16 %v113
  %v581 = vunpack.c.h.b16 %v113
  %v582 = vunpack.c.l.b16 %v114
  %v583 = vunpack.c.h.b16 %v114
  %v584 = vunpack.c.l.b16 %v115
  %v585 = vunpack.c.h.b16 %v115
  %v586 = vunpack.c.l.b16 %v116
  %v587 = vunpack.c.h.b16 %v116
  %v588 = vunpack.c.l.b16 %v117
  %v589 = vunpack.c.h.b16 %v117
  %v590 = vunpack.c.l.b16 %v118
  %v591 = vunpack.c.h.b16 %v118
  %v592 = vunpack.c.l.b16 %v119
  %v593 = vunpack.c.h.b16 %v119
  %v594 = vunpack.c.l.b16 %v120
  %v595 = vunpack.c.h.b16 %v120
  %v596 = vunpack.c.l.b16 %v121
  %v597 = vunpack.c.h.b16 %v121
  %v598 = vunpack.c.l.b16 %v122
  %v599 = vunpack.c.h.b16 %v122
  %v600 = vunpack.c.l.b16 %v123
  %v601 = vunpack.c.h.b16 %v123
  %v602 = vunpack.c.l.b16 %v124
  %v603 = vunpack.c.h.b16 %v124
  %v604 = vunpack.c.l.b16 %v125
  %v605 = vunpack.c.h.b16 %v125
  %v606 = vunpack.c.l.b16 %v126
  %v607 = vunpack.c.h.b16 %v126
  %v608 = vunpack.c.l.b16 %v127
  %v609 = vunpack.c.h.b16 %v127
  %v610 = vunpack.c.l.b16 %v128
  %v611 = vunpack.c.h.b16 %v128
  %v612 = vunpack.c.l.b16 %v129
  %v613 = vunpack.c.h.b16 %v129
  %v614 = vunpack.c.l.b16 %v130
  %v615 = vunpack.c.h.b16 %v130
  %v616 = vunpack.c.l.b16 %v131
  %v617 = vunpack.c.h.b16 %v131
  %v618 = vunpack.c.l.b16 %v132
  %v619 = vunpack.c.h.b16 %v132
  %v620 = vunpack.c.l.b16 %v133
  %v621 = vunpack.c.h.b16 %v133
  %v622 = vunpack.c.l.b16 %v134
  %v623 = vunpack.c.h.b16 %v134
  %v624 = vunpack.c.l.b16 %v135
  %v625 = vunpack.c.h.b16 %v135
  %v626 = vunpack.c.l.b16 %v136
  %v627 = vunpack.c.h.b16 %v136
  %v628 = vunpack.c.l.b16 %v137
  %v629 = vunpack.c.h.b16 %v137
  %v630 = vunpack.c.l.b16 %v138
  %v631 = vunpack.c.h.b16 %v138
  %v632 = vunpack.c.l.b16 %v139
  %v633 = vunpack.c.h.b16 %v139
  %v634 = vunpack.c.l.b16 %v140
  %v635 = vunpack.c.h.b16 %v140
  %v636 = vunpack.c.l.b16 %v141
  %v637 = vunpack.c.h.b16 %v141
  %v638 = vunpack.c.l.b16 %v142
  %v639 = vunpack.c.h.b16 %v142
  %v640 = vunpack.c.l.b16 %v143
  %v641 = vunpack.c.h.b16 %v143
  %v642 = vunpack.c.l.b16 %v144
  %v643 = vunpack.c.h.b16 %v144
  %v644 = vunpack.c.l.b16 %v145
  %v645 = vunpack.c.h.b16 %v145
  %v646 = vunpack.c.l.b16 %v146
  %v647 = vunpack.c.h.b16 %v146
  %v648 = vunpack.c.l.b16 %v147
  %v649 = vunpack.c.h.b16 %v147
  %v650 = vunpack.c.l.b16 %v148
  %v651 = vunpack.c.h.b16 %v148
  %v652 = vunpack.c.l.b16 %v149
  %v653 = vunpack.c.h.b16 %v149
  %v654 = vunpack.c.l.b16 %v150
  %v655 = vunpack.c.h.b16 %v150
  %v656 = vunpack.c.l.b16 %v151
  %v657 = vunpack.c.h.b16 %v151
  %v658 = vunpack.c.l.b16 %v152
  %v659 = vunpack.c.h.b16 %v152
  %v660 = vunpack.c.l.b16 %v153
  %v661 = vunpack.c.h.b16 %v153
  %v662 = vunpack.c.l.b16 %v154
  %v663 = vunpack.c.h.b16 %v154
  %v664 = vunpack.c.l.b16 %v155
  %v665 = vunpack.c.h.b16 %v155
  %v666 = vunpack.c.l.b16 %v156
  %v667 = vunpack.c.h.b16 %v156
  %v668 = vunpack.c.l.b16 %v157
  %v669 = vunpack.c.h.b16 %v157
  %v670 = vunpack.c.l.b16 %v158
  %v671 = vunpack.c.h.b16 %v158
  %v672 = vunpack.c.l.b16 %v159
  %v673 = vunpack.c.h.b16 %v159
  %v674 = vunpack.c.l.b16 %v160
  %v675 = vunpack.c.h.b16 %v160
  %v676 = vunpack.c.l.b16 %v161
  %v677 = vunpack.c.h.b16 %v161
  %v678 = vunpack.c.l.b16 %v162
  %v679 = vunpack.c.h.b16 %v162
  %v680 = vunpack.c.l.b16 %v163
  %v681 = vunpack.c.h.b16 %v163
  %v682 = vunpack.c.l.b16 %v164
  %v683 = vunpack.c.h.b16 %v164
  %v684 = vunpack.c.l.b16 %v165
  %v685 = vunpack.c.h.b16 %v165
  %v686 = vunpack.c.l.b16 %v166
  %v687 = vunpack.c.h.b16 %v166
  %v688 = vunpack.c.l.b16 %v167
  %v689 = vunpack.c.h.b16 %v167
  %v690 = vunpack.c.l.b16 %v168
  %v691 = vunpack.c.h.b16 %v168
  %v692 = vunpack.c.l.b16 %v169
  %v693 = vunpack.c.h.b16 %v169
  %v694 = vunpack.c.l.b16 %v170
  %v695 = vunpack.c.h.b16 %v170
  %v696 = vunpack.c.l.b16 %v171
  %v697 = vunpack.c.h.b16 %v171
  %v698 = vunpack.c.l.b16 %v172
  %v699 = vunpack.c.h.b16 %v172
  %v700 = vunpack.c.l.b16 %v173
  %v701 = vunpack.c.h.b16 %v173
  %v702 = vunpack.c.l.b16 %v174
  %v703 = vunpack.c.h.b16 %v174
  %v704 = vunpack.c.l.b16 %v175
  %v705 = vunpack.c.h.b16 %v175
  %v706 = vunpack.c.l.b16 %v176
  %v707 = vunpack.c.h.b16 %v176
  %v708 = vunpack.c.l.b16 %v177
  %v709 = vunpack.c.h.b16 %v177
  %v710 = vunpack.c.l.b16 %v178
  %v711 = vunpack.c.h.b16 %v178
  %v712 = vunpack.c.l.b16 %v179
  %v713 = vunpack.c.h.b16 %v179
  %v714 = vunpack.c.l.b16 %v180
  %v715 = vunpack.c.h.b16 %v180
  %v716 = vunpack.c.l.b16 %v181
  %v717 = vunpack.c.h.b16 %v181
  %v718 = vunpack.c.l.b16 %v182
  %v719 = vunpack.c.h.b16 %v182
  %v720 = vunpack.c.l.b16 %v183
  %v721 = vunpack.c.h.b16 %v183
  %v722 = vunpack.c.l.b16 %v184
  %v723 = vunpack.c.h.b16 %v184
  %v724 = vunpack.c.l.b16 %v185
  %v725 = vunpack.c.h.b16 %v185
  %v726 = vunpack.c.l.b16 %v186
  %v727 = vunpack.c.h.b16 %v186
  %v728 = vunpack.c.l.b16 %v187
  %v729 = vunpack.c.h.b16 %v187
  %v730 = vunpack.c.l.b16 %v188
  %v731 = vunpack.c.h.b16 %v188
  %v732 = vunpack.c.l.b16 %v189
  %v733 = vunpack.c.h.b16 %v189
  %v734 = vunpack.c.l.b16 %v190
  %v735 = vunpack.c.h.b16 %v190
  %v736 = vunpack.c.l.b16 %v191
  %v737 = vunpack.c.h.b16 %v191
  %v738 = vunpack.c.l.b16 %v192
  %v739 = vunpack.c.h.b16 %v192
  %v740 = vunpack.c.l.b16 %v193
  %v741 = vunpack.c.h.b16 %v193
  %v742 = vunpack.c.l.b16 %v194
  %v743 = vunpack.c.h.b16 %v194
  %v744 = vunpack.c.l.b16 %v195
  %v745 = vunpack.c.h.b16 %v195
  %v746 = vunpack.c.l.b16 %v196
  %v747 = vunpack.c.h.b16 %v196
  %v748 = vunpack.c.l.b16 %v197
  %v749 = vunpack.c.h.b16 %v197
  %v750 = vunpack.c.l.b16 %v198
  %v751 = vunpack.c.h.b16 %v198
  %v752 = vunpack.c.l.b16 %v199
  %v753 = vunpack.c.h.b16 %v199
  %v754 = vunpack.c.l.b16 %v200
  %v755 = vunpack.c.h.b16 %v200
  %v756 = vunpack.c.l.b16 %v201
  %v757 = vunpack.c.h.b16 %v201
  %v758 = vunpack.c.l.b16 %v202
  %v759 = vunpack.c.h.b16 %v202
  %v760 = vunpack.c.l.b16 %v203
  %v761 = vunpack.c.h.b16 %v203
  %v762 = vunpack.c.l.b16 %v204
  %v763 = vunpack.c.h.b16 %v204
  %v764 = vunpack.c.l.b16 %v205
  %v765 = vunpack.c.h.b16 %v205
  %v766 = vunpack.c.l.b16 %v206
  %v767 = vunpack.c.h.b16 %v206
  %v768 = vunpack.c.l.b16 %v207
  %v769 = vunpack.c.h.b16 %v207
  %v770 = vunpack.c.l.b16 %v208
  %v771 = vunpack.c.h.b16 %v208
  %v772 = vunpack.c.l.b16 %v209
  %v773 = vunpack.c.h.b16 %v209
  %v774 = vunpack.c.l.b16 %v210
  %v775 = vunpack.c.h.b16 %v210
  %v776 = vunpack.c.l.b16 %v211
  %v777 = vunpack.c.h.b16 %v211
  %v778 = vunpack.c.l.b16 %v212
  %v779 = vunpack.c.h.b16 %v212
  %v780 = vunpack.c.l.b16 %v213
  %v781 = vunpack.c.h.b16 %v213
  %v782 = vunpack.c.l.b16 %v214
  %v783 = vunpack.c.h.b16 %v214
  %v784 = vunpack.c.l.b16 %v215
  %v785 = vunpack.c.h.b16 %v215
  %v786 = vunpack.c.l.b16 %v216
  %v787 = vunpack.c.h.b16 %v216
  %v788 = vunpack.c.l.b16 %v217
  %v789 = vunpack.c.h.b16 %v217
  %v790 = vunpack.c.l.b16 %v218
  %v791 = vunpack.c.h.b16 %v218
  %v792 = vunpack.c.l.b16 %v219
  %v793 = vunpack.c.h.b16 %v219
  %v794 = vunpack.c.l.b16 %v220
  %v795 = vunpack.c.h.b16 %v220
  %v796 = vunpack.c.l.b16 %v221
  %v797 = vunpack.c.h.b16 %v221
  %v798 = vunpack.c.l.b16 %v222
  %v799 = vunpack.c.h.b16 %v222
  %v800 = vunpack.c.l.b16 %v223
  %v801 = vunpack.c.h.b16 %v223
  %v802 = vunpack.c.l.b16 %v224
  %v803 = vunpack.c.h.b16 %v224
  %v804 = vunpack.c.l.b16 %v225
  %v805 = vunpack.c.h.b16 %v225
  %v806 = vunpack.c.l.b16 %v226
  %v807 = vunpack.c.h.b16 %v226
  %v808 = vunpack.c.l.b16 %v227
  %v809 = vunpack.c.h.b16 %v227
  %v810 = vunpack.c.l.b16 %v228
  %v811 = vunpack.c.h.b16 %v228
  %v812 = vunpack.c.l.b16 %v229
  %v813 = vunpack.c.h.b16 %v229
  %v814 = vunpack.c.l.b16 %v230
  %v815 = vunpack.c.h.b16 %v230
  %v816 = vunpack.c.l.b16 %v231
  %v817 = vunpack.c.h.b16 %v231
  %v818 = vunpack.c.l.b16 %v232
  %v819 = vunpack.c.h.b16 %v232
  %v820 = vunpack.c.l.b16 %v233
  %v821 = vunpack.c.h.b16 %v233
  %v822 = vunpack.c.l.b16 %v234
  %v823 = vunpack.c.h.b16 %v234
  %v824 = vunpack.c.l.b16 %v235
  %v825 = vunpack.c.h.b16 %v235
  %v826 = vunpack.c.l.b16 %v236
  %v827 = vunpack.c.h.b16 %v236
  %v828 = vunpack.c.l.b16 %v237
  %v829 = vunpack.c.h.b16 %v237
  %v830 = vunpack.c.l.b16 %v238
  %v831 = vunpack.c.h.b16 %v238
  %v832 = vunpack.c.l.b16 %v239
  %v833 = vunpack.c.h.b16 %v239
  %v834 = vunpack.c.l.b16 %v240
  %v835 = vunpack.c.h.b16 %v240
  %v836 = vunpack.c.l.b16 %v241
  %v837 = vunpack.c.h.b16 %v241
  %v838 = vunpack.c.l.b16 %v242
  %v839 = vunpack.c.h.b16 %v242
  %v840 = vunpack.c.l.b16 %v243
  %v841 = vunpack.c.h.b16 %v243
  %v842 = vunpack.c.l.b16 %v244
  %v843 = vunpack.c.h.b16 %v244
  %v844 = vunpack.c.l.b16 %v245
  %v845 = vunpack.c.h.b16 %v245
  %v846 = vunpack.c.l.b16 %v246
  %v847 = vunpack.c.h.b16 %v246
  %v848 = vunpack.c.l.b16 %v247
  %v849 = vunpack.c.h.b16 %v247
  %v850 = vunpack.c.l.b16 %v248
  %v851 = vunpack.c.h.b16 %v248
  %v852 = vunpack.c.l.b16 %v249
  %v853 = vunpack.c.h.b16 %v249
  %v854 = vunpack.c.l.b16 %v250
  %v855 = vunpack.c.h.b16 %v250
  %v856 = vunpack.c.l.b16 %v251
  %v857 = vunpack.c.h.b16 %v251
  %v858 = vunpack.c.l.b16 %v252
  %v859 = vunpack.c.h.b16 %v252
  %v860 = vunpack.c.l.b16 %v253
  %v861 = vunpack.c.h.b16 %v253
  %v862 = vunpack.c.l.b16 %v254
  %v863 = vunpack.c.h.b16 %v254
  %v864 = vunpack.c.l.b16 %v255
  %v865 = vunpack.c.h.b16 %v255
  %v866 = vpack.c.b16 %v478, %v474
  %v867 = vpack.c.b16 %v479, %v475
  %v868 = vpack.c.b16 %v480, %v476
  %v869 = vpack.c.b16 %v481, %v477
  %v870 = vpack.c.b16 %v486, %v482
  %v871 = vpack.c.b16 %v487, %v483
  %v872 = vpack.c.b16 %v488, %v484
  %v873 = vpack.c.b16 %v489, %v485
  %v874 = vpack.c.b16 %v494, %v490
  %v875 = vpack.c.b16 %v495, %v491
  %v876 = vpack.c.b16 %v496, %v492
  %v877 = vpack.c.b16 %v497, %v493
  %v878 = vpack.c.b16 %v502, %v498
  %v879 = vpack.c.b16 %v503, %v499
  %v880 = vpack.c.b16 %v504, %v500
  %v881 = vpack.c.b16 %v505, %v501
  %v882 = vpack.c.b16 %v510, %v506
  %v883 = vpack.c.b16 %v511, %v507
  %v884 = vpack.c.b16 %v512, %v508
  %v885 = vpack.c.b16 %v513, %v509
  %v886 = vpack.c.b16 %v518, %v514
  %v887 = vpack.c.b16 %v519, %v515
  %v888 = vpack.c.b16 %v520, %v516
  %v889 = vpack.c.b16 %v521, %v517
  %v890 = vpack.c.b16 %v526, %v522
  %v891 = vpack.c.b16 %v527, %v523
  %v892 = vpack.c.b16 %v528, %v524
  %v893 = vpack.c.b16 %v529, %v525
  %v894 = vpack.c.b16 %v534, %v530
  %v895 = vpack.c.b16 %v535, %v531
  %v896 = vpack.c.b16 %v536, %v532
  %v897 = vpack.c.b16 %v537, %v533
  %v898 = vpack.c.b16 %v542, %v538
  %v899 = vpack.c.b16 %v543, %v539
  %v900 = vpack.c.b16 %v544, %v540
  %v901 = vpack.c.b16 %v545, %v541
  %v902 = vpack.c.b16 %v550, %v546
  %v903 = vpack.c.b16 %v551, %v547
  %v904 = vpack.c.b16 %v552, %v548
  %v905 = vpack.c.b16 %v553, %v549
  %v906 = vpack.c.b16 %v558, %v554
  %v907 = vpack.c.b16 %v559, %v555
  %v908 = vpack.c.b16 %v560, %v556
  %v909 = vpack.c.b16 %v561, %v557
  %v910 = vpack.c.b16 %v566, %v562
  %v911 = vpack.c.b16 %v567, %v563
  %v912 = vpack.c.b16 %v568, %v564
  %v913 = vpack.c.b16 %v569, %v565
  %v914 = vpack.c.b16 %v574, %v570
  %v915 = vpack.c.b16 %v575, %v571
  %v916 = vpack.c.b16 %v576, %v572
  %v917 = vpack.c.b16 %v577, %v573
  %v918 = vpack.c.b16 %v582, %v578
  %v919 = vpack.c.b16 %v583, %v579
  %v920 = vpack.c.b16 %v584, %v580
  %v921 = vpack.c.b16 %v585, %v581
  %v922 = vpack.c.b16 %v590, %v586
  %v923 = vpack.c.b16 %v591, %v587
  %v924 = vpack.c.b16 %v592, %v588
  %v925 = vpack.c.b16 %v593, %v589
  %v926 = vpack.c.b16 %v598, %v594
  %v927 = vpack.c.b16 %v599, %v595
  %v928 = vpack.c.b16 %v600, %v596
  %v929 = vpack.c.b16 %v601, %v597
  %v930 = vpack.c.b16 %v606, %v602
  %v931 = vpack.c.b16 %v607, %v603
  %v932 = vpack.c.b16 %v608, %v604
  %v933 = vpack.c.b16 %v609, %v605
  %v934 = vpack.c.b16 %v614, %v610
  %v935 = vpack.c.b16 %v615, %v611
  %v936 = vpack.c.b16 %v616, %v612
  %v937 = vpack.c.b16 %v617, %v613
  %v938 = vpack.c.b16 %v622, %v618
  %v939 = vpack.c.b16 %v623, %v619
  %v940 = vpack.c.b16 %v624, %v620
  %v941 = vpack.c.b16 %v625, %v621
  %v942 = vpack.c.b16 %v630, %v626
  %v943 = vpack.c.b16 %v631, %v627
  %v944 = vpack.c.b16 %v632, %v628
  %v945 = vpack.c.b16 %v633, %v629
  %v946 = vpack.c.b16 %v638, %v634
  %v947 = vpack.c.b16 %v639, %v635
  %v948 = vpack.c.b16 %v640, %v636
  %v949 = vpack.c.b16 %v641, %v637
  %v950 = vpack.c.b16 %v646, %v642
  %v951 = vpack.c.b16 %v647, %v643
  %v952 = vpack.c.b16 %v648, %v644
  %v953 = vpack.c.b16 %v649, %v645
  %v954 = vpack.c.b16 %v654, %v650
  %v955 = vpack.c.b16 %v655, %v651
  %v956 = vpack.c.b16 %v656, %v652
  %v957 = vpack.c.b16 %v657, %v653
  %v958 = vpack.c.b16 %v662, %v658
  %v959 = vpack.c.b16 %v663, %v659
  %v960 = vpack.c.b16 %v664, %v660
  %v961 = vpack.c.b16 %v665, %v661
  %v962 = vpack.c.b16 %v670, %v666
  %v963 = vpack.c.b16 %v671, %v667
  %v964 = vpack.c.b16 %v672, %v668
  %v965 = vpack.c.b16 %v673, %v669
  %v966 = vpack.c.b16 %v678, %v674
  %v967 = vpack.c.b16 %v679, %v675
  %v968 = vpack.c.b16 %v680, %v676
  %v969 = vpack.c.b16 %v681, %v677
  %v970 = vpack.c.b16 %v686, %v682
  %v971 = vpack.c.b16 %v687, %v683
  %v972 = vpack.c.b16 %v688, %v684
  %v973 = vpack.c.b16 %v689, %v685
  %v974 = vpack.c.b16 %v694, %v690
  %v975 = vpack.c.b16 %v695, %v691
  %v976 = vpack.c.b16 %v696, %v692
  %v977 = vpack.c.b16 %v697, %v693
  %v978 = vpack.c.b16 %v702, %v698
  %v979 = vpack.c.b16 %v703, %v699
  %v980 = vpack.c.b16 %v704, %v700
  %v981 = vpack.c.b16 %v705, %v701
  %v982 = vpack.c.b16 %v710, %v706
  %v983 = vpack.c.b16 %v711, %v707
  %v984 = vpack.c.b16 %v712, %v708
  %v985 = vpack.c.b16 %v713, %v709
  %v986 = vpack.c.b16 %v718, %v714
  %v987 = vpack.c.b16 %v719, %v715
  %v988 = vpack.c.b16 %v720, %v716
  %v989 = vpack.c.b16 %v721, %v717
  %v990 = vpack.c.b16 %v726, %v722
  %v991 = vpack.c.b16 %v727, %v723
  %v992 = vpack.c.b16 %v728, %v724
  %v993 = vpack.c.b16 %v729, %v725
  %v994 = vpack.c.b16 %v734, %v730
  %v995 = vpack.c.b16 %v735, %v731
  %v996 = vpack.c.b16 %v736, %v732
  %v997 = vpack.c.b16 %v737, %v733
  %v998 = vpack.c.b16 %v742, %v738
  %v999 = vpack.c.b16 %v743, %v739
  %v1000 = vpack.c.b16 %v744, %v740
  %v1001 = vpack.c.b16 %v745, %v741
  %v1002 = vpack.c.b16 %v750, %v746
  %v1003 = vpack.c.b16 %v751, %v747
  %v1004 = vpack.c.b16 %v752, %v748
  %v1005 = vpack.c.b16 %v753, %v749
  %v1006 = vpack.c.b16 %v758, %v754
  %v1007 = vpack.c.b16 %v759, %v755
  %v1008 = vpack.c.b16 %v760, %v756
  %v1009 = vpack.c.b16 %v761, %v757
  %v1010 = vpack.c.b16 %v766, %v762
  %v1011 = vpack.c.b16 %v767, %v763
  %v1012 = vpack.c.b16 %v768, %v764
  %v1013 = vpack.c.b16 %v769, %v765
  %v1014 = vpack.c.b16 %v774, %v770
  %v1015 = vpack.c.b16 %v775, %v771
  %v1016 = vpack.c.b16 %v776, %v772
  %v1017 = vpack.c.b16 %v777, %v773
  %v1018 = vpack.c.b16 %v782, %v778
  %v1019 = vpack.c.b16 %v783, %v779
  %v1020 = vpack.c.b16 %v784, %v780
  %v1021 = vpack.c.b16 %v785, %v781
  %v1022 = vpack.c.b16 %v790, %v786
  %v1023 = vpack.c.b16 %v791, %v787
  %v1024 = vpack.c.b16 %v792, %v788
  %v1025 = vpack.c.b16 %v793, %v789
  %v1026 = vpack.c.b16 %v798, %v794
  %v1027 = vpack.c.b16 %v799, %v795
  %v1028 = vpack.c.b16 %v800, %v796
  %v1029 = vpack.c.b16 %v801, %v797
  %v1030 = vpack.c.b16 %v806, %v802
  %v1031 = vpack.c.b16 %v807, %v803
  %v1032 = vpack.c.b16 %v808, %v804
  %v1033 = vpack.c.b16 %v809, %v805
  %v1034 = vpack.c.b16 %v814, %v810
  %v1035 = vpack.c.b16 %v815, %v811
  %v1036 = vpack.c.b16 %v816, %v812
  %v1037 = vpack.c.b16 %v817, %v813
  %v1038 = vpack.c.b16 %v822, %v818
  %v1039 = vpack.c.b16 %v823, %v819
  %v1040 = vpack.c.b16 %v824, %v820
  %v1041 = vpack.c.b16 %v825, %v821
  %v1042 = vpack.c.b16 %v830, %v826
  %v1043 = vpack.c.b16 %v831, %v827
  %v1044 = vpack.c.b16 %v832, %v828
  %v1045 = vpack.c.b16 %v833, %v829
  %v1046 = vpack.c.b16 %v838, %v834
  %v1047 = vpack.c.b16 %v839, %v835
  %v1048 = vpack.c.b16 %v840, %v836
  %v1049 = vpack.c.b16 %v841, %v837
  %v1050 = vpack.c.b16 %v846, %v842
  %v1051 = vpack.c.b16 %v847, %v843
  %v1052 = vpack.c.b16 %v848, %v844
  %v1053 = vpack.c.b16 %v849, %v845
  %v1054 = vpack.c.b16 %v854, %v850
  %v1055 = vpack.c.b16 %v855, %v851
  %v1056 = vpack.c.b16 %v856, %v852
  %v1057 = vpack.c.b16 %v857, %v853
  %v1058 = vpack.c.b16 %v862, %v858
  %v1059 = vpack.c.b16 %v863, %v859
  %v1060 = vpack.c.b16 %v864, %v860
  %v1061 = vpack.c.b16 %v865, %v861
  %vm1258 = vcmask 130048
  %v1260 = vsel %vm1258, %v59, 0
  %1262 = vmatprep.subr.bf16.mxu0 %v895
  %1263 = vmatpush1.bf16.msra.mxu0 %v894
  %1264 = vmatprep.subr.bf16.mxu0 %v891
  %1265 = vmatpush1.bf16.msra.mxu0 %v890
  %1266 = vmatprep.subr.bf16.mxu0 %v887
  %1267 = vmatpush1.bf16.msra.mxu0 %v886
  %1268 = vmatprep.subr.bf16.mxu0 %v883
  %1269 = vmatpush1.bf16.msra.mxu0 %v882
  %1270 = vmatprep.subr.bf16.mxu0 %v879
  %1271 = vmatpush1.bf16.msra.mxu0 %v878
  %1272 = vmatprep.subr.bf16.mxu0 %v875
  %1273 = vmatpush1.bf16.msra.mxu0 %v874
  %1274 = vmatprep.subr.bf16.mxu0 %v871
  %1275 = vmatpush1.bf16.msra.mxu0 %v870
  %1276 = vmatprep.subr.bf16.mxu0 %v867
  %1277 = vmatpush1.bf16.msra.mxu0 %v866
  %1278 = vmatprep.subr.bf16.mxu0 %v927
  %1279 = vmatpush2.bf16.msra.mxu0 %v926
  %1280 = vmatprep.subr.bf16.mxu0 %v923
  %1281 = vmatpush2.bf16.msra.mxu0 %v922
  %1282 = vmatprep.subr.bf16.mxu0 %v919
  %1283 = vmatpush2.bf16.msra.mxu0 %v918
  %1284 = vmatprep.subr.bf16.mxu0 %v915
  %1285 = vmatpush2.bf16.msra.mxu0 %v914
  %1286 = vmatprep.subr.bf16.mxu0 %v911
  %1287 = vmatpush2.bf16.msra.mxu0 %v910
  %1288 = vmatprep.subr.bf16.mxu0 %v907
  %1289 = vmatpush2.bf16.msra.mxu0 %v906
  %1290 = vmatprep.subr.bf16.mxu0 %v903
  %1291 = vmatpush2.bf16.msra.mxu0 %v902
  %1292 = vmatprep.subr.bf16.mxu0 %v899
  %1293 = vmatpush2.bf16.msra.mxu0 %v898
  %1294 = vmatprep.mubr.bf16.mxu0 %v54
  %1295 = vmatmul.mubr.bf16.gmra.mxu0 %v53
  %v1296 = vpop.f32.mrf.mxu0
  %v1297 = vadd.f32 %v261, %v1296
  %v1298 = vpop.f32.mrf.mxu0
  %v1299 = vadd.f32 %v265, %v1298
  %v1300 = vpop.f32.mrf.mxu0
  %v1301 = vadd.f32 %v261, %v1300
  %v1302 = vpop.f32.mrf.mxu0
  %v1303 = vadd.f32 %v265, %v1302
  %1304 = vdwg.mxu0
  %1305 = vmatprep.subr.bf16.mxu0 %v959
  %1306 = vmatpush1.bf16.msra.mxu0 %v958
  %1307 = vmatprep.subr.bf16.mxu0 %v955
  %1308 = vmatpush1.bf16.msra.mxu0 %v954
  %1309 = vmatprep.subr.bf16.mxu0 %v951
  %1310 = vmatpush1.bf16.msra.mxu0 %v950
  %1311 = vmatprep.subr.bf16.mxu0 %v947
  %1312 = vmatpush1.bf16.msra.mxu0 %v946
  %1313 = vmatprep.subr.bf16.mxu0 %v943
  %1314 = vmatpush1.bf16.msra.mxu0 %v942
  %1315 = vmatprep.subr.bf16.mxu0 %v939
  %1316 = vmatpush1.bf16.msra.mxu0 %v938
  %1317 = vmatprep.subr.bf16.mxu0 %v935
  %1318 = vmatpush1.bf16.msra.mxu0 %v934
  %1319 = vmatprep.subr.bf16.mxu0 %v931
  %1320 = vmatpush1.bf16.msra.mxu0 %v930
  %1321 = vmatprep.subr.bf16.mxu0 %v991
  %1322 = vmatpush2.bf16.msra.mxu0 %v990
  %1323 = vmatprep.subr.bf16.mxu0 %v987
  %1324 = vmatpush2.bf16.msra.mxu0 %v986
  %1325 = vmatprep.subr.bf16.mxu0 %v983
  %1326 = vmatpush2.bf16.msra.mxu0 %v982
  %1327 = vmatprep.subr.bf16.mxu0 %v979
  %1328 = vmatpush2.bf16.msra.mxu0 %v978
  %1329 = vmatprep.subr.bf16.mxu0 %v975
  %1330 = vmatpush2.bf16.msra.mxu0 %v974
  %1331 = vmatprep.subr.bf16.mxu0 %v971
  %1332 = vmatpush2.bf16.msra.mxu0 %v970
  %1333 = vmatprep.subr.bf16.mxu0 %v967
  %1334 = vmatpush2.bf16.msra.mxu0 %v966
  %1335 = vmatprep.subr.bf16.mxu0 %v963
  %1336 = vmatpush2.bf16.msra.mxu0 %v962
  %1337 = vmatprep.mubr.bf16.mxu0 %v56
  %1338 = vmatmul.mubr.bf16.gmra.mxu0 %v55
  %v1339 = vpop.f32.mrf.mxu0
  %v1340 = vadd.f32 %v1297, %v1339
  %v1341 = vpop.f32.mrf.mxu0
  %v1342 = vadd.f32 %v1299, %v1341
  %v1343 = vpop.f32.mrf.mxu0
  %v1344 = vadd.f32 %v1301, %v1343
  %v1345 = vpop.f32.mrf.mxu0
  %v1346 = vadd.f32 %v1303, %v1345
  %1347 = vdwg.mxu0
  %1348 = vmatprep.subr.bf16.mxu0 %v1023
  %1349 = vmatpush1.bf16.msra.mxu0 %v1022
  %1350 = vmatprep.subr.bf16.mxu0 %v1019
  %1351 = vmatpush1.bf16.msra.mxu0 %v1018
  %1352 = vmatprep.subr.bf16.mxu0 %v1015
  %1353 = vmatpush1.bf16.msra.mxu0 %v1014
  %1354 = vmatprep.subr.bf16.mxu0 %v1011
  %1355 = vmatpush1.bf16.msra.mxu0 %v1010
  %1356 = vmatprep.subr.bf16.mxu0 %v1007
  %1357 = vmatpush1.bf16.msra.mxu0 %v1006
  %1358 = vmatprep.subr.bf16.mxu0 %v1003
  %1359 = vmatpush1.bf16.msra.mxu0 %v1002
  %1360 = vmatprep.subr.bf16.mxu0 %v999
  %1361 = vmatpush1.bf16.msra.mxu0 %v998
  %1362 = vmatprep.subr.bf16.mxu0 %v995
  %1363 = vmatpush1.bf16.msra.mxu0 %v994
  %1364 = vmatprep.subr.bf16.mxu0 %v1055
  %1365 = vmatpush2.bf16.msra.mxu0 %v1054
  %1366 = vmatprep.subr.bf16.mxu0 %v1051
  %1367 = vmatpush2.bf16.msra.mxu0 %v1050
  %1368 = vmatprep.subr.bf16.mxu0 %v1047
  %1369 = vmatpush2.bf16.msra.mxu0 %v1046
  %1370 = vmatprep.subr.bf16.mxu0 %v1043
  %1371 = vmatpush2.bf16.msra.mxu0 %v1042
  %1372 = vmatprep.subr.bf16.mxu0 %v1039
  %1373 = vmatpush2.bf16.msra.mxu0 %v1038
  %1374 = vmatprep.subr.bf16.mxu0 %v1035
  %1375 = vmatpush2.bf16.msra.mxu0 %v1034
  %1376 = vmatprep.subr.bf16.mxu0 %v1031
  %1377 = vmatpush2.bf16.msra.mxu0 %v1030
  %1378 = vmatprep.subr.bf16.mxu0 %v1027
  %1379 = vmatpush2.bf16.msra.mxu0 %v1026
  %1380 = vmatprep.mubr.bf16.mxu0 %v58
  %1381 = vmatmul.mubr.bf16.gmra.mxu0 %v57
  %v1382 = vpop.f32.mrf.mxu0
  %v1383 = vadd.f32 %v1340, %v1382
  %v1384 = vpop.f32.mrf.mxu0
  %v1385 = vadd.f32 %v1342, %v1384
  %v1386 = vpop.f32.mrf.mxu0
  %v1387 = vadd.f32 %v1344, %v1386
  %v1388 = vpop.f32.mrf.mxu0
  %v1389 = vadd.f32 %v1346, %v1388
  %1390 = vdwg.mxu0
  %1391 = vmatprep.subr.bf16.mxu0 0
  %1392 = vmatpush1.bf16.msra.mxu0 0
  %1393 = vmatprep.subr.bf16.mxu0 0
  %1394 = vmatpush1.bf16.msra.mxu0 0
  %1395 = vmatprep.subr.bf16.mxu0 0
  %1396 = vmatpush1.bf16.msra.mxu0 0
  %1397 = vmatprep.subr.bf16.mxu0 0
  %1398 = vmatpush1.bf16.msra.mxu0 0
  %1399 = vmatprep.subr.bf16.mxu0 0
  %1400 = vmatpush1.bf16.msra.mxu0 0
  %1401 = vmatprep.subr.bf16.mxu0 0
  %1402 = vmatpush1.bf16.msra.mxu0 0
  %1403 = vmatprep.subr.bf16.mxu0 0
  %1404 = vmatpush1.bf16.msra.mxu0 0
  %1405 = vmatprep.subr.bf16.mxu0 %v1059
  %1406 = vmatpush1.bf16.msra.mxu0 %v1058
  %1407 = vmatprep.subr.bf16.mxu0 0
  %1408 = vmatpush2.bf16.msra.mxu0 0
  %1409 = vmatprep.subr.bf16.mxu0 0
  %1410 = vmatpush2.bf16.msra.mxu0 0
  %1411 = vmatprep.subr.bf16.mxu0 0
  %1412 = vmatpush2.bf16.msra.mxu0 0
  %1413 = vmatprep.subr.bf16.mxu0 0
  %1414 = vmatpush2.bf16.msra.mxu0 0
  %1415 = vmatprep.subr.bf16.mxu0 0
  %1416 = vmatpush2.bf16.msra.mxu0 0
  %1417 = vmatprep.subr.bf16.mxu0 0
  %1418 = vmatpush2.bf16.msra.mxu0 0
  %1419 = vmatprep.subr.bf16.mxu0 0
  %1420 = vmatpush2.bf16.msra.mxu0 0
  %1421 = vmatprep.subr.bf16.mxu0 0
  %1422 = vmatpush2.bf16.msra.mxu0 0
  %1423 = vmatprep.mubr.bf16.mxu0 0
  %1424 = vmatmul.mubr.bf16.gmra.mxu0 %v1260
  %v1425 = vpop.f32.mrf.mxu0
  %v1426 = vadd.f32 %v1383, %v1425
  %v1427 = vpop.f32.mrf.mxu0
  %v1428 = vadd.f32 %v1385, %v1427
  %v1429 = vpop.f32.mrf.mxu0
  %v1430 = vadd.f32 %v1387, %v1429
  %v1431 = vpop.f32.mrf.mxu0
  %v1432 = vadd.f32 %v1389, %v1431
  %1433 = vdwg.mxu0
  %1434 = vmatprep.subr.bf16.mxu0 %v897
  %1435 = vmatpush1.bf16.msra.mxu0 %v896
  %1436 = vmatprep.subr.bf16.mxu0 %v893
  %1437 = vmatpush1.bf16.msra.mxu0 %v892
  %1438 = vmatprep.subr.bf16.mxu0 %v889
  %1439 = vmatpush1.bf16.msra.mxu0 %v888
  %1440 = vmatprep.subr.bf16.mxu0 %v885
  %1441 = vmatpush1.bf16.msra.mxu0 %v884
  %1442 = vmatprep.subr.bf16.mxu0 %v881
  %1443 = vmatpush1.bf16.msra.mxu0 %v880
  %1444 = vmatprep.subr.bf16.mxu0 %v877
  %1445 = vmatpush1.bf16.msra.mxu0 %v876
  %1446 = vmatprep.subr.bf16.mxu0 %v873
  %1447 = vmatpush1.bf16.msra.mxu0 %v872
  %1448 = vmatprep.subr.bf16.mxu0 %v869
  %1449 = vmatpush1.bf16.msra.mxu0 %v868
  %1450 = vmatprep.subr.bf16.mxu0 %v929
  %1451 = vmatpush2.bf16.msra.mxu0 %v928
  %1452 = vmatprep.subr.bf16.mxu0 %v925
  %1453 = vmatpush2.bf16.msra.mxu0 %v924
  %1454 = vmatprep.subr.bf16.mxu0 %v921
  %1455 = vmatpush2.bf16.msra.mxu0 %v920
  %1456 = vmatprep.subr.bf16.mxu0 %v917
  %1457 = vmatpush2.bf16.msra.mxu0 %v916
  %1458 = vmatprep.subr.bf16.mxu0 %v913
  %1459 = vmatpush2.bf16.msra.mxu0 %v912
  %1460 = vmatprep.subr.bf16.mxu0 %v909
  %1461 = vmatpush2.bf16.msra.mxu0 %v908
  %1462 = vmatprep.subr.bf16.mxu0 %v905
  %1463 = vmatpush2.bf16.msra.mxu0 %v904
  %1464 = vmatprep.subr.bf16.mxu0 %v901
  %1465 = vmatpush2.bf16.msra.mxu0 %v900
  %1466 = vmatprep.mubr.bf16.mxu0 %v54
  %1467 = vmatmul.mubr.bf16.gmra.mxu0 %v53
  %v1468 = vpop.f32.mrf.mxu0
  %v1469 = vadd.f32 %v269, %v1468
  %v1470 = vpop.f32.mrf.mxu0
  %v1471 = vadd.f32 %v273, %v1470
  %v1472 = vpop.f32.mrf.mxu0
  %v1473 = vadd.f32 %v269, %v1472
  %v1474 = vpop.f32.mrf.mxu0
  %v1475 = vadd.f32 %v273, %v1474
  %1476 = vdwg.mxu0
  %1477 = vmatprep.subr.bf16.mxu0 %v961
  %1478 = vmatpush1.bf16.msra.mxu0 %v960
  %1479 = vmatprep.subr.bf16.mxu0 %v957
  %1480 = vmatpush1.bf16.msra.mxu0 %v956
  %1481 = vmatprep.subr.bf16.mxu0 %v953
  %1482 = vmatpush1.bf16.msra.mxu0 %v952
  %1483 = vmatprep.subr.bf16.mxu0 %v949
  %1484 = vmatpush1.bf16.msra.mxu0 %v948
  %1485 = vmatprep.subr.bf16.mxu0 %v945
  %1486 = vmatpush1.bf16.msra.mxu0 %v944
  %1487 = vmatprep.subr.bf16.mxu0 %v941
  %1488 = vmatpush1.bf16.msra.mxu0 %v940
  %1489 = vmatprep.subr.bf16.mxu0 %v937
  %1490 = vmatpush1.bf16.msra.mxu0 %v936
  %1491 = vmatprep.subr.bf16.mxu0 %v933
  %1492 = vmatpush1.bf16.msra.mxu0 %v932
  %1493 = vmatprep.subr.bf16.mxu0 %v993
  %1494 = vmatpush2.bf16.msra.mxu0 %v992
  %1495 = vmatprep.subr.bf16.mxu0 %v989
  %1496 = vmatpush2.bf16.msra.mxu0 %v988
  %1497 = vmatprep.subr.bf16.mxu0 %v985
  %1498 = vmatpush2.bf16.msra.mxu0 %v984
  %1499 = vmatprep.subr.bf16.mxu0 %v981
  %1500 = vmatpush2.bf16.msra.mxu0 %v980
  %1501 = vmatprep.subr.bf16.mxu0 %v977
  %1502 = vmatpush2.bf16.msra.mxu0 %v976
  %1503 = vmatprep.subr.bf16.mxu0 %v973
  %1504 = vmatpush2.bf16.msra.mxu0 %v972
  %1505 = vmatprep.subr.bf16.mxu0 %v969
  %1506 = vmatpush2.bf16.msra.mxu0 %v968
  %1507 = vmatprep.subr.bf16.mxu0 %v965
  %1508 = vmatpush2.bf16.msra.mxu0 %v964
  %1509 = vmatprep.mubr.bf16.mxu0 %v56
  %1510 = vmatmul.mubr.bf16.gmra.mxu0 %v55
  %v1511 = vpop.f32.mrf.mxu0
  %v1512 = vadd.f32 %v1469, %v1511
  %v1513 = vpop.f32.mrf.mxu0
  %v1514 = vadd.f32 %v1471, %v1513
  %v1515 = vpop.f32.mrf.mxu0
  %v1516 = vadd.f32 %v1473, %v1515
  %v1517 = vpop.f32.mrf.mxu0
  %v1518 = vadd.f32 %v1475, %v1517
  %1519 = vdwg.mxu0
  %1520 = vmatprep.subr.bf16.mxu0 %v1025
  %1521 = vmatpush1.bf16.msra.mxu0 %v1024
  %1522 = vmatprep.subr.bf16.mxu0 %v1021
  %1523 = vmatpush1.bf16.msra.mxu0 %v1020
  %1524 = vmatprep.subr.bf16.mxu0 %v1017
  %1525 = vmatpush1.bf16.msra.mxu0 %v1016
  %1526 = vmatprep.subr.bf16.mxu0 %v1013
  %1527 = vmatpush1.bf16.msra.mxu0 %v1012
  %1528 = vmatprep.subr.bf16.mxu0 %v1009
  %1529 = vmatpush1.bf16.msra.mxu0 %v1008
  %1530 = vmatprep.subr.bf16.mxu0 %v1005
  %1531 = vmatpush1.bf16.msra.mxu0 %v1004
  %1532 = vmatprep.subr.bf16.mxu0 %v1001
  %1533 = vmatpush1.bf16.msra.mxu0 %v1000
  %1534 = vmatprep.subr.bf16.mxu0 %v997
  %1535 = vmatpush1.bf16.msra.mxu0 %v996
  %1536 = vmatprep.subr.bf16.mxu0 %v1057
  %1537 = vmatpush2.bf16.msra.mxu0 %v1056
  %1538 = vmatprep.subr.bf16.mxu0 %v1053
  %1539 = vmatpush2.bf16.msra.mxu0 %v1052
  %1540 = vmatprep.subr.bf16.mxu0 %v1049
  %1541 = vmatpush2.bf16.msra.mxu0 %v1048
  %1542 = vmatprep.subr.bf16.mxu0 %v1045
  %1543 = vmatpush2.bf16.msra.mxu0 %v1044
  %1544 = vmatprep.subr.bf16.mxu0 %v1041
  %1545 = vmatpush2.bf16.msra.mxu0 %v1040
  %1546 = vmatprep.subr.bf16.mxu0 %v1037
  %1547 = vmatpush2.bf16.msra.mxu0 %v1036
  %1548 = vmatprep.subr.bf16.mxu0 %v1033
  %1549 = vmatpush2.bf16.msra.mxu0 %v1032
  %1550 = vmatprep.subr.bf16.mxu0 %v1029
  %1551 = vmatpush2.bf16.msra.mxu0 %v1028
  %1552 = vmatprep.mubr.bf16.mxu0 %v58
  %1553 = vmatmul.mubr.bf16.gmra.mxu0 %v57
  %v1554 = vpop.f32.mrf.mxu0
  %v1555 = vadd.f32 %v1512, %v1554
  %v1556 = vpop.f32.mrf.mxu0
  %v1557 = vadd.f32 %v1514, %v1556
  %v1558 = vpop.f32.mrf.mxu0
  %v1559 = vadd.f32 %v1516, %v1558
  %v1560 = vpop.f32.mrf.mxu0
  %v1561 = vadd.f32 %v1518, %v1560
  %1562 = vdwg.mxu0
  %1563 = vmatprep.subr.bf16.mxu0 0
  %1564 = vmatpush1.bf16.msra.mxu0 0
  %1565 = vmatprep.subr.bf16.mxu0 0
  %1566 = vmatpush1.bf16.msra.mxu0 0
  %1567 = vmatprep.subr.bf16.mxu0 0
  %1568 = vmatpush1.bf16.msra.mxu0 0
  %1569 = vmatprep.subr.bf16.mxu0 0
  %1570 = vmatpush1.bf16.msra.mxu0 0
  %1571 = vmatprep.subr.bf16.mxu0 0
  %1572 = vmatpush1.bf16.msra.mxu0 0
  %1573 = vmatprep.subr.bf16.mxu0 0
  %1574 = vmatpush1.bf16.msra.mxu0 0
  %1575 = vmatprep.subr.bf16.mxu0 0
  %1576 = vmatpush1.bf16.msra.mxu0 0
  %1577 = vmatprep.subr.bf16.mxu0 %v1061
  %1578 = vmatpush1.bf16.msra.mxu0 %v1060
  %1579 = vmatprep.subr.bf16.mxu0 0
  %1580 = vmatpush2.bf16.msra.mxu0 0
  %1581 = vmatprep.subr.bf16.mxu0 0
  %1582 = vmatpush2.bf16.msra.mxu0 0
  %1583 = vmatprep.subr.bf16.mxu0 0
  %1584 = vmatpush2.bf16.msra.mxu0 0
  %1585 = vmatprep.subr.bf16.mxu0 0
  %1586 = vmatpush2.bf16.msra.mxu0 0
  %1587 = vmatprep.subr.bf16.mxu0 0
  %1588 = vmatpush2.bf16.msra.mxu0 0
  %1589 = vmatprep.subr.bf16.mxu0 0
  %1590 = vmatpush2.bf16.msra.mxu0 0
  %1591 = vmatprep.subr.bf16.mxu0 0
  %1592 = vmatpush2.bf16.msra.mxu0 0
  %1593 = vmatprep.subr.bf16.mxu0 0
  %1594 = vmatpush2.bf16.msra.mxu0 0
  %1595 = vmatprep.mubr.bf16.mxu0 0
  %1596 = vmatmul.mubr.bf16.gmra.mxu0 %v1260
  %v1597 = vpop.f32.mrf.mxu0
  %v1598 = vadd.f32 %v1555, %v1597
  %v1599 = vpop.f32.mrf.mxu0
  %v1600 = vadd.f32 %v1557, %v1599
  %v1601 = vpop.f32.mrf.mxu0
  %v1602 = vadd.f32 %v1559, %v1601
  %v1603 = vpop.f32.mrf.mxu0
  %v1604 = vadd.f32 %v1561, %v1603
  %1605 = vdwg.mxu0
  %v1606 = vmax.f32 %v1426, 0.0
  %v1607 = vmax.f32 %v1428, 0.0
  %v1608 = vmax.f32 %v1598, 0.0
  %v1609 = vmax.f32 %v1600, 0.0
  %v1610 = vmax.f32 %v1430, 0.0
  %v1611 = vmax.f32 %v1432, 0.0
  %v1612 = vmax.f32 %v1602, 0.0
  %v1613 = vmax.f32 %v1604, 0.0
  %v1614 = vpack.c.bf16 %v1610, %v1606
  %v1615 = vpack.c.bf16 %v1611, %v1607
  %v1616 = vpack.c.bf16 %v1612, %v1608
  %v1617 = vpack.c.bf16 %v1613, %v1609
  %v1618 = vld [vmem:[%s4] sm:$0xf]
  %v1619 = vld [vmem:[%s4 + $0x4] sm:$0xf]
  %v1620 = vld [vmem:[%s4 + $0x8] sm:$0xf]
  %v1621 = vld [vmem:[%s4 + $0xc] sm:$0xf]
  %v1622 = vld [vmem:[%s4 + $0x10] sm:$0xf]
  %v1623 = vld [vmem:[%s4 + $0x14] sm:$0xf]
  %v1624 = vld [vmem:[%s4 + $0x18] sm:$0xf]
  %v1625 = vld [vmem:[%s4 + $0x1c] sm:$0xf]
  %v1626 = vld [vmem:[%s4 + $0x20] sm:$0xf]
  %v1627 = vld [vmem:[%s4 + $0x24] sm:$0xf]
  %v1628 = vld [vmem:[%s4 + $0x28] sm:$0xf]
  %v1629 = vld [vmem:[%s4 + $0x2c] sm:$0xf]
  %v1630 = vld [vmem:[%s4 + $0x30] sm:$0xf]
  %v1631 = vld [vmem:[%s4 + $0x34] sm:$0xf]
  %v1632 = vld [vmem:[%s4 + $0x38] sm:$0xf]
  %v1633 = vld [vmem:[%s4 + $0x3c] sm:$0xf]
  %v1634 = vld [vmem:[%s4 + $0x40] sm:$0xf]
  %v1635 = vld [vmem:[%s4 + $0x44] sm:$0xf]
  %v1636 = vld [vmem:[%s4 + $0x48] sm:$0xf]
  %v1637 = vld [vmem:[%s4 + $0x4c] sm:$0xf]
  %v1638 = vld [vmem:[%s4 + $0x50] sm:$0xf]
  %v1639 = vld [vmem:[%s4 + $0x54] sm:$0xf]
  %v1640 = vld [vmem:[%s4 + $0x58] sm:$0xf]
  %v1641 = vld [vmem:[%s4 + $0x5c] sm:$0xf]
  %v1642 = vld [vmem:[%s4 + $0x60] sm:$0xf]
  %v1643 = vld [vmem:[%s4 + $0x64] sm:$0xf]
  %v1644 = vld [vmem:[%s4 + $0x68] sm:$0xf]
  %v1645 = vld [vmem:[%s4 + $0x6c] sm:$0xf]
  %v1646 = vld [vmem:[%s4 + $0x70] sm:$0xf]
  %v1647 = vld [vmem:[%s4 + $0x74] sm:$0xf]
  %v1648 = vld [vmem:[%s4 + $0x78] sm:$0xf]
  %v1649 = vld [vmem:[%s4 + $0x7c] sm:$0xf]
  %v1650 = vld [vmem:[%s4 + $0x80] sm:$0xf]
  %v1651 = vld [vmem:[%s4 + $0x84] sm:$0xf]
  %v1652 = vld [vmem:[%s4 + $0x88] sm:$0xf]
  %v1653 = vld [vmem:[%s4 + $0x8c] sm:$0xf]
  %v1654 = vld [vmem:[%s4 + $0x90] sm:$0xf]
  %v1655 = vld [vmem:[%s4 + $0x94] sm:$0xf]
  %v1656 = vld [vmem:[%s4 + $0x98] sm:$0xf]
  %v1657 = vld [vmem:[%s4 + $0x9c] sm:$0xf]
  %v1658 = vld [vmem:[%s4 + $0xa0] sm:$0xf]
  %v1659 = vld [vmem:[%s4 + $0xa4] sm:$0xf]
  %v1660 = vld [vmem:[%s4 + $0xa8] sm:$0xf]
  %v1661 = vld [vmem:[%s4 + $0xac] sm:$0xf]
  %v1662 = vld [vmem:[%s4 + $0xb0] sm:$0xf]
  %v1663 = vld [vmem:[%s4 + $0xb4] sm:$0xf]
  %v1664 = vld [vmem:[%s4 + $0xb8] sm:$0xf]
  %v1665 = vld [vmem:[%s4 + $0xbc] sm:$0xf]
  %v1666 = vld [vmem:[%s4 + $0xc0] sm:$0xf]
  %v1667 = vld [vmem:[%s4 + $0xc4] sm:$0xf]
  %v1668 = vld [vmem:[%s5] sm:$0x1]
  %v1670 = vlaneseq
  %v1671 = vshrl.u32 %v1670, 7
  %v1672 = vsub.s32 0, %v1671
  %v1673 = vrot.slane %v1668, %v1672
  %v1725 = vunpack.c.l.b16 %v1618
  %v1726 = vunpack.c.l.b16 %v1619
  %v1727 = vunpack.c.l.b16 %v1620
  %v1728 = vunpack.c.l.b16 %v1621
  %v1729 = vunpack.c.l.b16 %v1622
  %v1730 = vunpack.c.l.b16 %v1623
  %v1731 = vunpack.c.l.b16 %v1624
  %v1732 = vunpack.c.l.b16 %v1625
  %v1733 = vunpack.c.l.b16 %v1626
  %v1734 = vunpack.c.l.b16 %v1627
  %v1735 = vunpack.c.l.b16 %v1628
  %v1736 = vunpack.c.l.b16 %v1629
  %v1737 = vunpack.c.l.b16 %v1630
  %v1738 = vunpack.c.l.b16 %v1631
  %v1739 = vunpack.c.l.b16 %v1632
  %v1740 = vunpack.c.l.b16 %v1633
  %v1741 = vunpack.c.l.b16 %v1634
  %v1742 = vunpack.c.l.b16 %v1635
  %v1743 = vunpack.c.l.b16 %v1636
  %v1744 = vunpack.c.l.b16 %v1637
  %v1745 = vunpack.c.l.b16 %v1638
  %v1746 = vunpack.c.l.b16 %v1639
  %v1747 = vunpack.c.l.b16 %v1640
  %v1748 = vunpack.c.l.b16 %v1641
  %v1749 = vunpack.c.l.b16 %v1642
  %v1750 = vunpack.c.l.b16 %v1643
  %v1751 = vunpack.c.l.b16 %v1644
  %v1752 = vunpack.c.l.b16 %v1645
  %v1753 = vunpack.c.l.b16 %v1646
  %v1754 = vunpack.c.l.b16 %v1647
  %v1755 = vunpack.c.l.b16 %v1648
  %v1756 = vunpack.c.l.b16 %v1649
  %v1757 = vunpack.c.l.b16 %v1650
  %v1758 = vunpack.c.l.b16 %v1651
  %v1759 = vunpack.c.l.b16 %v1652
  %v1760 = vunpack.c.l.b16 %v1653
  %v1761 = vunpack.c.l.b16 %v1654
  %v1762 = vunpack.c.l.b16 %v1655
  %v1763 = vunpack.c.l.b16 %v1656
  %v1764 = vunpack.c.l.b16 %v1657
  %v1765 = vunpack.c.l.b16 %v1658
  %v1766 = vunpack.c.l.b16 %v1659
  %v1767 = vunpack.c.l.b16 %v1660
  %v1768 = vunpack.c.l.b16 %v1661
  %v1769 = vunpack.c.l.b16 %v1662
  %v1770 = vunpack.c.l.b16 %v1663
  %v1771 = vunpack.c.l.b16 %v1664
  %v1772 = vunpack.c.l.b16 %v1665
  %v1773 = vunpack.c.l.b16 %v1666
  %v1774 = vunpack.c.l.b16 %v1667
  %v1775 = vpack.c.b16 %v1726, %v1725
  %v1776 = vpack.c.b16 %v1728, %v1727
  %v1777 = vpack.c.b16 %v1730, %v1729
  %v1778 = vpack.c.b16 %v1732, %v1731
  %v1779 = vpack.c.b16 %v1734, %v1733
  %v1780 = vpack.c.b16 %v1736, %v1735
  %v1781 = vpack.c.b16 %v1738, %v1737
  %v1782 = vpack.c.b16 %v1740, %v1739
  %v1783 = vpack.c.b16 %v1742, %v1741
  %v1784 = vpack.c.b16 %v1744, %v1743
  %v1785 = vpack.c.b16 %v1746, %v1745
  %v1786 = vpack.c.b16 %v1748, %v1747
  %v1787 = vpack.c.b16 %v1750, %v1749
  %v1788 = vpack.c.b16 %v1752, %v1751
  %v1789 = vpack.c.b16 %v1754, %v1753
  %v1790 = vpack.c.b16 %v1756, %v1755
  %v1791 = vpack.c.b16 %v1758, %v1757
  %v1792 = vpack.c.b16 %v1760, %v1759
  %v1793 = vpack.c.b16 %v1762, %v1761
  %v1794 = vpack.c.b16 %v1764, %v1763
  %v1795 = vpack.c.b16 %v1766, %v1765
  %v1796 = vpack.c.b16 %v1768, %v1767
  %v1797 = vpack.c.b16 %v1770, %v1769
  %v1798 = vpack.c.b16 %v1772, %v1771
  %v1799 = vpack.c.b16 %v1774, %v1773
  %v1826 = vsel %vm1258, %v1617, 0
  %1828 = vmatprep.subr.bf16.mxu0 0
  %1829 = vmatpush1.bf16.msra.mxu0 %v1782
  %1830 = vmatprep.subr.bf16.mxu0 0
  %1831 = vmatpush1.bf16.msra.mxu0 %v1781
  %1832 = vmatprep.subr.bf16.mxu0 0
  %1833 = vmatpush1.bf16.msra.mxu0 %v1780
  %1834 = vmatprep.subr.bf16.mxu0 0
  %1835 = vmatpush1.bf16.msra.mxu0 %v1779
  %1836 = vmatprep.subr.bf16.mxu0 0
  %1837 = vmatpush1.bf16.msra.mxu0 %v1778
  %1838 = vmatprep.subr.bf16.mxu0 0
  %1839 = vmatpush1.bf16.msra.mxu0 %v1777
  %1840 = vmatprep.subr.bf16.mxu0 0
  %1841 = vmatpush1.bf16.msra.mxu0 %v1776
  %1842 = vmatprep.subr.bf16.mxu0 0
  %1843 = vmatpush1.bf16.msra.mxu0 %v1775
  %1844 = vmatprep.subr.bf16.mxu0 0
  %1845 = vmatpush2.bf16.msra.mxu0 %v1790
  %1846 = vmatprep.subr.bf16.mxu0 0
  %1847 = vmatpush2.bf16.msra.mxu0 %v1789
  %1848 = vmatprep.subr.bf16.mxu0 0
  %1849 = vmatpush2.bf16.msra.mxu0 %v1788
  %1850 = vmatprep.subr.bf16.mxu0 0
  %1851 = vmatpush2.bf16.msra.mxu0 %v1787
  %1852 = vmatprep.subr.bf16.mxu0 0
  %1853 = vmatpush2.bf16.msra.mxu0 %v1786
  %1854 = vmatprep.subr.bf16.mxu0 0
  %1855 = vmatpush2.bf16.msra.mxu0 %v1785
  %1856 = vmatprep.subr.bf16.mxu0 0
  %1857 = vmatpush2.bf16.msra.mxu0 %v1784
  %1858 = vmatprep.subr.bf16.mxu0 0
  %1859 = vmatpush2.bf16.msra.mxu0 %v1783
  %1860 = vmatprep.mubr.bf16.mxu0 %v1615
  %1861 = vmatmul.mubr.bf16.gmra.mxu0 %v1614
  %v1862 = vpop.f32.mrf.mxu0
  %v1863 = vadd.f32 %v1673, %v1862
  %v1864 = vpop.f32.mrf.mxu0
  %v1865 = vpop.f32.mrf.mxu0
  %v1866 = vadd.f32 %v1673, %v1865
  %v1867 = vpop.f32.mrf.mxu0
  %1868 = vdwg.mxu0
  %1869 = vmatprep.subr.bf16.mxu0 0
  %1870 = vmatpush1.bf16.msra.mxu0 %v1798
  %1871 = vmatprep.subr.bf16.mxu0 0
  %1872 = vmatpush1.bf16.msra.mxu0 %v1797
  %1873 = vmatprep.subr.bf16.mxu0 0
  %1874 = vmatpush1.bf16.msra.mxu0 %v1796
  %1875 = vmatprep.subr.bf16.mxu0 0
  %1876 = vmatpush1.bf16.msra.mxu0 %v1795
  %1877 = vmatprep.subr.bf16.mxu0 0
  %1878 = vmatpush1.bf16.msra.mxu0 %v1794
  %1879 = vmatprep.subr.bf16.mxu0 0
  %1880 = vmatpush1.bf16.msra.mxu0 %v1793
  %1881 = vmatprep.subr.bf16.mxu0 0
  %1882 = vmatpush1.bf16.msra.mxu0 %v1792
  %1883 = vmatprep.subr.bf16.mxu0 0
  %1884 = vmatpush1.bf16.msra.mxu0 %v1791
  %1885 = vmatprep.subr.bf16.mxu0 0
  %1886 = vmatpush2.bf16.msra.mxu0 0
  %1887 = vmatprep.subr.bf16.mxu0 0
  %1888 = vmatpush2.bf16.msra.mxu0 0
  %1889 = vmatprep.subr.bf16.mxu0 0
  %1890 = vmatpush2.bf16.msra.mxu0 0
  %1891 = vmatprep.subr.bf16.mxu0 0
  %1892 = vmatpush2.bf16.msra.mxu0 0
  %1893 = vmatprep.subr.bf16.mxu0 0
  %1894 = vmatpush2.bf16.msra.mxu0 0
  %1895 = vmatprep.subr.bf16.mxu0 0
  %1896 = vmatpush2.bf16.msra.mxu0 0
  %1897 = vmatprep.subr.bf16.mxu0 0
  %1898 = vmatpush2.bf16.msra.mxu0 0
  %1899 = vmatprep.subr.bf16.mxu0 0
  %1900 = vmatpush2.bf16.msra.mxu0 %v1799
  %1901 = vmatprep.mubr.bf16.mxu0 %v1826
  %1902 = vmatmul.mubr.bf16.gmra.mxu0 %v1616
  %v1903 = vpop.f32.mrf.mxu0
  %v1904 = vadd.f32 %v1863, %v1903
  %v1905 = vpop.f32.mrf.mxu0
  %v1906 = vpop.f32.mrf.mxu0
  %v1907 = vadd.f32 %v1866, %v1906
  %v1908 = vpop.f32.mrf.mxu0
  %1909 = vdwg.mxu0
  %v1910 = vmul.f32 %v1904, 0.5
  %v1911 = vmul.f32 %v1907, 0.5
  %v1912 = vmul.f32 %v1910, 1.442695
  %v1913 = vpow.pop %v1912
  %v1914 = vmul.f32 %v1911, 1.442695
  %v1915 = vpow.pop %v1914
  %v1916 = vld [vmem:[%s1] sm:$0xff]
  %v1917 = vld [vmem:[%s1 + $0x8] sm:$0xff]
  %1920 = vrot.lane.b32.xlu0 %v1913, 108
  %v1921 = vpop.permute.xlu0 %1920
  %1922 = vrot.lane.b32.xlu0 %v1915, 108
  %v1923 = vpop.permute.xlu0 %1922
  %v1926 = vmul.f32 %v1916, %v1921
  %v1927 = vmul.f32 %v1917, %v1923
  %v1928 = vadd.f32 %v1926, %v1904
  %v1929 = vadd.f32 %v1927, %v1907
  %v1930 = vpack.c.bf16 %v1929, %v1928
  %v1931 = vld [vmem:[%s6] sm:$0xff]
  %v1932 = vld [vmem:[%s6 + $0x8] sm:$0xff]
  %v1933 = vld [vmem:[%s6 + $0x10] sm:$0xff]
  %v1934 = vld [vmem:[%s6 + $0x18] sm:$0xff]
  %v1935 = vld [vmem:[%s6 + $0x20] sm:$0x33]
  %v1936 = vld [vmem:[%s6 + $0x28] sm:$0x33]
  %v1937 = vld [vmem:[%s7] sm:$0xf]
  %v1939 = vlaneseq
  %v1940 = vshrl.u32 %v1939, 7
  %v1941 = vsub.s32 0, %v1940
  %v1942 = vrot.slane %v1937, %v1941
  %v1943 = vlaneseq
  %v1944 = vshrl.u32 %v1943, 7
  %v1945 = vsub.s32 1, %v1944
  %v1946 = vrot.slane %v1937, %v1945
  %v1947 = vlaneseq
  %v1948 = vshrl.u32 %v1947, 7
  %v1949 = vsub.s32 2, %v1948
  %v1950 = vrot.slane %v1937, %v1949
  %v1951 = vlaneseq
  %v1952 = vshrl.u32 %v1951, 7
  %v1953 = vsub.s32 3, %v1952
  %v1954 = vrot.slane %v1937, %v1953
  %v1965 = vunpack.c.l.b16 %v1931
  %v1966 = vunpack.c.h.b16 %v1931
  %v1967 = vunpack.c.l.b16 %v1932
  %v1968 = vunpack.c.h.b16 %v1932
  %v1969 = vunpack.c.l.b16 %v1933
  %v1970 = vunpack.c.h.b16 %v1933
  %v1971 = vunpack.c.l.b16 %v1934
  %v1972 = vunpack.c.h.b16 %v1934
  %v1973 = vunpack.c.l.b16 %v1935
  %v1974 = vunpack.c.h.b16 %v1935
  %v1975 = vunpack.c.l.b16 %v1936
  %v1976 = vunpack.c.h.b16 %v1936
  %v1977 = vpack.c.b16 %v1969, %v1965
  %v1978 = vpack.c.b16 %v1970, %v1966
  %v1979 = vpack.c.b16 %v1971, %v1967
  %v1980 = vpack.c.b16 %v1972, %v1968
  %v1981 = vpack.c.b16 %v1973, %v1973
  %v1982 = vpack.c.b16 %v1974, %v1974
  %v1983 = vpack.c.b16 %v1975, %v1975
  %v1984 = vpack.c.b16 %v1976, %v1976
  %vm1989 = vcmask 162816
  %v1991 = vsel %vm1989, %v1930, 0
  %vm1993 = vcmask 1041408
  %v1995 = vsel %vm1993, %v1981, 0
  %v1998 = vsel %vm1993, %v1982, 0
  %v2001 = vsel %vm1993, %v1983, 0
  %v2004 = vsel %vm1993, %v1984, 0
  %2006 = vmatprep.subr.bf16.mxu0 0
  %2007 = vmatpush1.bf16.msra.mxu0 0
  %2008 = vmatprep.subr.bf16.mxu0 0
  %2009 = vmatpush1.bf16.msra.mxu0 0
  %2010 = vmatprep.subr.bf16.mxu0 0
  %2011 = vmatpush1.bf16.msra.mxu0 0
  %2012 = vmatprep.subr.bf16.mxu0 0
  %2013 = vmatpush1.bf16.msra.mxu0 0
  %2014 = vmatprep.subr.bf16.mxu0 0
  %2015 = vmatpush1.bf16.msra.mxu0 0
  %2016 = vmatprep.subr.bf16.mxu0 0
  %2017 = vmatpush1.bf16.msra.mxu0 0
  %2018 = vmatprep.subr.bf16.mxu0 %v1998
  %2019 = vmatpush1.bf16.msra.mxu0 %v1995
  %2020 = vmatprep.subr.bf16.mxu0 %v1978
  %2021 = vmatpush1.bf16.msra.mxu0 %v1977
  %2022 = vmatprep.subr.bf16.mxu0 0
  %2023 = vmatpush2.bf16.msra.mxu0 0
  %2024 = vmatprep.subr.bf16.mxu0 0
  %2025 = vmatpush2.bf16.msra.mxu0 0
  %2026 = vmatprep.subr.bf16.mxu0 0
  %2027 = vmatpush2.bf16.msra.mxu0 0
  %2028 = vmatprep.subr.bf16.mxu0 0
  %2029 = vmatpush2.bf16.msra.mxu0 0
  %2030 = vmatprep.subr.bf16.mxu0 0
  %2031 = vmatpush2.bf16.msra.mxu0 0
  %2032 = vmatprep.subr.bf16.mxu0 0
  %2033 = vmatpush2.bf16.msra.mxu0 0
  %2034 = vmatprep.subr.bf16.mxu0 0
  %2035 = vmatpush2.bf16.msra.mxu0 0
  %2036 = vmatprep.subr.bf16.mxu0 0
  %2037 = vmatpush2.bf16.msra.mxu0 0
  %2038 = vmatprep.mubr.bf16.mxu0 0
  %2039 = vmatmul.mubr.bf16.gmra.mxu0 %v1991
  %v2040 = vpop.f32.mrf.mxu0
  %v2041 = vadd.f32 %v1942, %v2040
  %v2042 = vpop.f32.mrf.mxu0
  %v2043 = vadd.f32 %v1946, %v2042
  %v2044 = vpop.f32.mrf.mxu0
  %v2045 = vadd.f32 %v1942, %v2044
  %v2046 = vpop.f32.mrf.mxu0
  %v2047 = vadd.f32 %v1946, %v2046
  %2048 = vdwg.mxu0
  %2049 = vmatprep.subr.bf16.mxu0 0
  %2050 = vmatpush1.bf16.msra.mxu0 0
  %2051 = vmatprep.subr.bf16.mxu0 0
  %2052 = vmatpush1.bf16.msra.mxu0 0
  %2053 = vmatprep.subr.bf16.mxu0 0
  %2054 = vmatpush1.bf16.msra.mxu0 0
  %2055 = vmatprep.subr.bf16.mxu0 0
  %2056 = vmatpush1.bf16.msra.mxu0 0
  %2057 = vmatprep.subr.bf16.mxu0 0
  %2058 = vmatpush1.bf16.msra.mxu0 0
  %2059 = vmatprep.subr.bf16.mxu0 0
  %2060 = vmatpush1.bf16.msra.mxu0 0
  %2061 = vmatprep.subr.bf16.mxu0 %v2004
  %2062 = vmatpush1.bf16.msra.mxu0 %v2001
  %2063 = vmatprep.subr.bf16.mxu0 %v1980
  %2064 = vmatpush1.bf16.msra.mxu0 %v1979
  %2065 = vmatprep.subr.bf16.mxu0 0
  %2066 = vmatpush2.bf16.msra.mxu0 0
  %2067 = vmatprep.subr.bf16.mxu0 0
  %2068 = vmatpush2.bf16.msra.mxu0 0
  %2069 = vmatprep.subr.bf16.mxu0 0
  %2070 = vmatpush2.bf16.msra.mxu0 0
  %2071 = vmatprep.subr.bf16.mxu0 0
  %2072 = vmatpush2.bf16.msra.mxu0 0
  %2073 = vmatprep.subr.bf16.mxu0 0
  %2074 = vmatpush2.bf16.msra.mxu0 0
  %2075 = vmatprep.subr.bf16.mxu0 0
  %2076 = vmatpush2.bf16.msra.mxu0 0
  %2077 = vmatprep.subr.bf16.mxu0 0
  %2078 = vmatpush2.bf16.msra.mxu0 0
  %2079 = vmatprep.subr.bf16.mxu0 0
  %2080 = vmatpush2.bf16.msra.mxu0 0
  %2081 = vmatprep.mubr.bf16.mxu0 0
  %2082 = vmatmul.mubr.bf16.gmra.mxu0 %v1991
  %v2083 = vpop.f32.mrf.mxu0
  %v2084 = vadd.f32 %v1950, %v2083
  %v2085 = vpop.f32.mrf.mxu0
  %v2086 = vadd.f32 %v1954, %v2085
  %v2087 = vpop.f32.mrf.mxu0
  %v2088 = vadd.f32 %v1950, %v2087
  %v2089 = vpop.f32.mrf.mxu0
  %v2090 = vadd.f32 %v1954, %v2089
  %2091 = vdwg.mxu0
  %v2092 = vmax.f32 %v2041, 0.0
  %v2093 = vmax.f32 %v2043, 0.0
  %v2094 = vmax.f32 %v2084, 0.0
  %v2095 = vmax.f32 %v2086, 0.0
  %v2096 = vmax.f32 %v2045, 0.0
  %v2097 = vmax.f32 %v2047, 0.0
  %v2098 = vmax.f32 %v2088, 0.0
  %v2099 = vmax.f32 %v2090, 0.0
  %v2100 = vpack.c.bf16 %v2096, %v2092
  %v2101 = vpack.c.bf16 %v2097, %v2093
  %v2102 = vpack.c.bf16 %v2098, %v2094
  %v2103 = vpack.c.bf16 %v2099, %v2095
  %v2104 = vld [vmem:[%s8] sm:$0xff]
  %v2105 = vld [vmem:[%s8 + $0x8] sm:$0xff]
  %v2106 = vld [vmem:[%s8 + $0x10] sm:$0xff]
  %v2107 = vld [vmem:[%s8 + $0x18] sm:$0xf]
  %v2108 = vld [vmem:[%s8 + $0x1c] sm:$0xff]
  %v2109 = vld [vmem:[%s8 + $0x24] sm:$0xff]
  %v2110 = vld [vmem:[%s8 + $0x2c] sm:$0xff]
  %v2111 = vld [vmem:[%s8 + $0x34] sm:$0xf]
  %v2112 = vld [vmem:[%s8 + $0x38] sm:$0xff]
  %v2113 = vld [vmem:[%s8 + $0x40] sm:$0xff]
  %v2114 = vld [vmem:[%s8 + $0x48] sm:$0xff]
  %v2115 = vld [vmem:[%s8 + $0x50] sm:$0xf]
  %v2116 = vld [vmem:[%s8 + $0x54] sm:$0xff]
  %v2117 = vld [vmem:[%s8 + $0x5c] sm:$0xff]
  %v2118 = vld [vmem:[%s8 + $0x64] sm:$0xff]
  %v2119 = vld [vmem:[%s8 + $0x6c] sm:$0xf]
  %v2120 = vld [vmem:[%s8 + $0x70] sm:$0xff]
  %v2121 = vld [vmem:[%s8 + $0x78] sm:$0xff]
  %v2122 = vld [vmem:[%s8 + $0x80] sm:$0xff]
  %v2123 = vld [vmem:[%s8 + $0x88] sm:$0xf]
  %v2124 = vld [vmem:[%s8 + $0x8c] sm:$0xff]
  %v2125 = vld [vmem:[%s8 + $0x94] sm:$0xff]
  %v2126 = vld [vmem:[%s8 + $0x9c] sm:$0xff]
  %v2127 = vld [vmem:[%s8 + $0xa4] sm:$0xf]
  %v2128 = vld [vmem:[%s8 + $0xa8] sm:$0xff]
  %v2129 = vld [vmem:[%s8 + $0xb0] sm:$0xff]
  %v2130 = vld [vmem:[%s8 + $0xb8] sm:$0xff]
  %v2131 = vld [vmem:[%s8 + $0xc0] sm:$0xf]
  %v2132 = vld [vmem:[%s8 + $0xc4] sm:$0xff]
  %v2133 = vld [vmem:[%s8 + $0xcc] sm:$0xff]
  %v2134 = vld [vmem:[%s8 + $0xd4] sm:$0xff]
  %v2135 = vld [vmem:[%s8 + $0xdc] sm:$0xf]
  %v2136 = vld [vmem:[%s8 + $0xe0] sm:$0xff]
  %v2137 = vld [vmem:[%s8 + $0xe8] sm:$0xff]
  %v2138 = vld [vmem:[%s8 + $0xf0] sm:$0xff]
  %v2139 = vld [vmem:[%s8 + $0xf8] sm:$0xf]
  %v2140 = vld [vmem:[%s8 + $0xfc] sm:$0xff]
  %v2141 = vld [vmem:[%s8 + $0x104] sm:$0xff]
  %v2142 = vld [vmem:[%s8 + $0x10c] sm:$0xff]
  %v2143 = vld [vmem:[%s8 + $0x114] sm:$0xf]
  %v2144 = vld [vmem:[%s8 + $0x118] sm:$0xff]
  %v2145 = vld [vmem:[%s8 + $0x120] sm:$0xff]
  %v2146 = vld [vmem:[%s8 + $0x128] sm:$0xff]
  %v2147 = vld [vmem:[%s8 + $0x130] sm:$0xf]
  %v2148 = vld [vmem:[%s8 + $0x134] sm:$0xff]
  %v2149 = vld [vmem:[%s8 + $0x13c] sm:$0xff]
  %v2150 = vld [vmem:[%s8 + $0x144] sm:$0xff]
  %v2151 = vld [vmem:[%s8 + $0x14c] sm:$0xf]
  %v2152 = vld [vmem:[%s8 + $0x150] sm:$0xff]
  %v2153 = vld [vmem:[%s8 + $0x158] sm:$0xff]
  %v2154 = vld [vmem:[%s8 + $0x160] sm:$0xff]
  %v2155 = vld [vmem:[%s8 + $0x168] sm:$0xf]
  %v2156 = vld [vmem:[%s8 + $0x16c] sm:$0xff]
  %v2157 = vld [vmem:[%s8 + $0x174] sm:$0xff]
  %v2158 = vld [vmem:[%s8 + $0x17c] sm:$0xff]
  %v2159 = vld [vmem:[%s8 + $0x184] sm:$0xf]
  %v2160 = vld [vmem:[%s8 + $0x188] sm:$0xff]
  %v2161 = vld [vmem:[%s8 + $0x190] sm:$0xff]
  %v2162 = vld [vmem:[%s8 + $0x198] sm:$0xff]
  %v2163 = vld [vmem:[%s8 + $0x1a0] sm:$0xf]
  %v2164 = vld [vmem:[%s8 + $0x1a4] sm:$0xff]
  %v2165 = vld [vmem:[%s8 + $0x1ac] sm:$0xff]
  %v2166 = vld [vmem:[%s8 + $0x1b4] sm:$0xff]
  %v2167 = vld [vmem:[%s8 + $0x1bc] sm:$0xf]
  %v2168 = vld [vmem:[%s8 + $0x1c0] sm:$0xff]
  %v2169 = vld [vmem:[%s8 + $0x1c8] sm:$0xff]
  %v2170 = vld [vmem:[%s8 + $0x1d0] sm:$0xff]
  %v2171 = vld [vmem:[%s8 + $0x1d8] sm:$0xf]
  %v2172 = vld [vmem:[%s8 + $0x1dc] sm:$0xff]
  %v2173 = vld [vmem:[%s8 + $0x1e4] sm:$0xff]
  %v2174 = vld [vmem:[%s8 + $0x1ec] sm:$0xff]
  %v2175 = vld [vmem:[%s8 + $0x1f4] sm:$0xf]
  %v2176 = vld [vmem:[%s8 + $0x1f8] sm:$0xff]
  %v2177 = vld [vmem:[%s8 + $0x200] sm:$0xff]
  %v2178 = vld [vmem:[%s8 + $0x208] sm:$0xff]
  %v2179 = vld [vmem:[%s8 + $0x210] sm:$0xf]
  %v2180 = vld [vmem:[%s8 + $0x214] sm:$0xff]
  %v2181 = vld [vmem:[%s8 + $0x21c] sm:$0xff]
  %v2182 = vld [vmem:[%s8 + $0x224] sm:$0xff]
  %v2183 = vld [vmem:[%s8 + $0x22c] sm:$0xf]
  %v2184 = vld [vmem:[%s8 + $0x230] sm:$0xff]
  %v2185 = vld [vmem:[%s8 + $0x238] sm:$0xff]
  %v2186 = vld [vmem:[%s8 + $0x240] sm:$0xff]
  %v2187 = vld [vmem:[%s8 + $0x248] sm:$0xf]
  %v2188 = vld [vmem:[%s8 + $0x24c] sm:$0xff]
  %v2189 = vld [vmem:[%s8 + $0x254] sm:$0xff]
  %v2190 = vld [vmem:[%s8 + $0x25c] sm:$0xff]
  %v2191 = vld [vmem:[%s8 + $0x264] sm:$0xf]
  %v2192 = vld [vmem:[%s8 + $0x268] sm:$0xff]
  %v2193 = vld [vmem:[%s8 + $0x270] sm:$0xff]
  %v2194 = vld [vmem:[%s8 + $0x278] sm:$0xff]
  %v2195 = vld [vmem:[%s8 + $0x280] sm:$0xf]
  %v2196 = vld [vmem:[%s8 + $0x284] sm:$0xff]
  %v2197 = vld [vmem:[%s8 + $0x28c] sm:$0xff]
  %v2198 = vld [vmem:[%s8 + $0x294] sm:$0xff]
  %v2199 = vld [vmem:[%s8 + $0x29c] sm:$0xf]
  %v2200 = vld [vmem:[%s8 + $0x2a0] sm:$0xff]
  %v2201 = vld [vmem:[%s8 + $0x2a8] sm:$0xff]
  %v2202 = vld [vmem:[%s8 + $0x2b0] sm:$0xff]
  %v2203 = vld [vmem:[%s8 + $0x2b8] sm:$0xf]
  %v2204 = vld [vmem:[%s8 + $0x2bc] sm:$0xff]
  %v2205 = vld [vmem:[%s8 + $0x2c4] sm:$0xff]
  %v2206 = vld [vmem:[%s8 + $0x2cc] sm:$0xff]
  %v2207 = vld [vmem:[%s8 + $0x2d4] sm:$0xf]
  %v2208 = vld [vmem:[%s8 + $0x2d8] sm:$0xff]
  %v2209 = vld [vmem:[%s8 + $0x2e0] sm:$0xff]
  %v2210 = vld [vmem:[%s8 + $0x2e8] sm:$0xff]
  %v2211 = vld [vmem:[%s8 + $0x2f0] sm:$0xf]
  %v2212 = vld [vmem:[%s8 + $0x2f4] sm:$0xff]
  %v2213 = vld [vmem:[%s8 + $0x2fc] sm:$0xff]
  %v2214 = vld [vmem:[%s8 + $0x304] sm:$0xff]
  %v2215 = vld [vmem:[%s8 + $0x30c] sm:$0xf]
  %v2216 = vld [vmem:[%s8 + $0x310] sm:$0xff]
  %v2217 = vld [vmem:[%s8 + $0x318] sm:$0xff]
  %v2218 = vld [vmem:[%s8 + $0x320] sm:$0xff]
  %v2219 = vld [vmem:[%s8 + $0x328] sm:$0xf]
  %v2220 = vld [vmem:[%s8 + $0x32c] sm:$0xff]
  %v2221 = vld [vmem:[%s8 + $0x334] sm:$0xff]
  %v2222 = vld [vmem:[%s8 + $0x33c] sm:$0xff]
  %v2223 = vld [vmem:[%s8 + $0x344] sm:$0xf]
  %v2224 = vld [vmem:[%s8 + $0x348] sm:$0xff]
  %v2225 = vld [vmem:[%s8 + $0x350] sm:$0xff]
  %v2226 = vld [vmem:[%s8 + $0x358] sm:$0xff]
  %v2227 = vld [vmem:[%s8 + $0x360] sm:$0xf]
  %v2228 = vld [vmem:[%s8 + $0x364] sm:$0xff]
  %v2229 = vld [vmem:[%s8 + $0x36c] sm:$0xff]
  %v2230 = vld [vmem:[%s8 + $0x374] sm:$0xff]
  %v2231 = vld [vmem:[%s8 + $0x37c] sm:$0xf]
  %v2232 = vld [vmem:[%s8 + $0x380] sm:$0xff]
  %v2233 = vld [vmem:[%s8 + $0x388] sm:$0xff]
  %v2234 = vld [vmem:[%s8 + $0x390] sm:$0xff]
  %v2235 = vld [vmem:[%s8 + $0x398] sm:$0xf]
  %v2236 = vld [vmem:[%s8 + $0x39c] sm:$0xff]
  %v2237 = vld [vmem:[%s8 + $0x3a4] sm:$0xff]
  %v2238 = vld [vmem:[%s8 + $0x3ac] sm:$0xff]
  %v2239 = vld [vmem:[%s8 + $0x3b4] sm:$0xf]
  %v2240 = vld [vmem:[%s8 + $0x3b8] sm:$0xff]
  %v2241 = vld [vmem:[%s8 + $0x3c0] sm:$0xff]
  %v2242 = vld [vmem:[%s8 + $0x3c8] sm:$0xff]
  %v2243 = vld [vmem:[%s8 + $0x3d0] sm:$0xf]
  %v2244 = vld [vmem:[%s8 + $0x3d4] sm:$0xff]
  %v2245 = vld [vmem:[%s8 + $0x3dc] sm:$0xff]
  %v2246 = vld [vmem:[%s8 + $0x3e4] sm:$0xff]
  %v2247 = vld [vmem:[%s8 + $0x3ec] sm:$0xf]
  %v2248 = vld [vmem:[%s8 + $0x3f0] sm:$0xff]
  %v2249 = vld [vmem:[%s8 + $0x3f8] sm:$0xff]
  %v2250 = vld [vmem:[%s8 + $0x400] sm:$0xff]
  %v2251 = vld [vmem:[%s8 + $0x408] sm:$0xf]
  %v2252 = vld [vmem:[%s8 + $0x40c] sm:$0xff]
  %v2253 = vld [vmem:[%s8 + $0x414] sm:$0xff]
  %v2254 = vld [vmem:[%s8 + $0x41c] sm:$0xff]
  %v2255 = vld [vmem:[%s8 + $0x424] sm:$0xf]
  %v2256 = vld [vmem:[%s8 + $0x428] sm:$0xff]
  %v2257 = vld [vmem:[%s8 + $0x430] sm:$0xff]
  %v2258 = vld [vmem:[%s8 + $0x438] sm:$0xff]
  %v2259 = vld [vmem:[%s8 + $0x440] sm:$0xf]
  %v2260 = vld [vmem:[%s8 + $0x444] sm:$0xff]
  %v2261 = vld [vmem:[%s8 + $0x44c] sm:$0xff]
  %v2262 = vld [vmem:[%s8 + $0x454] sm:$0xff]
  %v2263 = vld [vmem:[%s8 + $0x45c] sm:$0xf]
  %v2264 = vld [vmem:[%s8 + $0x460] sm:$0xff]
  %v2265 = vld [vmem:[%s8 + $0x468] sm:$0xff]
  %v2266 = vld [vmem:[%s8 + $0x470] sm:$0xff]
  %v2267 = vld [vmem:[%s8 + $0x478] sm:$0xf]
  %v2268 = vld [vmem:[%s8 + $0x47c] sm:$0xff]
  %v2269 = vld [vmem:[%s8 + $0x484] sm:$0xff]
  %v2270 = vld [vmem:[%s8 + $0x48c] sm:$0xff]
  %v2271 = vld [vmem:[%s8 + $0x494] sm:$0xf]
  %v2272 = vld [vmem:[%s8 + $0x498] sm:$0xff]
  %v2273 = vld [vmem:[%s8 + $0x4a0] sm:$0xff]
  %v2274 = vld [vmem:[%s8 + $0x4a8] sm:$0xff]
  %v2275 = vld [vmem:[%s8 + $0x4b0] sm:$0xf]
  %v2276 = vld [vmem:[%s8 + $0x4b4] sm:$0xff]
  %v2277 = vld [vmem:[%s8 + $0x4bc] sm:$0xff]
  %v2278 = vld [vmem:[%s8 + $0x4c4] sm:$0xff]
  %v2279 = vld [vmem:[%s8 + $0x4cc] sm:$0xf]
  %v2280 = vld [vmem:[%s8 + $0x4d0] sm:$0xff]
  %v2281 = vld [vmem:[%s8 + $0x4d8] sm:$0xff]
  %v2282 = vld [vmem:[%s8 + $0x4e0] sm:$0xff]
  %v2283 = vld [vmem:[%s8 + $0x4e8] sm:$0xf]
  %v2284 = vld [vmem:[%s8 + $0x4ec] sm:$0xff]
  %v2285 = vld [vmem:[%s8 + $0x4f4] sm:$0xff]
  %v2286 = vld [vmem:[%s8 + $0x4fc] sm:$0xff]
  %v2287 = vld [vmem:[%s8 + $0x504] sm:$0xf]
  %v2288 = vld [vmem:[%s8 + $0x508] sm:$0xff]
  %v2289 = vld [vmem:[%s8 + $0x510] sm:$0xff]
  %v2290 = vld [vmem:[%s8 + $0x518] sm:$0xff]
  %v2291 = vld [vmem:[%s8 + $0x520] sm:$0xf]
  %v2292 = vld [vmem:[%s8 + $0x524] sm:$0xff]
  %v2293 = vld [vmem:[%s8 + $0x52c] sm:$0xff]
  %v2294 = vld [vmem:[%s8 + $0x534] sm:$0xff]
  %v2295 = vld [vmem:[%s8 + $0x53c] sm:$0xf]
  %v2296 = vld [vmem:[%s8 + $0x540] sm:$0xff]
  %v2297 = vld [vmem:[%s8 + $0x548] sm:$0xff]
  %v2298 = vld [vmem:[%s8 + $0x550] sm:$0xff]
  %v2299 = vld [vmem:[%s8 + $0x558] sm:$0xf]
  %v2300 = vld [vmem:[%s8 + $0x55c] sm:$0xff]
  %v2301 = vld [vmem:[%s8 + $0x564] sm:$0xff]
  %v2302 = vld [vmem:[%s8 + $0x56c] sm:$0xff]
  %v2303 = vld [vmem:[%s8 + $0x574] sm:$0xf]
  %v2304 = vld [vmem:[%s9] sm:$0x7f]
  %v2306 = vlaneseq
  %v2307 = vshrl.u32 %v2306, 7
  %v2308 = vsub.s32 0, %v2307
  %v2309 = vrot.slane %v2304, %v2308
  %v2310 = vlaneseq
  %v2311 = vshrl.u32 %v2310, 7
  %v2312 = vsub.s32 1, %v2311
  %v2313 = vrot.slane %v2304, %v2312
  %v2314 = vlaneseq
  %v2315 = vshrl.u32 %v2314, 7
  %v2316 = vsub.s32 2, %v2315
  %v2317 = vrot.slane %v2304, %v2316
  %v2318 = vlaneseq
  %v2319 = vshrl.u32 %v2318, 7
  %v2320 = vsub.s32 3, %v2319
  %v2321 = vrot.slane %v2304, %v2320
  %v2322 = vlaneseq
  %v2323 = vshrl.u32 %v2322, 7
  %v2324 = vsub.s32 4, %v2323
  %v2325 = vrot.slane %v2304, %v2324
  %v2326 = vlaneseq
  %v2327 = vshrl.u32 %v2326, 7
  %v2328 = vsub.s32 5, %v2327
  %v2329 = vrot.slane %v2304, %v2328
  %v2330 = vlaneseq
  %v2331 = vshrl.u32 %v2330, 7
  %v2332 = vsub.s32 6, %v2331
  %v2333 = vrot.slane %v2304, %v2332
  %v2541 = vunpack.c.l.b16 %v2104
  %v2542 = vunpack.c.h.b16 %v2104
  %v2543 = vunpack.c.l.b16 %v2105
  %v2544 = vunpack.c.h.b16 %v2105
  %v2545 = vunpack.c.l.b16 %v2106
  %v2546 = vunpack.c.h.b16 %v2106
  %v2547 = vunpack.c.l.b16 %v2107
  %v2548 = vunpack.c.l.b16 %v2108
  %v2549 = vunpack.c.h.b16 %v2108
  %v2550 = vunpack.c.l.b16 %v2109
  %v2551 = vunpack.c.h.b16 %v2109
  %v2552 = vunpack.c.l.b16 %v2110
  %v2553 = vunpack.c.h.b16 %v2110
  %v2554 = vunpack.c.l.b16 %v2111
  %v2555 = vunpack.c.l.b16 %v2112
  %v2556 = vunpack.c.h.b16 %v2112
  %v2557 = vunpack.c.l.b16 %v2113
  %v2558 = vunpack.c.h.b16 %v2113
  %v2559 = vunpack.c.l.b16 %v2114
  %v2560 = vunpack.c.h.b16 %v2114
  %v2561 = vunpack.c.l.b16 %v2115
  %v2562 = vunpack.c.l.b16 %v2116
  %v2563 = vunpack.c.h.b16 %v2116
  %v2564 = vunpack.c.l.b16 %v2117
  %v2565 = vunpack.c.h.b16 %v2117
  %v2566 = vunpack.c.l.b16 %v2118
  %v2567 = vunpack.c.h.b16 %v2118
  %v2568 = vunpack.c.l.b16 %v2119
  %v2569 = vunpack.c.l.b16 %v2120
  %v2570 = vunpack.c.h.b16 %v2120
  %v2571 = vunpack.c.l.b16 %v2121
  %v2572 = vunpack.c.h.b16 %v2121
  %v2573 = vunpack.c.l.b16 %v2122
  %v2574 = vunpack.c.h.b16 %v2122
  %v2575 = vunpack.c.l.b16 %v2123
  %v2576 = vunpack.c.l.b16 %v2124
  %v2577 = vunpack.c.h.b16 %v2124
  %v2578 = vunpack.c.l.b16 %v2125
  %v2579 = vunpack.c.h.b16 %v2125
  %v2580 = vunpack.c.l.b16 %v2126
  %v2581 = vunpack.c.h.b16 %v2126
  %v2582 = vunpack.c.l.b16 %v2127
  %v2583 = vunpack.c.l.b16 %v2128
  %v2584 = vunpack.c.h.b16 %v2128
  %v2585 = vunpack.c.l.b16 %v2129
  %v2586 = vunpack.c.h.b16 %v2129
  %v2587 = vunpack.c.l.b16 %v2130
  %v2588 = vunpack.c.h.b16 %v2130
  %v2589 = vunpack.c.l.b16 %v2131
  %v2590 = vunpack.c.l.b16 %v2132
  %v2591 = vunpack.c.h.b16 %v2132
  %v2592 = vunpack.c.l.b16 %v2133
  %v2593 = vunpack.c.h.b16 %v2133
  %v2594 = vunpack.c.l.b16 %v2134
  %v2595 = vunpack.c.h.b16 %v2134
  %v2596 = vunpack.c.l.b16 %v2135
  %v2597 = vunpack.c.l.b16 %v2136
  %v2598 = vunpack.c.h.b16 %v2136
  %v2599 = vunpack.c.l.b16 %v2137
  %v2600 = vunpack.c.h.b16 %v2137
  %v2601 = vunpack.c.l.b16 %v2138
  %v2602 = vunpack.c.h.b16 %v2138
  %v2603 = vunpack.c.l.b16 %v2139
  %v2604 = vunpack.c.l.b16 %v2140
  %v2605 = vunpack.c.h.b16 %v2140
  %v2606 = vunpack.c.l.b16 %v2141
  %v2607 = vunpack.c.h.b16 %v2141
  %v2608 = vunpack.c.l.b16 %v2142
  %v2609 = vunpack.c.h.b16 %v2142
  %v2610 = vunpack.c.l.b16 %v2143
  %v2611 = vunpack.c.l.b16 %v2144
  %v2612 = vunpack.c.h.b16 %v2144
  %v2613 = vunpack.c.l.b16 %v2145
  %v2614 = vunpack.c.h.b16 %v2145
  %v2615 = vunpack.c.l.b16 %v2146
  %v2616 = vunpack.c.h.b16 %v2146
  %v2617 = vunpack.c.l.b16 %v2147
  %v2618 = vunpack.c.l.b16 %v2148
  %v2619 = vunpack.c.h.b16 %v2148
  %v2620 = vunpack.c.l.b16 %v2149
  %v2621 = vunpack.c.h.b16 %v2149
  %v2622 = vunpack.c.l.b16 %v2150
  %v2623 = vunpack.c.h.b16 %v2150
  %v2624 = vunpack.c.l.b16 %v2151
  %v2625 = vunpack.c.l.b16 %v2152
  %v2626 = vunpack.c.h.b16 %v2152
  %v2627 = vunpack.c.l.b16 %v2153
  %v2628 = vunpack.c.h.b16 %v2153
  %v2629 = vunpack.c.l.b16 %v2154
  %v2630 = vunpack.c.h.b16 %v2154
  %v2631 = vunpack.c.l.b16 %v2155
  %v2632 = vunpack.c.l.b16 %v2156
  %v2633 = vunpack.c.h.b16 %v2156
  %v2634 = vunpack.c.l.b16 %v2157
  %v2635 = vunpack.c.h.b16 %v2157
  %v2636 = vunpack.c.l.b16 %v2158
  %v2637 = vunpack.c.h.b16 %v2158
  %v2638 = vunpack.c.l.b16 %v2159
  %v2639 = vunpack.c.l.b16 %v2160
  %v2640 = vunpack.c.h.b16 %v2160
  %v2641 = vunpack.c.l.b16 %v2161
  %v2642 = vunpack.c.h.b16 %v2161
  %v2643 = vunpack.c.l.b16 %v2162
  %v2644 = vunpack.c.h.b16 %v2162
  %v2645 = vunpack.c.l.b16 %v2163
  %v2646 = vunpack.c.l.b16 %v2164
  %v2647 = vunpack.c.h.b16 %v2164
  %v2648 = vunpack.c.l.b16 %v2165
  %v2649 = vunpack.c.h.b16 %v2165
  %v2650 = vunpack.c.l.b16 %v2166
  %v2651 = vunpack.c.h.b16 %v2166
  %v2652 = vunpack.c.l.b16 %v2167
  %v2653 = vunpack.c.l.b16 %v2168
  %v2654 = vunpack.c.h.b16 %v2168
  %v2655 = vunpack.c.l.b16 %v2169
  %v2656 = vunpack.c.h.b16 %v2169
  %v2657 = vunpack.c.l.b16 %v2170
  %v2658 = vunpack.c.h.b16 %v2170
  %v2659 = vunpack.c.l.b16 %v2171
  %v2660 = vunpack.c.l.b16 %v2172
  %v2661 = vunpack.c.h.b16 %v2172
  %v2662 = vunpack.c.l.b16 %v2173
  %v2663 = vunpack.c.h.b16 %v2173
  %v2664 = vunpack.c.l.b16 %v2174
  %v2665 = vunpack.c.h.b16 %v2174
  %v2666 = vunpack.c.l.b16 %v2175
  %v2667 = vunpack.c.l.b16 %v2176
  %v2668 = vunpack.c.h.b16 %v2176
  %v2669 = vunpack.c.l.b16 %v2177
  %v2670 = vunpack.c.h.b16 %v2177
  %v2671 = vunpack.c.l.b16 %v2178
  %v2672 = vunpack.c.h.b16 %v2178
  %v2673 = vunpack.c.l.b16 %v2179
  %v2674 = vunpack.c.l.b16 %v2180
  %v2675 = vunpack.c.h.b16 %v2180
  %v2676 = vunpack.c.l.b16 %v2181
  %v2677 = vunpack.c.h.b16 %v2181
  %v2678 = vunpack.c.l.b16 %v2182
  %v2679 = vunpack.c.h.b16 %v2182
  %v2680 = vunpack.c.l.b16 %v2183
  %v2681 = vunpack.c.l.b16 %v2184
  %v2682 = vunpack.c.h.b16 %v2184
  %v2683 = vunpack.c.l.b16 %v2185
  %v2684 = vunpack.c.h.b16 %v2185
  %v2685 = vunpack.c.l.b16 %v2186
  %v2686 = vunpack.c.h.b16 %v2186
  %v2687 = vunpack.c.l.b16 %v2187
  %v2688 = vunpack.c.l.b16 %v2188
  %v2689 = vunpack.c.h.b16 %v2188
  %v2690 = vunpack.c.l.b16 %v2189
  %v2691 = vunpack.c.h.b16 %v2189
  %v2692 = vunpack.c.l.b16 %v2190
  %v2693 = vunpack.c.h.b16 %v2190
  %v2694 = vunpack.c.l.b16 %v2191
  %v2695 = vunpack.c.l.b16 %v2192
  %v2696 = vunpack.c.h.b16 %v2192
  %v2697 = vunpack.c.l.b16 %v2193
  %v2698 = vunpack.c.h.b16 %v2193
  %v2699 = vunpack.c.l.b16 %v2194
  %v2700 = vunpack.c.h.b16 %v2194
  %v2701 = vunpack.c.l.b16 %v2195
  %v2702 = vunpack.c.l.b16 %v2196
  %v2703 = vunpack.c.h.b16 %v2196
  %v2704 = vunpack.c.l.b16 %v2197
  %v2705 = vunpack.c.h.b16 %v2197
  %v2706 = vunpack.c.l.b16 %v2198
  %v2707 = vunpack.c.h.b16 %v2198
  %v2708 = vunpack.c.l.b16 %v2199
  %v2709 = vunpack.c.l.b16 %v2200
  %v2710 = vunpack.c.h.b16 %v2200
  %v2711 = vunpack.c.l.b16 %v2201
  %v2712 = vunpack.c.h.b16 %v2201
  %v2713 = vunpack.c.l.b16 %v2202
  %v2714 = vunpack.c.h.b16 %v2202
  %v2715 = vunpack.c.l.b16 %v2203
  %v2716 = vunpack.c.l.b16 %v2204
  %v2717 = vunpack.c.h.b16 %v2204
  %v2718 = vunpack.c.l.b16 %v2205
  %v2719 = vunpack.c.h.b16 %v2205
  %v2720 = vunpack.c.l.b16 %v2206
  %v2721 = vunpack.c.h.b16 %v2206
  %v2722 = vunpack.c.l.b16 %v2207
  %v2723 = vunpack.c.l.b16 %v2208
  %v2724 = vunpack.c.h.b16 %v2208
  %v2725 = vunpack.c.l.b16 %v2209
  %v2726 = vunpack.c.h.b16 %v2209
  %v2727 = vunpack.c.l.b16 %v2210
  %v2728 = vunpack.c.h.b16 %v2210
  %v2729 = vunpack.c.l.b16 %v2211
  %v2730 = vunpack.c.l.b16 %v2212
  %v2731 = vunpack.c.h.b16 %v2212
  %v2732 = vunpack.c.l.b16 %v2213
  %v2733 = vunpack.c.h.b16 %v2213
  %v2734 = vunpack.c.l.b16 %v2214
  %v2735 = vunpack.c.h.b16 %v2214
  %v2736 = vunpack.c.l.b16 %v2215
  %v2737 = vunpack.c.l.b16 %v2216
  %v2738 = vunpack.c.h.b16 %v2216
  %v2739 = vunpack.c.l.b16 %v2217
  %v2740 = vunpack.c.h.b16 %v2217
  %v2741 = vunpack.c.l.b16 %v2218
  %v2742 = vunpack.c.h.b16 %v2218
  %v2743 = vunpack.c.l.b16 %v2219
  %v2744 = vunpack.c.l.b16 %v2220
  %v2745 = vunpack.c.h.b16 %v2220
  %v2746 = vunpack.c.l.b16 %v2221
  %v2747 = vunpack.c.h.b16 %v2221
  %v2748 = vunpack.c.l.b16 %v2222
  %v2749 = vunpack.c.h.b16 %v2222
  %v2750 = vunpack.c.l.b16 %v2223
  %v2751 = vunpack.c.l.b16 %v2224
  %v2752 = vunpack.c.h.b16 %v2224
  %v2753 = vunpack.c.l.b16 %v2225
  %v2754 = vunpack.c.h.b16 %v2225
  %v2755 = vunpack.c.l.b16 %v2226
  %v2756 = vunpack.c.h.b16 %v2226
  %v2757 = vunpack.c.l.b16 %v2227
  %v2758 = vunpack.c.l.b16 %v2228
  %v2759 = vunpack.c.h.b16 %v2228
  %v2760 = vunpack.c.l.b16 %v2229
  %v2761 = vunpack.c.h.b16 %v2229
  %v2762 = vunpack.c.l.b16 %v2230
  %v2763 = vunpack.c.h.b16 %v2230
  %v2764 = vunpack.c.l.b16 %v2231
  %v2765 = vunpack.c.l.b16 %v2232
  %v2766 = vunpack.c.h.b16 %v2232
  %v2767 = vunpack.c.l.b16 %v2233
  %v2768 = vunpack.c.h.b16 %v2233
  %v2769 = vunpack.c.l.b16 %v2234
  %v2770 = vunpack.c.h.b16 %v2234
  %v2771 = vunpack.c.l.b16 %v2235
  %v2772 = vunpack.c.l.b16 %v2236
  %v2773 = vunpack.c.h.b16 %v2236
  %v2774 = vunpack.c.l.b16 %v2237
  %v2775 = vunpack.c.h.b16 %v2237
  %v2776 = vunpack.c.l.b16 %v2238
  %v2777 = vunpack.c.h.b16 %v2238
  %v2778 = vunpack.c.l.b16 %v2239
  %v2779 = vunpack.c.l.b16 %v2240
  %v2780 = vunpack.c.h.b16 %v2240
  %v2781 = vunpack.c.l.b16 %v2241
  %v2782 = vunpack.c.h.b16 %v2241
  %v2783 = vunpack.c.l.b16 %v2242
  %v2784 = vunpack.c.h.b16 %v2242
  %v2785 = vunpack.c.l.b16 %v2243
  %v2786 = vunpack.c.l.b16 %v2244
  %v2787 = vunpack.c.h.b16 %v2244
  %v2788 = vunpack.c.l.b16 %v2245
  %v2789 = vunpack.c.h.b16 %v2245
  %v2790 = vunpack.c.l.b16 %v2246
  %v2791 = vunpack.c.h.b16 %v2246
  %v2792 = vunpack.c.l.b16 %v2247
  %v2793 = vunpack.c.l.b16 %v2248
  %v2794 = vunpack.c.h.b16 %v2248
  %v2795 = vunpack.c.l.b16 %v2249
  %v2796 = vunpack.c.h.b16 %v2249
  %v2797 = vunpack.c.l.b16 %v2250
  %v2798 = vunpack.c.h.b16 %v2250
  %v2799 = vunpack.c.l.b16 %v2251
  %v2800 = vunpack.c.l.b16 %v2252
  %v2801 = vunpack.c.h.b16 %v2252
  %v2802 = vunpack.c.l.b16 %v2253
  %v2803 = vunpack.c.h.b16 %v2253
  %v2804 = vunpack.c.l.b16 %v2254
  %v2805 = vunpack.c.h.b16 %v2254
  %v2806 = vunpack.c.l.b16 %v2255
  %v2807 = vunpack.c.l.b16 %v2256
  %v2808 = vunpack.c.h.b16 %v2256
  %v2809 = vunpack.c.l.b16 %v2257
  %v2810 = vunpack.c.h.b16 %v2257
  %v2811 = vunpack.c.l.b16 %v2258
  %v2812 = vunpack.c.h.b16 %v2258
  %v2813 = vunpack.c.l.b16 %v2259
  %v2814 = vunpack.c.l.b16 %v2260
  %v2815 = vunpack.c.h.b16 %v2260
  %v2816 = vunpack.c.l.b16 %v2261
  %v2817 = vunpack.c.h.b16 %v2261
  %v2818 = vunpack.c.l.b16 %v2262
  %v2819 = vunpack.c.h.b16 %v2262
  %v2820 = vunpack.c.l.b16 %v2263
  %v2821 = vunpack.c.l.b16 %v2264
  %v2822 = vunpack.c.h.b16 %v2264
  %v2823 = vunpack.c.l.b16 %v2265
  %v2824 = vunpack.c.h.b16 %v2265
  %v2825 = vunpack.c.l.b16 %v2266
  %v2826 = vunpack.c.h.b16 %v2266
  %v2827 = vunpack.c.l.b16 %v2267
  %v2828 = vunpack.c.l.b16 %v2268
  %v2829 = vunpack.c.h.b16 %v2268
  %v2830 = vunpack.c.l.b16 %v2269
  %v2831 = vunpack.c.h.b16 %v2269
  %v2832 = vunpack.c.l.b16 %v2270
  %v2833 = vunpack.c.h.b16 %v2270
  %v2834 = vunpack.c.l.b16 %v2271
  %v2835 = vunpack.c.l.b16 %v2272
  %v2836 = vunpack.c.h.b16 %v2272
  %v2837 = vunpack.c.l.b16 %v2273
  %v2838 = vunpack.c.h.b16 %v2273
  %v2839 = vunpack.c.l.b16 %v2274
  %v2840 = vunpack.c.h.b16 %v2274
  %v2841 = vunpack.c.l.b16 %v2275
  %v2842 = vunpack.c.l.b16 %v2276
  %v2843 = vunpack.c.h.b16 %v2276
  %v2844 = vunpack.c.l.b16 %v2277
  %v2845 = vunpack.c.h.b16 %v2277
  %v2846 = vunpack.c.l.b16 %v2278
  %v2847 = vunpack.c.h.b16 %v2278
  %v2848 = vunpack.c.l.b16 %v2279
  %v2849 = vunpack.c.l.b16 %v2280
  %v2850 = vunpack.c.h.b16 %v2280
  %v2851 = vunpack.c.l.b16 %v2281
  %v2852 = vunpack.c.h.b16 %v2281
  %v2853 = vunpack.c.l.b16 %v2282
  %v2854 = vunpack.c.h.b16 %v2282
  %v2855 = vunpack.c.l.b16 %v2283
  %v2856 = vunpack.c.l.b16 %v2284
  %v2857 = vunpack.c.h.b16 %v2284
  %v2858 = vunpack.c.l.b16 %v2285
  %v2859 = vunpack.c.h.b16 %v2285
  %v2860 = vunpack.c.l.b16 %v2286
  %v2861 = vunpack.c.h.b16 %v2286
  %v2862 = vunpack.c.l.b16 %v2287
  %v2863 = vunpack.c.l.b16 %v2288
  %v2864 = vunpack.c.h.b16 %v2288
  %v2865 = vunpack.c.l.b16 %v2289
  %v2866 = vunpack.c.h.b16 %v2289
  %v2867 = vunpack.c.l.b16 %v2290
  %v2868 = vunpack.c.h.b16 %v2290
  %v2869 = vunpack.c.l.b16 %v2291
  %v2870 = vunpack.c.l.b16 %v2292
  %v2871 = vunpack.c.h.b16 %v2292
  %v2872 = vunpack.c.l.b16 %v2293
  %v2873 = vunpack.c.h.b16 %v2293
  %v2874 = vunpack.c.l.b16 %v2294
  %v2875 = vunpack.c.h.b16 %v2294
  %v2876 = vunpack.c.l.b16 %v2295
  %v2877 = vunpack.c.l.b16 %v2296
  %v2878 = vunpack.c.h.b16 %v2296
  %v2879 = vunpack.c.l.b16 %v2297
  %v2880 = vunpack.c.h.b16 %v2297
  %v2881 = vunpack.c.l.b16 %v2298
  %v2882 = vunpack.c.h.b16 %v2298
  %v2883 = vunpack.c.l.b16 %v2299
  %v2884 = vunpack.c.l.b16 %v2300
  %v2885 = vunpack.c.h.b16 %v2300
  %v2886 = vunpack.c.l.b16 %v2301
  %v2887 = vunpack.c.h.b16 %v2301
  %v2888 = vunpack.c.l.b16 %v2302
  %v2889 = vunpack.c.h.b16 %v2302
  %v2890 = vunpack.c.l.b16 %v2303
  %v2891 = vpack.c.b16 %v2548, %v2541
  %v2892 = vpack.c.b16 %v2549, %v2542
  %v2893 = vpack.c.b16 %v2550, %v2543
  %v2894 = vpack.c.b16 %v2551, %v2544
  %v2895 = vpack.c.b16 %v2552, %v2545
  %v2896 = vpack.c.b16 %v2553, %v2546
  %v2897 = vpack.c.b16 %v2554, %v2547
  %v2898 = vpack.c.b16 %v2562, %v2555
  %v2899 = vpack.c.b16 %v2563, %v2556
  %v2900 = vpack.c.b16 %v2564, %v2557
  %v2901 = vpack.c.b16 %v2565, %v2558
  %v2902 = vpack.c.b16 %v2566, %v2559
  %v2903 = vpack.c.b16 %v2567, %v2560
  %v2904 = vpack.c.b16 %v2568, %v2561
  %v2905 = vpack.c.b16 %v2576, %v2569
  %v2906 = vpack.c.b16 %v2577, %v2570
  %v2907 = vpack.c.b16 %v2578, %v2571
  %v2908 = vpack.c.b16 %v2579, %v2572
  %v2909 = vpack.c.b16 %v2580, %v2573
  %v2910 = vpack.c.b16 %v2581, %v2574
  %v2911 = vpack.c.b16 %v2582, %v2575
  %v2912 = vpack.c.b16 %v2590, %v2583
  %v2913 = vpack.c.b16 %v2591, %v2584
  %v2914 = vpack.c.b16 %v2592, %v2585
  %v2915 = vpack.c.b16 %v2593, %v2586
  %v2916 = vpack.c.b16 %v2594, %v2587
  %v2917 = vpack.c.b16 %v2595, %v2588
  %v2918 = vpack.c.b16 %v2596, %v2589
  %v2919 = vpack.c.b16 %v2604, %v2597
  %v2920 = vpack.c.b16 %v2605, %v2598
  %v2921 = vpack.c.b16 %v2606, %v2599
  %v2922 = vpack.c.b16 %v2607, %v2600
  %v2923 = vpack.c.b16 %v2608, %v2601
  %v2924 = vpack.c.b16 %v2609, %v2602
  %v2925 = vpack.c.b16 %v2610, %v2603
  %v2926 = vpack.c.b16 %v2618, %v2611
  %v2927 = vpack.c.b16 %v2619, %v2612
  %v2928 = vpack.c.b16 %v2620, %v2613
  %v2929 = vpack.c.b16 %v2621, %v2614
  %v2930 = vpack.c.b16 %v2622, %v2615
  %v2931 = vpack.c.b16 %v2623, %v2616
  %v2932 = vpack.c.b16 %v2624, %v2617
  %v2933 = vpack.c.b16 %v2632, %v2625
  %v2934 = vpack.c.b16 %v2633, %v2626
  %v2935 = vpack.c.b16 %v2634, %v2627
  %v2936 = vpack.c.b16 %v2635, %v2628
  %v2937 = vpack.c.b16 %v2636, %v2629
  %v2938 = vpack.c.b16 %v2637, %v2630
  %v2939 = vpack.c.b16 %v2638, %v2631
  %v2940 = vpack.c.b16 %v2646, %v2639
  %v2941 = vpack.c.b16 %v2647, %v2640
  %v2942 = vpack.c.b16 %v2648, %v2641
  %v2943 = vpack.c.b16 %v2649, %v2642
  %v2944 = vpack.c.b16 %v2650, %v2643
  %v2945 = vpack.c.b16 %v2651, %v2644
  %v2946 = vpack.c.b16 %v2652, %v2645
  %v2947 = vpack.c.b16 %v2660, %v2653
  %v2948 = vpack.c.b16 %v2661, %v2654
  %v2949 = vpack.c.b16 %v2662, %v2655
  %v2950 = vpack.c.b16 %v2663, %v2656
  %v2951 = vpack.c.b16 %v2664, %v2657
  %v2952 = vpack.c.b16 %v2665, %v2658
  %v2953 = vpack.c.b16 %v2666, %v2659
  %v2954 = vpack.c.b16 %v2674, %v2667
  %v2955 = vpack.c.b16 %v2675, %v2668
  %v2956 = vpack.c.b16 %v2676, %v2669
  %v2957 = vpack.c.b16 %v2677, %v2670
  %v2958 = vpack.c.b16 %v2678, %v2671
  %v2959 = vpack.c.b16 %v2679, %v2672
  %v2960 = vpack.c.b16 %v2680, %v2673
  %v2961 = vpack.c.b16 %v2688, %v2681
  %v2962 = vpack.c.b16 %v2689, %v2682
  %v2963 = vpack.c.b16 %v2690, %v2683
  %v2964 = vpack.c.b16 %v2691, %v2684
  %v2965 = vpack.c.b16 %v2692, %v2685
  %v2966 = vpack.c.b16 %v2693, %v2686
  %v2967 = vpack.c.b16 %v2694, %v2687
  %v2968 = vpack.c.b16 %v2702, %v2695
  %v2969 = vpack.c.b16 %v2703, %v2696
  %v2970 = vpack.c.b16 %v2704, %v2697
  %v2971 = vpack.c.b16 %v2705, %v2698
  %v2972 = vpack.c.b16 %v2706, %v2699
  %v2973 = vpack.c.b16 %v2707, %v2700
  %v2974 = vpack.c.b16 %v2708, %v2701
  %v2975 = vpack.c.b16 %v2716, %v2709
  %v2976 = vpack.c.b16 %v2717, %v2710
  %v2977 = vpack.c.b16 %v2718, %v2711
  %v2978 = vpack.c.b16 %v2719, %v2712
  %v2979 = vpack.c.b16 %v2720, %v2713
  %v2980 = vpack.c.b16 %v2721, %v2714
  %v2981 = vpack.c.b16 %v2722, %v2715
  %v2982 = vpack.c.b16 %v2730, %v2723
  %v2983 = vpack.c.b16 %v2731, %v2724
  %v2984 = vpack.c.b16 %v2732, %v2725
  %v2985 = vpack.c.b16 %v2733, %v2726
  %v2986 = vpack.c.b16 %v2734, %v2727
  %v2987 = vpack.c.b16 %v2735, %v2728
  %v2988 = vpack.c.b16 %v2736, %v2729
  %v2989 = vpack.c.b16 %v2744, %v2737
  %v2990 = vpack.c.b16 %v2745, %v2738
  %v2991 = vpack.c.b16 %v2746, %v2739
  %v2992 = vpack.c.b16 %v2747, %v2740
  %v2993 = vpack.c.b16 %v2748, %v2741
  %v2994 = vpack.c.b16 %v2749, %v2742
  %v2995 = vpack.c.b16 %v2750, %v2743
  %v2996 = vpack.c.b16 %v2758, %v2751
  %v2997 = vpack.c.b16 %v2759, %v2752
  %v2998 = vpack.c.b16 %v2760, %v2753
  %v2999 = vpack.c.b16 %v2761, %v2754
  %v3000 = vpack.c.b16 %v2762, %v2755
  %v3001 = vpack.c.b16 %v2763, %v2756
  %v3002 = vpack.c.b16 %v2764, %v2757
  %v3003 = vpack.c.b16 %v2772, %v2765
  %v3004 = vpack.c.b16 %v2773, %v2766
  %v3005 = vpack.c.b16 %v2774, %v2767
  %v3006 = vpack.c.b16 %v2775, %v2768
  %v3007 = vpack.c.b16 %v2776, %v2769
  %v3008 = vpack.c.b16 %v2777, %v2770
  %v3009 = vpack.c.b16 %v2778, %v2771
  %v3010 = vpack.c.b16 %v2786, %v2779
  %v3011 = vpack.c.b16 %v2787, %v2780
  %v3012 = vpack.c.b16 %v2788, %v2781
  %v3013 = vpack.c.b16 %v2789, %v2782
  %v3014 = vpack.c.b16 %v2790, %v2783
  %v3015 = vpack.c.b16 %v2791, %v2784
  %v3016 = vpack.c.b16 %v2792, %v2785
  %v3017 = vpack.c.b16 %v2800, %v2793
  %v3018 = vpack.c.b16 %v2801, %v2794
  %v3019 = vpack.c.b16 %v2802, %v2795
  %v3020 = vpack.c.b16 %v2803, %v2796
  %v3021 = vpack.c.b16 %v2804, %v2797
  %v3022 = vpack.c.b16 %v2805, %v2798
  %v3023 = vpack.c.b16 %v2806, %v2799
  %v3024 = vpack.c.b16 %v2814, %v2807
  %v3025 = vpack.c.b16 %v2815, %v2808
  %v3026 = vpack.c.b16 %v2816, %v2809
  %v3027 = vpack.c.b16 %v2817, %v2810
  %v3028 = vpack.c.b16 %v2818, %v2811
  %v3029 = vpack.c.b16 %v2819, %v2812
  %v3030 = vpack.c.b16 %v2820, %v2813
  %v3031 = vpack.c.b16 %v2828, %v2821
  %v3032 = vpack.c.b16 %v2829, %v2822
  %v3033 = vpack.c.b16 %v2830, %v2823
  %v3034 = vpack.c.b16 %v2831, %v2824
  %v3035 = vpack.c.b16 %v2832, %v2825
  %v3036 = vpack.c.b16 %v2833, %v2826
  %v3037 = vpack.c.b16 %v2834, %v2827
  %v3038 = vpack.c.b16 %v2842, %v2835
  %v3039 = vpack.c.b16 %v2843, %v2836
  %v3040 = vpack.c.b16 %v2844, %v2837
  %v3041 = vpack.c.b16 %v2845, %v2838
  %v3042 = vpack.c.b16 %v2846, %v2839
  %v3043 = vpack.c.b16 %v2847, %v2840
  %v3044 = vpack.c.b16 %v2848, %v2841
  %v3045 = vpack.c.b16 %v2856, %v2849
  %v3046 = vpack.c.b16 %v2857, %v2850
  %v3047 = vpack.c.b16 %v2858, %v2851
  %v3048 = vpack.c.b16 %v2859, %v2852
  %v3049 = vpack.c.b16 %v2860, %v2853
  %v3050 = vpack.c.b16 %v2861, %v2854
  %v3051 = vpack.c.b16 %v2862, %v2855
  %v3052 = vpack.c.b16 %v2870, %v2863
  %v3053 = vpack.c.b16 %v2871, %v2864
  %v3054 = vpack.c.b16 %v2872, %v2865
  %v3055 = vpack.c.b16 %v2873, %v2866
  %v3056 = vpack.c.b16 %v2874, %v2867
  %v3057 = vpack.c.b16 %v2875, %v2868
  %v3058 = vpack.c.b16 %v2876, %v2869
  %v3059 = vpack.c.b16 %v2884, %v2877
  %v3060 = vpack.c.b16 %v2885, %v2878
  %v3061 = vpack.c.b16 %v2886, %v2879
  %v3062 = vpack.c.b16 %v2887, %v2880
  %v3063 = vpack.c.b16 %v2888, %v2881
  %v3064 = vpack.c.b16 %v2889, %v2882
  %v3065 = vpack.c.b16 %v2890, %v2883
  %v3242 = vsel %vm1258, %v2103, 0
  %3244 = vmatprep.subr.bf16.mxu0 %v2941
  %3245 = vmatpush1.bf16.msra.mxu0 %v2940
  %3246 = vmatprep.subr.bf16.mxu0 %v2934
  %3247 = vmatpush1.bf16.msra.mxu0 %v2933
  %3248 = vmatprep.subr.bf16.mxu0 %v2927
  %3249 = vmatpush1.bf16.msra.mxu0 %v2926
  %3250 = vmatprep.subr.bf16.mxu0 %v2920
  %3251 = vmatpush1.bf16.msra.mxu0 %v2919
  %3252 = vmatprep.subr.bf16.mxu0 %v2913
  %3253 = vmatpush1.bf16.msra.mxu0 %v2912
  %3254 = vmatprep.subr.bf16.mxu0 %v2906
  %3255 = vmatpush1.bf16.msra.mxu0 %v2905
  %3256 = vmatprep.subr.bf16.mxu0 %v2899
  %3257 = vmatpush1.bf16.msra.mxu0 %v2898
  %3258 = vmatprep.subr.bf16.mxu0 %v2892
  %3259 = vmatpush1.bf16.msra.mxu0 %v2891
  %3260 = vmatprep.subr.bf16.mxu0 %v2997
  %3261 = vmatpush2.bf16.msra.mxu0 %v2996
  %3262 = vmatprep.subr.bf16.mxu0 %v2990
  %3263 = vmatpush2.bf16.msra.mxu0 %v2989
  %3264 = vmatprep.subr.bf16.mxu0 %v2983
  %3265 = vmatpush2.bf16.msra.mxu0 %v2982
  %3266 = vmatprep.subr.bf16.mxu0 %v2976
  %3267 = vmatpush2.bf16.msra.mxu0 %v2975
  %3268 = vmatprep.subr.bf16.mxu0 %v2969
  %3269 = vmatpush2.bf16.msra.mxu0 %v2968
  %3270 = vmatprep.subr.bf16.mxu0 %v2962
  %3271 = vmatpush2.bf16.msra.mxu0 %v2961
  %3272 = vmatprep.subr.bf16.mxu0 %v2955
  %3273 = vmatpush2.bf16.msra.mxu0 %v2954
  %3274 = vmatprep.subr.bf16.mxu0 %v2948
  %3275 = vmatpush2.bf16.msra.mxu0 %v2947
  %3276 = vmatprep.mubr.bf16.mxu0 %v2101
  %3277 = vmatmul.mubr.bf16.gmra.mxu0 %v2100
  %v3278 = vpop.f32.mrf.mxu0
  %v3279 = vadd.f32 %v2309, %v3278
  %v3280 = vpop.f32.mrf.mxu0
  %v3281 = vadd.f32 %v2313, %v3280
  %v3282 = vpop.f32.mrf.mxu0
  %v3283 = vadd.f32 %v2309, %v3282
  %v3284 = vpop.f32.mrf.mxu0
  %v3285 = vadd.f32 %v2313, %v3284
  %3286 = vdwg.mxu0
  %3287 = vmatprep.subr.bf16.mxu0 %v3053
  %3288 = vmatpush1.bf16.msra.mxu0 %v3052
  %3289 = vmatprep.subr.bf16.mxu0 %v3046
  %3290 = vmatpush1.bf16.msra.mxu0 %v3045
  %3291 = vmatprep.subr.bf16.mxu0 %v3039
  %3292 = vmatpush1.bf16.msra.mxu0 %v3038
  %3293 = vmatprep.subr.bf16.mxu0 %v3032
  %3294 = vmatpush1.bf16.msra.mxu0 %v3031
  %3295 = vmatprep.subr.bf16.mxu0 %v3025
  %3296 = vmatpush1.bf16.msra.mxu0 %v3024
  %3297 = vmatprep.subr.bf16.mxu0 %v3018
  %3298 = vmatpush1.bf16.msra.mxu0 %v3017
  %3299 = vmatprep.subr.bf16.mxu0 %v3011
  %3300 = vmatpush1.bf16.msra.mxu0 %v3010
  %3301 = vmatprep.subr.bf16.mxu0 %v3004
  %3302 = vmatpush1.bf16.msra.mxu0 %v3003
  %3303 = vmatprep.subr.bf16.mxu0 0
  %3304 = vmatpush2.bf16.msra.mxu0 0
  %3305 = vmatprep.subr.bf16.mxu0 0
  %3306 = vmatpush2.bf16.msra.mxu0 0
  %3307 = vmatprep.subr.bf16.mxu0 0
  %3308 = vmatpush2.bf16.msra.mxu0 0
  %3309 = vmatprep.subr.bf16.mxu0 0
  %3310 = vmatpush2.bf16.msra.mxu0 0
  %3311 = vmatprep.subr.bf16.mxu0 0
  %3312 = vmatpush2.bf16.msra.mxu0 0
  %3313 = vmatprep.subr.bf16.mxu0 0
  %3314 = vmatpush2.bf16.msra.mxu0 0
  %3315 = vmatprep.subr.bf16.mxu0 0
  %3316 = vmatpush2.bf16.msra.mxu0 0
  %3317 = vmatprep.subr.bf16.mxu0 %v3060
  %3318 = vmatpush2.bf16.msra.mxu0 %v3059
  %3319 = vmatprep.mubr.bf16.mxu0 %v3242
  %3320 = vmatmul.mubr.bf16.gmra.mxu0 %v2102
  %v3321 = vpop.f32.mrf.mxu0
  %v3322 = vadd.f32 %v3279, %v3321
  %v3323 = vpop.f32.mrf.mxu0
  %v3324 = vadd.f32 %v3281, %v3323
  %v3325 = vpop.f32.mrf.mxu0
  %v3326 = vadd.f32 %v3283, %v3325
  %v3327 = vpop.f32.mrf.mxu0
  %v3328 = vadd.f32 %v3285, %v3327
  %3329 = vdwg.mxu0
  %3330 = vmatprep.subr.bf16.mxu0 %v2943
  %3331 = vmatpush1.bf16.msra.mxu0 %v2942
  %3332 = vmatprep.subr.bf16.mxu0 %v2936
  %3333 = vmatpush1.bf16.msra.mxu0 %v2935
  %3334 = vmatprep.subr.bf16.mxu0 %v2929
  %3335 = vmatpush1.bf16.msra.mxu0 %v2928
  %3336 = vmatprep.subr.bf16.mxu0 %v2922
  %3337 = vmatpush1.bf16.msra.mxu0 %v2921
  %3338 = vmatprep.subr.bf16.mxu0 %v2915
  %3339 = vmatpush1.bf16.msra.mxu0 %v2914
  %3340 = vmatprep.subr.bf16.mxu0 %v2908
  %3341 = vmatpush1.bf16.msra.mxu0 %v2907
  %3342 = vmatprep.subr.bf16.mxu0 %v2901
  %3343 = vmatpush1.bf16.msra.mxu0 %v2900
  %3344 = vmatprep.subr.bf16.mxu0 %v2894
  %3345 = vmatpush1.bf16.msra.mxu0 %v2893
  %3346 = vmatprep.subr.bf16.mxu0 %v2999
  %3347 = vmatpush2.bf16.msra.mxu0 %v2998
  %3348 = vmatprep.subr.bf16.mxu0 %v2992
  %3349 = vmatpush2.bf16.msra.mxu0 %v2991
  %3350 = vmatprep.subr.bf16.mxu0 %v2985
  %3351 = vmatpush2.bf16.msra.mxu0 %v2984
  %3352 = vmatprep.subr.bf16.mxu0 %v2978
  %3353 = vmatpush2.bf16.msra.mxu0 %v2977
  %3354 = vmatprep.subr.bf16.mxu0 %v2971
  %3355 = vmatpush2.bf16.msra.mxu0 %v2970
  %3356 = vmatprep.subr.bf16.mxu0 %v2964
  %3357 = vmatpush2.bf16.msra.mxu0 %v2963
  %3358 = vmatprep.subr.bf16.mxu0 %v2957
  %3359 = vmatpush2.bf16.msra.mxu0 %v2956
  %3360 = vmatprep.subr.bf16.mxu0 %v2950
  %3361 = vmatpush2.bf16.msra.mxu0 %v2949
  %3362 = vmatprep.mubr.bf16.mxu0 %v2101
  %3363 = vmatmul.mubr.bf16.gmra.mxu0 %v2100
  %v3364 = vpop.f32.mrf.mxu0
  %v3365 = vadd.f32 %v2317, %v3364
  %v3366 = vpop.f32.mrf.mxu0
  %v3367 = vadd.f32 %v2321, %v3366
  %v3368 = vpop.f32.mrf.mxu0
  %v3369 = vadd.f32 %v2317, %v3368
  %v3370 = vpop.f32.mrf.mxu0
  %v3371 = vadd.f32 %v2321, %v3370
  %3372 = vdwg.mxu0
  %3373 = vmatprep.subr.bf16.mxu0 %v3055
  %3374 = vmatpush1.bf16.msra.mxu0 %v3054
  %3375 = vmatprep.subr.bf16.mxu0 %v3048
  %3376 = vmatpush1.bf16.msra.mxu0 %v3047
  %3377 = vmatprep.subr.bf16.mxu0 %v3041
  %3378 = vmatpush1.bf16.msra.mxu0 %v3040
  %3379 = vmatprep.subr.bf16.mxu0 %v3034
  %3380 = vmatpush1.bf16.msra.mxu0 %v3033
  %3381 = vmatprep.subr.bf16.mxu0 %v3027
  %3382 = vmatpush1.bf16.msra.mxu0 %v3026
  %3383 = vmatprep.subr.bf16.mxu0 %v3020
  %3384 = vmatpush1.bf16.msra.mxu0 %v3019
  %3385 = vmatprep.subr.bf16.mxu0 %v3013
  %3386 = vmatpush1.bf16.msra.mxu0 %v3012
  %3387 = vmatprep.subr.bf16.mxu0 %v3006
  %3388 = vmatpush1.bf16.msra.mxu0 %v3005
  %3389 = vmatprep.subr.bf16.mxu0 0
  %3390 = vmatpush2.bf16.msra.mxu0 0
  %3391 = vmatprep.subr.bf16.mxu0 0
  %3392 = vmatpush2.bf16.msra.mxu0 0
  %3393 = vmatprep.subr.bf16.mxu0 0
  %3394 = vmatpush2.bf16.msra.mxu0 0
  %3395 = vmatprep.subr.bf16.mxu0 0
  %3396 = vmatpush2.bf16.msra.mxu0 0
  %3397 = vmatprep.subr.bf16.mxu0 0
  %3398 = vmatpush2.bf16.msra.mxu0 0
  %3399 = vmatprep.subr.bf16.mxu0 0
  %3400 = vmatpush2.bf16.msra.mxu0 0
  %3401 = vmatprep.subr.bf16.mxu0 0
  %3402 = vmatpush2.bf16.msra.mxu0 0
  %3403 = vmatprep.subr.bf16.mxu0 %v3062
  %3404 = vmatpush2.bf16.msra.mxu0 %v3061
  %3405 = vmatprep.mubr.bf16.mxu0 %v3242
  %3406 = vmatmul.mubr.bf16.gmra.mxu0 %v2102
  %v3407 = vpop.f32.mrf.mxu0
  %v3408 = vadd.f32 %v3365, %v3407
  %v3409 = vpop.f32.mrf.mxu0
  %v3410 = vadd.f32 %v3367, %v3409
  %v3411 = vpop.f32.mrf.mxu0
  %v3412 = vadd.f32 %v3369, %v3411
  %v3413 = vpop.f32.mrf.mxu0
  %v3414 = vadd.f32 %v3371, %v3413
  %3415 = vdwg.mxu0
  %3416 = vmatprep.subr.bf16.mxu0 %v2945
  %3417 = vmatpush1.bf16.msra.mxu0 %v2944
  %3418 = vmatprep.subr.bf16.mxu0 %v2938
  %3419 = vmatpush1.bf16.msra.mxu0 %v2937
  %3420 = vmatprep.subr.bf16.mxu0 %v2931
  %3421 = vmatpush1.bf16.msra.mxu0 %v2930
  %3422 = vmatprep.subr.bf16.mxu0 %v2924
  %3423 = vmatpush1.bf16.msra.mxu0 %v2923
  %3424 = vmatprep.subr.bf16.mxu0 %v2917
  %3425 = vmatpush1.bf16.msra.mxu0 %v2916
  %3426 = vmatprep.subr.bf16.mxu0 %v2910
  %3427 = vmatpush1.bf16.msra.mxu0 %v2909
  %3428 = vmatprep.subr.bf16.mxu0 %v2903
  %3429 = vmatpush1.bf16.msra.mxu0 %v2902
  %3430 = vmatprep.subr.bf16.mxu0 %v2896
  %3431 = vmatpush1.bf16.msra.mxu0 %v2895
  %3432 = vmatprep.subr.bf16.mxu0 %v3001
  %3433 = vmatpush2.bf16.msra.mxu0 %v3000
  %3434 = vmatprep.subr.bf16.mxu0 %v2994
  %3435 = vmatpush2.bf16.msra.mxu0 %v2993
  %3436 = vmatprep.subr.bf16.mxu0 %v2987
  %3437 = vmatpush2.bf16.msra.mxu0 %v2986
  %3438 = vmatprep.subr.bf16.mxu0 %v2980
  %3439 = vmatpush2.bf16.msra.mxu0 %v2979
  %3440 = vmatprep.subr.bf16.mxu0 %v2973
  %3441 = vmatpush2.bf16.msra.mxu0 %v2972
  %3442 = vmatprep.subr.bf16.mxu0 %v2966
  %3443 = vmatpush2.bf16.msra.mxu0 %v2965
  %3444 = vmatprep.subr.bf16.mxu0 %v2959
  %3445 = vmatpush2.bf16.msra.mxu0 %v2958
  %3446 = vmatprep.subr.bf16.mxu0 %v2952
  %3447 = vmatpush2.bf16.msra.mxu0 %v2951
  %3448 = vmatprep.mubr.bf16.mxu0 %v2101
  %3449 = vmatmul.mubr.bf16.gmra.mxu0 %v2100
  %v3450 = vpop.f32.mrf.mxu0
  %v3451 = vadd.f32 %v2325, %v3450
  %v3452 = vpop.f32.mrf.mxu0
  %v3453 = vadd.f32 %v2329, %v3452
  %v3454 = vpop.f32.mrf.mxu0
  %v3455 = vadd.f32 %v2325, %v3454
  %v3456 = vpop.f32.mrf.mxu0
  %v3457 = vadd.f32 %v2329, %v3456
  %3458 = vdwg.mxu0
  %3459 = vmatprep.subr.bf16.mxu0 %v3057
  %3460 = vmatpush1.bf16.msra.mxu0 %v3056
  %3461 = vmatprep.subr.bf16.mxu0 %v3050
  %3462 = vmatpush1.bf16.msra.mxu0 %v3049
  %3463 = vmatprep.subr.bf16.mxu0 %v3043
  %3464 = vmatpush1.bf16.msra.mxu0 %v3042
  %3465 = vmatprep.subr.bf16.mxu0 %v3036
  %3466 = vmatpush1.bf16.msra.mxu0 %v3035
  %3467 = vmatprep.subr.bf16.mxu0 %v3029
  %3468 = vmatpush1.bf16.msra.mxu0 %v3028
  %3469 = vmatprep.subr.bf16.mxu0 %v3022
  %3470 = vmatpush1.bf16.msra.mxu0 %v3021
  %3471 = vmatprep.subr.bf16.mxu0 %v3015
  %3472 = vmatpush1.bf16.msra.mxu0 %v3014
  %3473 = vmatprep.subr.bf16.mxu0 %v3008
  %3474 = vmatpush1.bf16.msra.mxu0 %v3007
  %3475 = vmatprep.subr.bf16.mxu0 0
  %3476 = vmatpush2.bf16.msra.mxu0 0
  %3477 = vmatprep.subr.bf16.mxu0 0
  %3478 = vmatpush2.bf16.msra.mxu0 0
  %3479 = vmatprep.subr.bf16.mxu0 0
  %3480 = vmatpush2.bf16.msra.mxu0 0
  %3481 = vmatprep.subr.bf16.mxu0 0
  %3482 = vmatpush2.bf16.msra.mxu0 0
  %3483 = vmatprep.subr.bf16.mxu0 0
  %3484 = vmatpush2.bf16.msra.mxu0 0
  %3485 = vmatprep.subr.bf16.mxu0 0
  %3486 = vmatpush2.bf16.msra.mxu0 0
  %3487 = vmatprep.subr.bf16.mxu0 0
  %3488 = vmatpush2.bf16.msra.mxu0 0
  %3489 = vmatprep.subr.bf16.mxu0 %v3064
  %3490 = vmatpush2.bf16.msra.mxu0 %v3063
  %3491 = vmatprep.mubr.bf16.mxu0 %v3242
  %3492 = vmatmul.mubr.bf16.gmra.mxu0 %v2102
  %v3493 = vpop.f32.mrf.mxu0
  %v3494 = vadd.f32 %v3451, %v3493
  %v3495 = vpop.f32.mrf.mxu0
  %v3496 = vadd.f32 %v3453, %v3495
  %v3497 = vpop.f32.mrf.mxu0
  %v3498 = vadd.f32 %v3455, %v3497
  %v3499 = vpop.f32.mrf.mxu0
  %v3500 = vadd.f32 %v3457, %v3499
  %3501 = vdwg.mxu0
  %3502 = vmatprep.subr.bf16.mxu0 0
  %3503 = vmatpush1.bf16.msra.mxu0 %v2946
  %3504 = vmatprep.subr.bf16.mxu0 0
  %3505 = vmatpush1.bf16.msra.mxu0 %v2939
  %3506 = vmatprep.subr.bf16.mxu0 0
  %3507 = vmatpush1.bf16.msra.mxu0 %v2932
  %3508 = vmatprep.subr.bf16.mxu0 0
  %3509 = vmatpush1.bf16.msra.mxu0 %v2925
  %3510 = vmatprep.subr.bf16.mxu0 0
  %3511 = vmatpush1.bf16.msra.mxu0 %v2918
  %3512 = vmatprep.subr.bf16.mxu0 0
  %3513 = vmatpush1.bf16.msra.mxu0 %v2911
  %3514 = vmatprep.subr.bf16.mxu0 0
  %3515 = vmatpush1.bf16.msra.mxu0 %v2904
  %3516 = vmatprep.subr.bf16.mxu0 0
  %3517 = vmatpush1.bf16.msra.mxu0 %v2897
  %3518 = vmatprep.subr.bf16.mxu0 0
  %3519 = vmatpush2.bf16.msra.mxu0 %v3002
  %3520 = vmatprep.subr.bf16.mxu0 0
  %3521 = vmatpush2.bf16.msra.mxu0 %v2995
  %3522 = vmatprep.subr.bf16.mxu0 0
  %3523 = vmatpush2.bf16.msra.mxu0 %v2988
  %3524 = vmatprep.subr.bf16.mxu0 0
  %3525 = vmatpush2.bf16.msra.mxu0 %v2981
  %3526 = vmatprep.subr.bf16.mxu0 0
  %3527 = vmatpush2.bf16.msra.mxu0 %v2974
  %3528 = vmatprep.subr.bf16.mxu0 0
  %3529 = vmatpush2.bf16.msra.mxu0 %v2967
  %3530 = vmatprep.subr.bf16.mxu0 0
  %3531 = vmatpush2.bf16.msra.mxu0 %v2960
  %3532 = vmatprep.subr.bf16.mxu0 0
  %3533 = vmatpush2.bf16.msra.mxu0 %v2953
  %3534 = vmatprep.mubr.bf16.mxu0 %v2101
  %3535 = vmatmul.mubr.bf16.gmra.mxu0 %v2100
  %v3536 = vpop.f32.mrf.mxu0
  %v3537 = vadd.f32 %v2333, %v3536
  %v3538 = vpop.f32.mrf.mxu0
  %v3539 = vpop.f32.mrf.mxu0
  %v3540 = vadd.f32 %v2333, %v3539
  %v3541 = vpop.f32.mrf.mxu0
  %3542 = vdwg.mxu0
  %3543 = vmatprep.subr.bf16.mxu0 0
  %3544 = vmatpush1.bf16.msra.mxu0 %v3058
  %3545 = vmatprep.subr.bf16.mxu0 0
  %3546 = vmatpush1.bf16.msra.mxu0 %v3051
  %3547 = vmatprep.subr.bf16.mxu0 0
  %3548 = vmatpush1.bf16.msra.mxu0 %v3044
  %3549 = vmatprep.subr.bf16.mxu0 0
  %3550 = vmatpush1.bf16.msra.mxu0 %v3037
  %3551 = vmatprep.subr.bf16.mxu0 0
  %3552 = vmatpush1.bf16.msra.mxu0 %v3030
  %3553 = vmatprep.subr.bf16.mxu0 0
  %3554 = vmatpush1.bf16.msra.mxu0 %v3023
  %3555 = vmatprep.subr.bf16.mxu0 0
  %3556 = vmatpush1.bf16.msra.mxu0 %v3016
  %3557 = vmatprep.subr.bf16.mxu0 0
  %3558 = vmatpush1.bf16.msra.mxu0 %v3009
  %3559 = vmatprep.subr.bf16.mxu0 0
  %3560 = vmatpush2.bf16.msra.mxu0 0
  %3561 = vmatprep.subr.bf16.mxu0 0
  %3562 = vmatpush2.bf16.msra.mxu0 0
  %3563 = vmatprep.subr.bf16.mxu0 0
  %3564 = vmatpush2.bf16.msra.mxu0 0
  %3565 = vmatprep.subr.bf16.mxu0 0
  %3566 = vmatpush2.bf16.msra.mxu0 0
  %3567 = vmatprep.subr.bf16.mxu0 0
  %3568 = vmatpush2.bf16.msra.mxu0 0
  %3569 = vmatprep.subr.bf16.mxu0 0
  %3570 = vmatpush2.bf16.msra.mxu0 0
  %3571 = vmatprep.subr.bf16.mxu0 0
  %3572 = vmatpush2.bf16.msra.mxu0 0
  %3573 = vmatprep.subr.bf16.mxu0 0
  %3574 = vmatpush2.bf16.msra.mxu0 %v3065
  %3575 = vmatprep.mubr.bf16.mxu0 %v3242
  %3576 = vmatmul.mubr.bf16.gmra.mxu0 %v2102
  %v3577 = vpop.f32.mrf.mxu0
  %v3578 = vadd.f32 %v3537, %v3577
  %v3579 = vpop.f32.mrf.mxu0
  %v3580 = vpop.f32.mrf.mxu0
  %v3581 = vadd.f32 %v3540, %v3580
  %v3582 = vpop.f32.mrf.mxu0
  %3583 = vdwg.mxu0
  %v3584 = vpack.c.bf16 %v3326, %v3322
  %v3585 = vpack.c.bf16 %v3328, %v3324
  %v3586 = vpack.c.bf16 %v3412, %v3408
  %v3587 = vpack.c.bf16 %v3414, %v3410
  %v3588 = vpack.c.bf16 %v3498, %v3494
  %v3589 = vpack.c.bf16 %v3500, %v3496
  %v3590 = vpack.c.bf16 %v3581, %v3578
  %v3591 = vmul.bf16 %v3584, 1056980736
  %v3592 = vmul.bf16 %v3585, 1056980736
  %v3593 = vmul.bf16 %v3586, 1056980736
  %v3594 = vmul.bf16 %v3587, 1056980736
  %v3595 = vmul.bf16 %v3588, 1056980736
  %v3596 = vmul.bf16 %v3589, 1056980736
  %v3597 = vmul.bf16 %v3590, 1056980736
  %v3598 = vtanh.bf16.pop %v3591
  %v3599 = vtanh.bf16.pop %v3592
  %v3600 = vtanh.bf16.pop %v3593
  %v3601 = vtanh.bf16.pop %v3594
  %v3602 = vtanh.bf16.pop %v3595
  %v3603 = vtanh.bf16.pop %v3596
  %v3604 = vtanh.bf16.pop %v3597
  %v3605 = vmul.bf16 %v3598, 1056980736
  %v3606 = vmul.bf16 %v3599, 1056980736
  %v3607 = vmul.bf16 %v3600, 1056980736
  %v3608 = vmul.bf16 %v3601, 1056980736
  %v3609 = vmul.bf16 %v3602, 1056980736
  %v3610 = vmul.bf16 %v3603, 1056980736
  %v3611 = vmul.bf16 %v3604, 1056980736
  %v3612 = vadd.bf16 %v3605, 1056980736
  %v3613 = vadd.bf16 %v3606, 1056980736
  %v3614 = vadd.bf16 %v3607, 1056980736
  %v3615 = vadd.bf16 %v3608, 1056980736
  %v3616 = vadd.bf16 %v3609, 1056980736
  %v3617 = vadd.bf16 %v3610, 1056980736
  %v3618 = vadd.bf16 %v3611, 1056980736
  %v3626 = vunpack.c.l.b16 %v3612
  %v3627 = vunpack.c.l.b16 %v3613
  %v3628 = vunpack.c.l.b16 %v3614
  %v3629 = vunpack.c.l.b16 %v3615
  %v3630 = vunpack.c.l.b16 %v3616
  %v3631 = vunpack.c.l.b16 %v3617
  %v3632 = vunpack.c.l.b16 %v3618
  %v3633 = vunpack.c.h.b16 %v3612
  %v3634 = vunpack.c.h.b16 %v3613
  %v3635 = vunpack.c.h.b16 %v3614
  %v3636 = vunpack.c.h.b16 %v3615
  %v3637 = vunpack.c.h.b16 %v3616
  %v3638 = vunpack.c.h.b16 %v3617
  %v3639 = vunpack.c.h.b16 %v3618
  %v3640 = vpack.c.b16 %v3627, %v3626
  %v3641 = vpack.c.b16 %v3629, %v3628
  %v3642 = vpack.c.b16 %v3631, %v3630
  %v3643 = vpack.c.b16 %v3632, %v3632
  %v3644 = vpack.c.b16 %v3634, %v3633
  %v3645 = vpack.c.b16 %v3636, %v3635
  %v3646 = vpack.c.b16 %v3638, %v3637
  %v3647 = vpack.c.b16 %v3639, %v3639
  %3656 = vst [vmem:[%s10] sm:$0xff] %v3640
  %3657 = vst [vmem:[%s10 + $0x8] sm:$0xff] %v3641
  %3658 = vst [vmem:[%s10 + $0x10] sm:$0xff] %v3642
  %vm3659 = vcmask 125952
  %3660 = vst.msk [vmem:[%s10 + $0x18] sm:$0xf] %vm3659, %v3643
  %3661 = vst [vmem:[%s10 + $0x1c] sm:$0xff] %v3644
  %3662 = vst [vmem:[%s10 + $0x24] sm:$0xff] %v3645
  %3663 = vst [vmem:[%s10 + $0x2c] sm:$0xff] %v3646
  %3664 = vst.msk [vmem:[%s10 + $0x34] sm:$0xf] %vm3659, %v3647
  %vm3665 = vcmask 326656
  %3666 = vst.msk [vmem:[%s11] sm:$0xff] %vm3665, %v1904
  %3667 = vst.msk [vmem:[%s11 + $0x8] sm:$0xff] %vm3665, %v1907
  // Predicated region
  $region42: #{vae_forward.1} parent=0 // pred_check
    _
  $region43: #{vae_forward.1} parent=0 // pred_check_branch
    %3669 = sbr.rel (0) target = $region45
  $region44: #{vae_forward.1} parent=0 // pred_region
    _
  $region45: #{vae_forward.1} parent=0 // pred_fallthru
    _
  // Predicated region
  $region46: #{vae_forward.1} parent=0 // pred_check
    _
  $region47: #{vae_forward.1} parent=0 // pred_check_branch
    %3671 = sbr.rel (0) target = $region49
  $region48: #{vae_forward.1} parent=0 // pred_region
    _
  $region49: #{vae_forward.1} parent=0 // pred_fallthru
    _
  // Predicated region
  $region50: #{vae_forward.1} parent=0 // pred_check
    _
  $region51: #{vae_forward.1} parent=0 // pred_check_branch
    %3673 = sbr.rel (0) target = $region53
  $region52: #{vae_forward.1} parent=0 // pred_region
    _
  $region53: #{vae_forward.1} parent=0 // pred_fallthru
    _
  // Predicated region
  $region54: #{vae_forward.1} parent=0 // pred_check
    _
  $region55: #{vae_forward.1} parent=0 // pred_check_branch
    %3675 = sbr.rel (0) target = $region57
  $region56: #{vae_forward.1} parent=0 // pred_region
    _
  $region57: #{vae_forward.1} parent=0 // pred_fallthru
    _

</llo_original>
